<compile_context>
chip_gen: v6e
topology: v6e:2x2x1
jax: 0.10.0
libtpu: 0.0.40
codegen_flags: <defaults>
</compile_context>

<pallas_src>
import functools

import jax
import jax.numpy as jnp
from jax import lax
from jax.experimental import pallas as pl
from jax.experimental.pallas import tpu as pltpu

_TAPW = 128  # merged 3x3x2 conv weight padded from 18 -> 128 columns (lane aligned)


# -----------------------------------------------------------------------------
# Kernel 1: NonLocal2D refine (embedded gaussian, reduction=1, use_scale=False)
# flash-style: grid = (B, n_q, n_k), online softmax over key blocks.
# -----------------------------------------------------------------------------
def _nonlocal_flash_kernel(xq_ref, xk_ref, wt_ref, wpg_ref, wo_ref,
                           bt_ref, bpg_ref, bo_ref, o_ref,
                           theta_s, m_s, l_s, acc_s):
    C = xq_ref.shape[2]
    ki = pl.program_id(2)

    @pl.when(ki == 0)
    def _init():
        xq = xq_ref[0].astype(jnp.bfloat16)
        theta_s[...] = (jnp.dot(xq, wt_ref[...],
                                preferred_element_type=jnp.float32)
                        + bt_ref[...]).astype(jnp.bfloat16)
        m_s[...] = jnp.full_like(m_s, -jnp.inf)
        l_s[...] = jnp.zeros_like(l_s)
        acc_s[...] = jnp.zeros_like(acc_s)

    # fused phi||g projection for this key block: one wide MXU matmul.
    xk = xk_ref[0].astype(jnp.bfloat16)
    pg = jnp.dot(xk, wpg_ref[...], preferred_element_type=jnp.float32) + bpg_ref[...]
    phi = pg[:, :C].astype(jnp.bfloat16)     # 128-aligned lane slices (C % 128 == 0)
    g = pg[:, C:].astype(jnp.bfloat16)

    # scores: contract last dims of theta / phi (no explicit transpose in source).
    s = lax.dot_general(theta_s[...], phi,
                        (((1,), (1,)), ((), ())),
                        preferred_element_type=jnp.float32)           # [tq, tk]

    m_new = jnp.maximum(m_s[...], jnp.max(s, axis=-1, keepdims=True))
    alpha = jnp.exp(m_s[...] - m_new)
    p = jnp.exp(s - m_new)
    l_s[...] = alpha * l_s[...] + jnp.sum(p, axis=-1, keepdims=True)
    acc_s[...] = alpha * acc_s[...] + jnp.dot(p.astype(jnp.bfloat16), g,
                                              preferred_element_type=jnp.float32)
    m_s[...] = m_new

    @pl.when(ki == pl.num_programs(2) - 1)
    def _finish():
        y = acc_s[...] * pl.reciprocal(l_s[...], approx=True)         # [tq, C]
        o_ref[0] = (xq_ref[0]
                    + jnp.dot(y.astype(jnp.bfloat16), wo_ref[...],
                              preferred_element_type=jnp.float32)
                    + bo_ref[...])


def _divisor_tile(n, cap):
    t = min(n, cap)
    while n % t:
        t //= 2
    return t


def nonlocal_refine(x_flat, w_t, w_pg, w_out, b_t, b_pg, b_out,
                    *, q_tile=None, k_tile=None):
    B, HW, C = x_flat.shape
    assert C % 128 == 0, "fused phi/g lane-slicing assumes C is a multiple of 128"
    # Real defaults: bounded score tile; production tiles should be %128.
    tq = q_tile or _divisor_tile(HW, 256)
    tk = k_tile or _divisor_tile(HW, 512)
    assert HW % tq == 0 and HW % tk == 0 and tq % 8 == 0 and tk % 8 == 0
    nq, nk = HW // tq, HW // tk

    return pl.pallas_call(
        _nonlocal_flash_kernel,
        out_shape=jax.ShapeDtypeStruct((B, HW, C), jnp.float32),
        grid=(B, nq, nk),
        in_specs=[
            pl.BlockSpec((1, tq, C), lambda b, qi, ki: (b, qi, 0)),   # queries
            pl.BlockSpec((1, tk, C), lambda b, qi, ki: (b, ki, 0)),   # keys/values
            pl.BlockSpec((C, C), lambda b, qi, ki: (0, 0)),           # w_theta   (bf16)
            pl.BlockSpec((C, 2 * C), lambda b, qi, ki: (0, 0)),       # w_phi||g  (bf16)
            pl.BlockSpec((C, C), lambda b, qi, ki: (0, 0)),           # w_out     (bf16)
            pl.BlockSpec((1, C), lambda b, qi, ki: (0, 0)),           # b_theta
            pl.BlockSpec((1, 2 * C), lambda b, qi, ki: (0, 0)),       # b_phi||g
            pl.BlockSpec((1, C), lambda b, qi, ki: (0, 0)),           # b_out
        ],
        out_specs=pl.BlockSpec((1, tq, C), lambda b, qi, ki: (b, qi, 0)),
        scratch_shapes=[
            pltpu.VMEM((tq, C), jnp.bfloat16),  # theta (bf16: halves footprint)
            pltpu.VMEM((tq, 1), jnp.float32),   # running max
            pltpu.VMEM((tq, 1), jnp.float32),   # running denom
            pltpu.VMEM((tq, C), jnp.float32),   # output accumulator
        ],
        compiler_params=pltpu.CompilerParams(
            dimension_semantics=("parallel", "parallel", "arbitrary"),
            vmem_limit_bytes=32 * 1024 * 1024,   # fits v7x's 64 MiB/TC budget
        ),
    )(x_flat, x_flat, w_t, w_pg, w_out, b_t, b_pg, b_out)


# -----------------------------------------------------------------------------
# Kernel 2: fused per-level spatial attention (row-block tiled, halo via
# clamped 1-row blocked inputs, no XLA pad)
#   c_k = conv3x3_k(x) + b_k  (k=0,1, single output channel)
#   amap = tanh(relu(c0)) + tanh(relu(c1))
#   out  = x + nearest_rows(bsf) * amap
# -----------------------------------------------------------------------------
def _level_kernel(x_ref, top_ref, bot_ref, bsf_ref, w_ref, b_ref, o_ref, t_ref,
                  *, TR, W, rh):
    # x_ref  : [1, TR, W, C] f32    row block of the level input
    # top_ref: [1, 1, W, C]  f32    row above the block (clamped; zeroed at top edge)
    # bot_ref: [1, 1, W, C]  f32    row below the block (clamped; zeroed at bottom)
    # bsf_ref: [1, BR, W, C] f32    refined feature rows for this block (cols resized)
    # w_ref  : [C, 128] bf16        merged 3x3x2 taps in cols 0..17, zero padded
    # b_ref  : [1, 2] f32           conv biases
    # o_ref  : [1, TR, W, C] f32
    # t_ref  : VMEM scratch [(TR+4)*W, 128] f32 (tap projections, W-row slack each end)
    C = x_ref.shape[3]
    N = TR * W
    r = pl.program_id(1)
    last = pl.num_programs(1) - 1
    w_taps = w_ref[...]

    # ---- tap projections: one wide MXU matmul + two tiny halo-row matmuls ----
    t_ref[2 * W:2 * W + N, :] = jnp.dot(
        x_ref[0].reshape(N, C).astype(jnp.bfloat16), w_taps,
        preferred_element_type=jnp.float32)
    top = top_ref[0, 0] * jnp.where(r > 0, 1.0, 0.0)        # zero padding at image top
    bot = bot_ref[0, 0] * jnp.where(r < last, 1.0, 0.0)     # zero padding at image bottom
    t_ref[W:2 * W, :] = jnp.dot(top.astype(jnp.bfloat16), w_taps,
                                preferred_element_type=jnp.float32)
    t_ref[2 * W + N:3 * W + N, :] = jnp.dot(bot.astype(jnp.bfloat16), w_taps,
                                            preferred_element_type=jnp.float32)

    # ---- single-matmul stencil combine: 9 shifted 2-wide adds + edge masks ----
    # The W-row slack regions at both ends of t_ref are only ever read at
    # column-masked positions, so their (uninitialized) contents are discarded
    # by the selects below.
    def tap(ky, kx):
        d = (ky + 1) * W + (kx - 1)          # sublane shift of this tap
        c0 = 2 * (3 * ky + kx)               # lane slot of this tap's 2 channels
        return t_ref[d:d + N, c0:c0 + 2]

    mid = tap(0, 1) + tap(1, 1) + tap(2, 1)
    left = tap(0, 0) + tap(1, 0) + tap(2, 0)    # reads x-1 -> mask column 0
    right = tap(0, 2) + tap(1, 2) + tap(2, 2)   # reads x+1 -> mask column W-1
    iota = lax.broadcasted_iota(jnp.int32, (N, 1), 0)
    col = (iota & (W - 1)) if (W & (W - 1)) == 0 else (iota % W)
    acc = mid + jnp.where(col > 0, left, 0.0) + jnp.where(col < W - 1, right, 0.0)
    acc = acc + b_ref[...]                                            # [N, 2]

    # TODO(synk): transpose to [2, N] for lane-dense tanh (matters on v7x; the
    #             kernel is HBM-bound on v5e/v6e so this path is hidden there).
    amap = jnp.tanh(jax.nn.relu(acc))                                 # [N, 2]
    amap = amap[:, 0:1] + amap[:, 1:2]                                # [N, 1]

    # ---- out = x + nearest_rows(bsf) * amap; row upsample is a lazy broadcast ----
    rep = min(rh, TR)                 # output rows per bsf row inside this block
    br = TR // rep
    x4 = x_ref[0].reshape(br, rep, W, C)
    b4 = bsf_ref[0].reshape(br, 1, W, C)
    a4 = amap.reshape(br, rep, W, 1)
    o_ref[0] = (x4 + b4 * a4).reshape(TR, W, C)


def level_attention(x, bsf_l, w_taps, bias, *, row_tile=None):
    B, H, W, C = x.shape
    rows = bsf_l.shape[1]
    assert H % rows == 0
    rh = H // rows                                     # in-kernel row repeat factor
    if row_tile is None:
        # ~2 MiB input block by default; power-of-two so it divides FPN heights.
        tr = max(1, min(H, (2 * 1024 * 1024) // (W * C * 4)))
        TR = 1 << (tr.bit_length() - 1)
    else:
        TR = min(row_tile, H)
    while H % TR:
        TR //= 2
    assert TR >= 1 and H % TR == 0
    assert W % 8 == 0 and C % 128 == 0
    assert TR % rh == 0 or rh % TR == 0
    BR = max(TR // rh, 1)                              # bsf rows per block
    nR = H // TR

    kern = functools.partial(_level_kernel, TR=TR, W=W, rh=rh)
    return pl.pallas_call(
        kern,
        out_shape=jax.ShapeDtypeStruct((B, H, W, C), jnp.float32),
        grid=(B, nR),
        in_specs=[
            pl.BlockSpec((1, TR, W, C), lambda b, r: (b, r, 0, 0)),
            # 1-row halos: block size 1 along H => block index == row index.
            pl.BlockSpec((1, 1, W, C),
                         lambda b, r: (b, jnp.maximum(r * TR - 1, 0), 0, 0)),
            pl.BlockSpec((1, 1, W, C),
                         lambda b, r: (b, jnp.minimum((r + 1) * TR, H - 1), 0, 0)),
            pl.BlockSpec((1, BR, W, C),
                         lambda b, r: (b, (r * TR) // rh // BR, 0, 0)),
            pl.BlockSpec((C, _TAPW), lambda b, r: (0, 0)),
            pl.BlockSpec((1, 2), lambda b, r: (0, 0)),
        ],
        out_specs=pl.BlockSpec((1, TR, W, C), lambda b, r: (b, r, 0, 0)),
        scratch_shapes=[pltpu.VMEM(((TR + 4) * W, _TAPW), jnp.float32)],
        compiler_params=pltpu.CompilerParams(
            dimension_semantics=("parallel", "parallel"),
            vmem_limit_bytes=32 * 1024 * 1024,
        ),
    )(x, x, x, bsf_l, w_taps, bias)


# -----------------------------------------------------------------------------
# XLA glue: gathering / resizing, parameter init, full forward
# -----------------------------------------------------------------------------
def adaptive_max_pool(x, oh, ow):
    # exact-ratio adaptive max pool; FPN sizes are powers of two so this matches
    # PyTorch's adaptive_max_pool2d.
    B, H, W, C = x.shape
    assert H % oh == 0 and W % ow == 0
    return x.reshape(B, oh, H // oh, ow, W // ow, C).max(axis=(2, 4))


def nearest_resize(x, oh, ow):
    # legacy floor 'nearest' (PyTorch F.interpolate default): idx = i*in//out
    B, H, W, C = x.shape
    ih = (jnp.arange(oh) * H) // oh
    iw = (jnp.arange(ow) * W) // ow
    return x[:, ih][:, :, iw]


def init_params(key, C, num_levels):
    k0, k1, k2, k3 = jax.random.split(key, 4)
    s_nl = 0.5 * (6.0 / (2 * C)) ** 0.5          # xavier-ish scale for CxC 1x1 convs
    s_rc = (6.0 / (9 * C + 9)) ** 0.5            # xavier-ish scale for 3x3 C->1 convs
    return {
        # NonLocal2D: theta, phi, g, conv_out 1x1 convs [C_in, C_out] + biases
        "nl_w": jax.random.uniform(k0, (4, C, C), jnp.float32, -s_nl, s_nl),
        "nl_b": jax.random.uniform(k1, (4, C), jnp.float32, -0.05, 0.05),
        # reduce_convs / reduce_convs2: per level [2, 3, 3, C] weights, (2,) biases
        "red_w": jax.random.uniform(k2, (num_levels, 2, 3, 3, C), jnp.float32, -s_rc, s_rc),
        "red_b": jax.random.uniform(k3, (num_levels, 2), jnp.float32, -0.05, 0.05),
    }


def wfpn_dual_spatial_forward(inputs_nchw, params, refine_level=2,
                              *, q_tile=None, k_tile=None, row_tile=None):
    num_levels = len(inputs_nchw)
    xs = [jnp.transpose(x, (0, 2, 3, 1)).astype(jnp.float32) for x in inputs_nchw]  # NHWC
    gh, gw = xs[refine_level].shape[1:3]

    feats = []
    for i, x in enumerate(xs):
        if i < refine_level:
            feats.append(adaptive_max_pool(x, gh, gw))
        else:
            feats.append(nearest_resize(x, gh, gw))
    ori = sum(feats) / float(num_levels)                       # [B, gh, gw, C]
    B, _, _, C = ori.shape
    HW = gh * gw

    # fused projection weights for the NonLocal kernel
    nl_w, nl_b = params["nl_w"], params["nl_b"]
    w_t = nl_w[0].astype(jnp.bfloat16)
    w_pg = jnp.concatenate([nl_w[1], nl_w[2]], axis=1).astype(jnp.bfloat16)   # [C, 2C]
    w_out = nl_w[3].astype(jnp.bfloat16)
    b_t, b_out = nl_b[0][None, :], nl_b[3][None, :]
    b_pg = jnp.concatenate([nl_b[1], nl_b[2]])[None, :]

    bsf = nonlocal_refine(ori.reshape(B, HW, C), w_t, w_pg, w_out, b_t, b_pg, b_out,
                          q_tile=q_tile, k_tile=k_tile).reshape(B, gh, gw, C)

    outs = []
    for i, x in enumerate(xs):
        _, h, w, _ = x.shape
        rows = min(h, gh)
        # Column resize (and any downsample) of bsf happens in XLA on a small
        # [B, rows, w, C] slab; the power-of-two row upsample is a lazy
        # broadcast inside the kernel, so the full-resolution bsf never hits HBM.
        bsf_l = nearest_resize(bsf, rows, w)
        # merged 3x3 conv taps: [C, 18] with column index 2*(3*ky+kx)+k, zero-padded.
        w18 = jnp.transpose(params["red_w"][i], (3, 1, 2, 0)).reshape(C, 18)
        w_lvl = jnp.pad(w18, ((0, 0), (0, _TAPW - 18))).astype(jnp.bfloat16)
        b_lvl = params["red_b"][i][None, :]                                     # [1,2]
        out = level_attention(x, bsf_l, w_lvl, b_lvl, row_tile=row_tile)
        outs.append(jnp.transpose(out, (0, 3, 1, 2)))                           # NCHW
    return tuple(outs)


# -----------------------------------------------------------------------------
# bf16-consistent pure-JAX reference (same bf16 MXU-operand casts as the kernels)
# -----------------------------------------------------------------------------
def ref_forward(inputs_nchw, params, refine_level=2):
    num_levels = len(inputs_nchw)
    xs = [jnp.transpose(x, (0, 2, 3, 1)).astype(jnp.float32) for x in inputs_nchw]
    gh, gw = xs[refine_level].shape[1:3]
    feats = [adaptive_max_pool(x, gh, gw) if i < refine_level else nearest_resize(x, gh, gw)
             for i, x in enumerate(xs)]
    ori = sum(feats) / float(num_levels)
    B, H, W, C = ori.shape

    xb = ori.reshape(B, H * W, C).astype(jnp.bfloat16)
    wt, wp, wg, wo = [params["nl_w"][k].astype(jnp.bfloat16) for k in range(4)]
    bt, bp, bg, bo = [params["nl_b"][k] for k in range(4)]
    theta = jnp.einsum("bqc,cd->bqd", xb, wt, preferred_element_type=jnp.float32) + bt
    phi = jnp.einsum("bqc,cd->bqd", xb, wp, preferred_element_type=jnp.float32) + bp
    g = jnp.einsum("bqc,cd->bqd", xb, wg, preferred_element_type=jnp.float32) + bg
    s = jnp.einsum("bqc,bkc->bqk", theta.astype(jnp.bfloat16), phi.astype(jnp.bfloat16),
                   preferred_element_type=jnp.float32)
    p = jax.nn.softmax(s, axis=-1)
    y = jnp.einsum("bqk,bkc->bqc", p.astype(jnp.bfloat16), g.astype(jnp.bfloat16),
                   preferred_element_type=jnp.float32)
    bsf = ori + (jnp.einsum("bqc,cd->bqd", y.astype(jnp.bfloat16), wo,
                            preferred_element_type=jnp.float32) + bo).reshape(B, H, W, C)

    outs = []
    for i, x in enumerate(xs):
        _, h, w, _ = x.shape
        bsf_up = nearest_resize(bsf, h, w)
        wk = params["red_w"][i].astype(jnp.bfloat16)
        xb16 = x.astype(jnp.bfloat16)

        def conv(k):
            return lax.conv_general_dilated(
                xb16, wk[k][..., None], (1, 1), "SAME",
                dimension_numbers=("NHWC", "HWIO", "NHWC"),
                preferred_element_type=jnp.float32)[..., 0] + params["red_b"][i][k]

        amap = jnp.tanh(jax.nn.relu(conv(0))) + jnp.tanh(jax.nn.relu(conv(1)))
        out = x + bsf_up * amap[..., None]
        outs.append(jnp.transpose(out, (0, 3, 1, 2)))
    return tuple(outs)


if __name__ == "__main__":
    B, C = 2, 128
    num_levels, refine_level = 3, 2
    sizes = [(64, 64), (32, 32), (16, 16)]        # gather size = 16x16 -> HW = 256

    key = jax.random.PRNGKey(0)
    kin, kp = jax.random.split(key)
    in_keys = jax.random.split(kin, num_levels)
    inputs = tuple(
        jax.random.normal(in_keys[i], (B, C, sizes[i][0], sizes[i][1]), jnp.float32)
        for i in range(num_levels)
    )
    params = init_params(kp, C, num_levels)

    # (a) default tiles: single flash block, one row block per level.
    outs_a = jax.block_until_ready(wfpn_dual_spatial_forward(inputs, params, refine_level))
    # (b) tiled path: 2x2 flash blocks, 16-row level blocks (exercises the halo).
    outs_b = jax.block_until_ready(
        wfpn_dual_spatial_forward(inputs, params, refine_level,
                                  q_tile=128, k_tile=128, row_tile=16))

    refs = ref_forward(inputs, params, refine_level)
    # Tolerance accounts for bf16 MXU operands, online-softmax reordering and the
    # approx (EUP) reciprocal in the kernel vs the bf16-consistent XLA reference.
    for o, r in zip(outs_a, refs):
        assert o.shape == r.shape, (o.shape, r.shape)
        assert jnp.allclose(o, r, atol=3e-2, rtol=2e-2), float(jnp.abs(o - r).max())
    for o, r in zip(outs_b, refs):
        assert o.shape == r.shape, (o.shape, r.shape)
        assert jnp.allclose(o, r, atol=3e-2, rtol=2e-2), float(jnp.abs(o - r).max())

    print("KERNEL_OK")
</pallas_src>

<mosaic_0001>
module attributes {stable_mosaic.version = 11 : i64} {
  func.func @_nonlocal_flash_kernel(%arg0: i32, %arg1: i32, %arg2: i32, %arg3: memref<1x256x128xf32, #tpu.memory_space<vmem>>, %arg4: memref<1x256x128xf32, #tpu.memory_space<vmem>>, %arg5: memref<128x128xbf16, #tpu.memory_space<vmem>>, %arg6: memref<128x256xbf16, #tpu.memory_space<vmem>>, %arg7: memref<128x128xbf16, #tpu.memory_space<vmem>>, %arg8: memref<1x128xf32, #tpu.memory_space<vmem>>, %arg9: memref<1x256xf32, #tpu.memory_space<vmem>>, %arg10: memref<1x128xf32, #tpu.memory_space<vmem>>, %arg11: memref<1x256x128xf32, #tpu.memory_space<vmem>>, %arg12: memref<256x128xbf16, #tpu.memory_space<vmem>>, %arg13: memref<256x1xf32, #tpu.memory_space<vmem>>, %arg14: memref<256x1xf32, #tpu.memory_space<vmem>>, %arg15: memref<256x128xf32, #tpu.memory_space<vmem>>) attributes {dimension_semantics = [#tpu.dimension_semantics<parallel>, #tpu.dimension_semantics<parallel>, #tpu.dimension_semantics<arbitrary>], iteration_bounds = array<i64: 2, 1, 1>, scalar_prefetch = 0 : i64, scratch_operands = 4 : i64, tpu.core_type = #tpu.core_type<tc>, window_params = [{transform_indices = @transform_0, window_bounds = array<i64: 1, 256, 128>}, {transform_indices = @transform_1, window_bounds = array<i64: 1, 256, 128>}, {pipeline_mode = #tpu.pipeline_mode<synchronous>, transform_indices = @transform_2, window_bounds = array<i64: 128, 128>}, {pipeline_mode = #tpu.pipeline_mode<synchronous>, transform_indices = @transform_3, window_bounds = array<i64: 128, 256>}, {pipeline_mode = #tpu.pipeline_mode<synchronous>, transform_indices = @transform_4, window_bounds = array<i64: 128, 128>}, {pipeline_mode = #tpu.pipeline_mode<synchronous>, transform_indices = @transform_5, window_bounds = array<i64: 1, 128>}, {pipeline_mode = #tpu.pipeline_mode<synchronous>, transform_indices = @transform_6, window_bounds = array<i64: 1, 256>}, {pipeline_mode = #tpu.pipeline_mode<synchronous>, transform_indices = @transform_7, window_bounds = array<i64: 1, 128>}, {transform_indices = @transform_8, window_bounds = array<i64: 1, 256, 128>}]} {
    %c0_i32 = arith.constant 0 : i32
    %0 = arith.cmpi eq, %arg2, %c0_i32 : i32
    %1 = arith.extui %0 : i1 to i32
    %c0_i32_0 = arith.constant 0 : i32
    %2 = arith.cmpi ne, %1, %c0_i32_0 : i32
    scf.if %2 {
      %c0_29 = arith.constant 0 : index
      %c0_30 = arith.constant 0 : index
      %c0_31 = arith.constant 0 : index
      %44 = vector.load %arg3[%c0_29, %c0_30, %c0_31] : memref<1x256x128xf32, #tpu.memory_space<vmem>>, vector<1x256x128xf32>
      %45 = vector.shape_cast %44 : vector<1x256x128xf32> to vector<256x128xf32>
      %46 = arith.truncf %45 : vector<256x128xf32> to vector<256x128xbf16>
      %c0_32 = arith.constant 0 : index
      %c0_33 = arith.constant 0 : index
      %47 = vector.load %arg5[%c0_32, %c0_33] : memref<128x128xbf16, #tpu.memory_space<vmem>>, vector<128x128xbf16>
      %cst_34 = arith.constant dense<0.000000e+00> : vector<256x128xf32>
      %48 = tpu.matmul %46, %47, %cst_34 {dimension_numbers = #tpu.dot_dimension_numbers<[1], [0], [0], [1], [0, 0, 1, 1], [], []>} : vector<256x128xbf16>, vector<128x128xbf16>, vector<256x128xf32> -> vector<256x128xf32>
      %c0_35 = arith.constant 0 : index
      %c0_36 = arith.constant 0 : index
      %49 = vector.load %arg8[%c0_35, %c0_36] : memref<1x128xf32, #tpu.memory_space<vmem>>, vector<1x128xf32>
      %50 = vector.broadcast %49 : vector<1x128xf32> to vector<256x128xf32>
      %51 = arith.addf %48, %50 : vector<256x128xf32>
      %52 = arith.truncf %51 : vector<256x128xf32> to vector<256x128xbf16>
      %c0_37 = arith.constant 0 : index
      %c0_38 = arith.constant 0 : index
      %53 = vector.load %arg12[%c0_37, %c0_38] : memref<256x128xbf16, #tpu.memory_space<vmem>>, vector<256x128xbf16>
      tpu.vector_store %arg12[%c0_37, %c0_38], %52 {strides = array<i32>} : memref<256x128xbf16, #tpu.memory_space<vmem>>, vector<256x128xbf16>,
      %cst_39 = arith.constant 0xFF800000 : f32
      %54 = vector.broadcast %cst_39 : f32 to vector<256x1xf32>
      %c0_40 = arith.constant 0 : index
      %c0_41 = arith.constant 0 : index
      %55 = vector.load %arg13[%c0_40, %c0_41] : memref<256x1xf32, #tpu.memory_space<vmem>>, vector<256x1xf32>
      tpu.vector_store %arg13[%c0_40, %c0_41], %54 {strides = array<i32>} : memref<256x1xf32, #tpu.memory_space<vmem>>, vector<256x1xf32>,
      %cst_42 = arith.constant 0.000000e+00 : f32
      %56 = vector.broadcast %cst_42 : f32 to vector<256x1xf32>
      %c0_43 = arith.constant 0 : index
      %c0_44 = arith.constant 0 : index
      %57 = vector.load %arg14[%c0_43, %c0_44] : memref<256x1xf32, #tpu.memory_space<vmem>>, vector<256x1xf32>
      tpu.vector_store %arg14[%c0_43, %c0_44], %56 {strides = array<i32>} : memref<256x1xf32, #tpu.memory_space<vmem>>, vector<256x1xf32>,
      %cst_45 = arith.constant 0.000000e+00 : f32
      %58 = vector.broadcast %cst_45 : f32 to vector<256x128xf32>
      %c0_46 = arith.constant 0 : index
      %c0_47 = arith.constant 0 : index
      %59 = vector.load %arg15[%c0_46, %c0_47] : memref<256x128xf32, #tpu.memory_space<vmem>>, vector<256x128xf32>
      tpu.vector_store %arg15[%c0_46, %c0_47], %58 {strides = array<i32>} : memref<256x128xf32, #tpu.memory_space<vmem>>, vector<256x128xf32>,
    } else {
    }
    %c0 = arith.constant 0 : index
    %c0_1 = arith.constant 0 : index
    %c0_2 = arith.constant 0 : index
    %3 = vector.load %arg4[%c0, %c0_1, %c0_2] : memref<1x256x128xf32, #tpu.memory_space<vmem>>, vector<1x256x128xf32>
    %4 = vector.shape_cast %3 : vector<1x256x128xf32> to vector<256x128xf32>
    %5 = arith.truncf %4 : vector<256x128xf32> to vector<256x128xbf16>
    %c0_3 = arith.constant 0 : index
    %c0_4 = arith.constant 0 : index
    %6 = vector.load %arg6[%c0_3, %c0_4] : memref<128x256xbf16, #tpu.memory_space<vmem>>, vector<128x256xbf16>
    %cst = arith.constant dense<0.000000e+00> : vector<256x256xf32>
    %7 = tpu.matmul %5, %6, %cst {dimension_numbers = #tpu.dot_dimension_numbers<[1], [0], [0], [1], [0, 0, 1, 1], [], []>} : vector<256x128xbf16>, vector<128x256xbf16>, vector<256x256xf32> -> vector<256x256xf32>
    %c0_5 = arith.constant 0 : index
    %c0_6 = arith.constant 0 : index
    %8 = vector.load %arg9[%c0_5, %c0_6] : memref<1x256xf32, #tpu.memory_space<vmem>>, vector<1x256xf32>
    %9 = vector.broadcast %8 : vector<1x256xf32> to vector<256x256xf32>
    %10 = arith.addf %7, %9 : vector<256x256xf32>
    %11 = vector.extract_strided_slice %10 {offsets = [0, 0], sizes = [256, 128], strides = [1, 1]} : vector<256x256xf32> to vector<256x128xf32>
    %12 = arith.truncf %11 : vector<256x128xf32> to vector<256x128xbf16>
    %13 = vector.extract_strided_slice %10 {offsets = [0, 128], sizes = [256, 128], strides = [1, 1]} : vector<256x256xf32> to vector<256x128xf32>
    %14 = arith.truncf %13 : vector<256x128xf32> to vector<256x128xbf16>
    %c0_7 = arith.constant 0 : index
    %c0_8 = arith.constant 0 : index
    %15 = vector.load %arg12[%c0_7, %c0_8] : memref<256x128xbf16, #tpu.memory_space<vmem>>, vector<256x128xbf16>
    %cst_9 = arith.constant dense<0.000000e+00> : vector<256x256xf32>
    %16 = tpu.matmul %15, %12, %cst_9 {dimension_numbers = #tpu.dot_dimension_numbers<[1], [1], [0], [0], [0, 0, 1, 0], [], []>} : vector<256x128xbf16>, vector<256x128xbf16>, vector<256x256xf32> -> vector<256x256xf32>
    %c0_10 = arith.constant 0 : index
    %c0_11 = arith.constant 0 : index
    %17 = vector.load %arg13[%c0_10, %c0_11] : memref<256x1xf32, #tpu.memory_space<vmem>>, vector<256x1xf32>
    %cst_12 = arith.constant dense<0xFF800000> : vector<256xf32>
    %18 = vector.multi_reduction <maximumf>, %16, %cst_12 [1] : vector<256x256xf32> to vector<256xf32>
    %19 = vector.shape_cast %18 : vector<256xf32> to vector<256x1xf32>
    %20 = arith.maximumf %17, %19 : vector<256x1xf32>
    %c0_13 = arith.constant 0 : index
    %c0_14 = arith.constant 0 : index
    %21 = vector.load %arg13[%c0_13, %c0_14] : memref<256x1xf32, #tpu.memory_space<vmem>>, vector<256x1xf32>
    %22 = arith.subf %21, %20 : vector<256x1xf32>
    %23 = math.exp %22 : vector<256x1xf32>
    %24 = vector.broadcast %20 : vector<256x1xf32> to vector<256x256xf32>
    %25 = arith.subf %16, %24 : vector<256x256xf32>
    %26 = math.exp %25 : vector<256x256xf32>
    %c0_15 = arith.constant 0 : index
    %c0_16 = arith.constant 0 : index
    %27 = vector.load %arg14[%c0_15, %c0_16] : memref<256x1xf32, #tpu.memory_space<vmem>>, vector<256x1xf32>
    %28 = arith.mulf %23, %27 : vector<256x1xf32>
    %cst_17 = arith.constant dense<0.000000e+00> : vector<256xf32>
    %29 = vector.multi_reduction <add>, %26, %cst_17 [1] : vector<256x256xf32> to vector<256xf32>
    %30 = vector.shape_cast %29 : vector<256xf32> to vector<256x1xf32>
    %31 = arith.addf %28, %30 : vector<256x1xf32>
    %c0_18 = arith.constant 0 : index
    %c0_19 = arith.constant 0 : index
    %32 = vector.load %arg14[%c0_18, %c0_19] : memref<256x1xf32, #tpu.memory_space<vmem>>, vector<256x1xf32>
    tpu.vector_store %arg14[%c0_18, %c0_19], %31 {strides = array<i32>} : memref<256x1xf32, #tpu.memory_space<vmem>>, vector<256x1xf32>,
    %c0_20 = arith.constant 0 : index
    %c0_21 = arith.constant 0 : index
    %33 = vector.load %arg15[%c0_20, %c0_21] : memref<256x128xf32, #tpu.memory_space<vmem>>, vector<256x128xf32>
    %34 = vector.broadcast %23 : vector<256x1xf32> to vector<256x128xf32>
    %35 = arith.mulf %34, %33 : vector<256x128xf32>
    %36 = arith.truncf %26 : vector<256x256xf32> to vector<256x256xbf16>
    %cst_22 = arith.constant dense<0.000000e+00> : vector<256x128xf32>
    %37 = tpu.matmul %36, %14, %cst_22 {dimension_numbers = #tpu.dot_dimension_numbers<[1], [0], [0], [1], [0, 0, 1, 1], [], []>} : vector<256x256xbf16>, vector<256x128xbf16>, vector<256x128xf32> -> vector<256x128xf32>
    %38 = arith.addf %35, %37 : vector<256x128xf32>
    %c0_23 = arith.constant 0 : index
    %c0_24 = arith.constant 0 : index
    %39 = vector.load %arg15[%c0_23, %c0_24] : memref<256x128xf32, #tpu.memory_space<vmem>>, vector<256x128xf32>
    tpu.vector_store %arg15[%c0_23, %c0_24], %38 {strides = array<i32>} : memref<256x128xf32, #tpu.memory_space<vmem>>, vector<256x128xf32>,
    %c0_25 = arith.constant 0 : index
    %c0_26 = arith.constant 0 : index
    %40 = vector.load %arg13[%c0_25, %c0_26] : memref<256x1xf32, #tpu.memory_space<vmem>>, vector<256x1xf32>
    tpu.vector_store %arg13[%c0_25, %c0_26], %20 {strides = array<i32>} : memref<256x1xf32, #tpu.memory_space<vmem>>, vector<256x1xf32>,
    %c0_i32_27 = arith.constant 0 : i32
    %41 = arith.cmpi eq, %arg2, %c0_i32_27 : i32
    %42 = arith.extui %41 : i1 to i32
    %c0_i32_28 = arith.constant 0 : i32
    %43 = arith.cmpi ne, %42, %c0_i32_28 : i32
    scf.if %43 {
      %c0_29 = arith.constant 0 : index
      %c0_30 = arith.constant 0 : index
      %44 = vector.load %arg15[%c0_29, %c0_30] : memref<256x128xf32, #tpu.memory_space<vmem>>, vector<256x128xf32>
      %c0_31 = arith.constant 0 : index
      %c0_32 = arith.constant 0 : index
      %45 = vector.load %arg14[%c0_31, %c0_32] : memref<256x1xf32, #tpu.memory_space<vmem>>, vector<256x1xf32>
      %46 = tpu.reciprocal %45 {approx = true} : vector<256x1xf32> -> vector<256x1xf32>
      %47 = vector.broadcast %46 : vector<256x1xf32> to vector<256x128xf32>
      %48 = arith.mulf %44, %47 : vector<256x128xf32>
      %c0_33 = arith.constant 0 : index
      %c0_34 = arith.constant 0 : index
      %c0_35 = arith.constant 0 : index
      %49 = vector.load %arg3[%c0_33, %c0_34, %c0_35] : memref<1x256x128xf32, #tpu.memory_space<vmem>>, vector<1x256x128xf32>
      %50 = vector.shape_cast %49 : vector<1x256x128xf32> to vector<256x128xf32>
      %51 = arith.truncf %48 : vector<256x128xf32> to vector<256x128xbf16>
      %c0_36 = arith.constant 0 : index
      %c0_37 = arith.constant 0 : index
      %52 = vector.load %arg7[%c0_36, %c0_37] : memref<128x128xbf16, #tpu.memory_space<vmem>>, vector<128x128xbf16>
      %cst_38 = arith.constant dense<0.000000e+00> : vector<256x128xf32>
      %53 = tpu.matmul %51, %52, %cst_38 {dimension_numbers = #tpu.dot_dimension_numbers<[1], [0], [0], [1], [0, 0, 1, 1], [], []>} : vector<256x128xbf16>, vector<128x128xbf16>, vector<256x128xf32> -> vector<256x128xf32>
      %54 = arith.addf %50, %53 : vector<256x128xf32>
      %c0_39 = arith.constant 0 : index
      %c0_40 = arith.constant 0 : index
      %55 = vector.load %arg10[%c0_39, %c0_40] : memref<1x128xf32, #tpu.memory_space<vmem>>, vector<1x128xf32>
      %56 = vector.broadcast %55 : vector<1x128xf32> to vector<256x128xf32>
      %57 = arith.addf %54, %56 : vector<256x128xf32>
      %c0_41 = arith.constant 0 : index
      %c0_42 = arith.constant 0 : index
      %c0_43 = arith.constant 0 : index
      %58 = vector.load %arg11[%c0_41, %c0_42, %c0_43] : memref<1x256x128xf32, #tpu.memory_space<vmem>>, vector<1x256x128xf32>
      %59 = vector.shape_cast %58 : vector<1x256x128xf32> to vector<256x128xf32>
      %60 = vector.shape_cast %57 : vector<256x128xf32> to vector<1x256x128xf32>
      tpu.vector_store %arg11[%c0_41, %c0_42, %c0_43], %60 {strides = array<i32>} : memref<1x256x128xf32, #tpu.memory_space<vmem>>, vector<1x256x128xf32>,
    } else {
    }
    return
  }
  func.func @transform_0(%arg0: i32, %arg1: i32, %arg2: i32) -> (i32, i32, i32) {
    %c0_i32 = arith.constant 0 : i32
    %c0_i32_0 = arith.constant 0 : i32
    return %arg0, %arg1, %c0_i32 : i32, i32, i32
  }
  func.func @transform_1(%arg0: i32, %arg1: i32, %arg2: i32) -> (i32, i32, i32) {
    %c0_i32 = arith.constant 0 : i32
    %c0_i32_0 = arith.constant 0 : i32
    return %arg0, %arg2, %c0_i32 : i32, i32, i32
  }
  func.func @transform_2(%arg0: i32, %arg1: i32, %arg2: i32) -> (i32, i32) {
    %c0_i32 = arith.constant 0 : i32
    %c0_i32_0 = arith.constant 0 : i32
    %c0_i32_1 = arith.constant 0 : i32
    return %c0_i32, %c0_i32_0 : i32, i32
  }
  func.func @transform_3(%arg0: i32, %arg1: i32, %arg2: i32) -> (i32, i32) {
    %c0_i32 = arith.constant 0 : i32
    %c0_i32_0 = arith.constant 0 : i32
    %c0_i32_1 = arith.constant 0 : i32
    return %c0_i32, %c0_i32_0 : i32, i32
  }
  func.func @transform_4(%arg0: i32, %arg1: i32, %arg2: i32) -> (i32, i32) {
    %c0_i32 = arith.constant 0 : i32
    %c0_i32_0 = arith.constant 0 : i32
    %c0_i32_1 = arith.constant 0 : i32
    return %c0_i32, %c0_i32_0 : i32, i32
  }
  func.func @transform_5(%arg0: i32, %arg1: i32, %arg2: i32) -> (i32, i32) {
    %c0_i32 = arith.constant 0 : i32
    %c0_i32_0 = arith.constant 0 : i32
    %c0_i32_1 = arith.constant 0 : i32
    return %c0_i32, %c0_i32_0 : i32, i32
  }
  func.func @transform_6(%arg0: i32, %arg1: i32, %arg2: i32) -> (i32, i32) {
    %c0_i32 = arith.constant 0 : i32
    %c0_i32_0 = arith.constant 0 : i32
    %c0_i32_1 = arith.constant 0 : i32
    return %c0_i32, %c0_i32_0 : i32, i32
  }
  func.func @transform_7(%arg0: i32, %arg1: i32, %arg2: i32) -> (i32, i32) {
    %c0_i32 = arith.constant 0 : i32
    %c0_i32_0 = arith.constant 0 : i32
    %c0_i32_1 = arith.constant 0 : i32
    return %c0_i32, %c0_i32_0 : i32, i32
  }
  func.func @transform_8(%arg0: i32, %arg1: i32, %arg2: i32) -> (i32, i32, i32) {
    %c0_i32 = arith.constant 0 : i32
    %c0_i32_0 = arith.constant 0 : i32
    return %arg0, %arg1, %c0_i32 : i32, i32, i32
  }
}

</mosaic_0001>

<llo_original>
// kernel: tpu_custom_call.1
$region0: #{tpu_custom_call.1}
  #allocation0 [shape = 'u32[]', space=smem, size = 0x4, offset = 0x4, fixed_abs, tag = 'smem constant byte address 0x4 - core index']
  #allocation1 [shape = 'u32[144,128]{1,0:T(1,128)}', space=vmem, size = 0x12000, scoped, tag = 'internal scratch']
  #allocation2 [shape = 'bf16[256,128]{1,0:T(8,128)(2,1)}', space=vmem, size = 0x10000, scoped, tag = 'scratch operand']
  #allocation3 [shape = 'f32[256,1]{1,0:T(8,128)}', space=vmem, size = 0x20000, scoped, tag = 'scratch operand']
  #allocation4 [shape = 'f32[256,1]{1,0:T(8,128)}', space=vmem, size = 0x20000, scoped, tag = 'scratch operand']
  #allocation5 [shape = 'f32[256,128]{1,0:T(8,128)}', space=vmem, size = 0x20000, scoped, tag = 'scratch operand']
  %s0 = inlined_call_operand.hbm [shape: f32[2,256,128], index: 0, kind: input, shape index: {}]
  %s1 = inlined_call_operand.hbm [shape: f32[2,256,128], index: 1, kind: input, shape index: {}]
  %s2 = inlined_call_operand.hbm [shape: bf16[128,128], index: 2, kind: input, shape index: {}]
  %s3 = inlined_call_operand.hbm [shape: bf16[128,256], index: 3, kind: input, shape index: {}]
  %s4 = inlined_call_operand.hbm [shape: bf16[128,128], index: 4, kind: input, shape index: {}]
  %s5 = inlined_call_operand.vmem [shape: f32[1,128], index: 5, kind: input, shape index: {}]
  %s6 = inlined_call_operand.vmem [shape: f32[1,256], index: 6, kind: input, shape index: {}]
  %s7 = inlined_call_operand.vmem [shape: f32[1,128], index: 7, kind: input, shape index: {}]
  %s8 = inlined_call_operand.hbm [shape: f32[2,256,128], index: 8, kind: output, shape index: {}]
  %s9 = sld [smem:[#allocation0]]
  $region93: #{tpu_custom_call.1} parent=0
    _
  %s11 = ssub.s32 1, %s9
  %s12 = scalar_select 0, %s11, %s9
  $region1: #{tpu_custom_call.1} parent=0
    #allocation6 [shape = 'u8[262144]{0}', space=vmem, size = 0x40000, scoped, tag = 'input window, operand 0']
    #allocation7 [shape = 's32[2]{0}', space=sflag, size = 0x8, scoped, tag = 'scoped memory for tpu_custom_call.1']
    #allocation8 [shape = 's32[2]{0}', space=sflag, size = 0x8, scoped, tag = 'scoped memory for tpu_custom_call.1']
    #allocation9 [shape = 'u8[262144]{0}', space=vmem, size = 0x40000, scoped, tag = 'input window, operand 1']
    #allocation10 [shape = 's32[2]{0}', space=sflag, size = 0x8, scoped, tag = 'scoped memory for tpu_custom_call.1']
    #allocation11 [shape = 'u8[32768]{0}', space=vmem, size = 0x8000, scoped, tag = 'input window, operand 2, single buffered']
    #allocation12 [shape = 'u8[65536]{0}', space=vmem, size = 0x10000, scoped, tag = 'input window, operand 3, single buffered']
    #allocation13 [shape = 's32[1]{0}', space=sflag, size = 0x4, scoped, tag = 'scoped memory for tpu_custom_call.1']
    #allocation14 [shape = 'u8[32768]{0}', space=vmem, size = 0x8000, scoped, tag = 'input window, operand 4, single buffered']
    #allocation15 [shape = 'u8[262144]{0}', space=vmem, size = 0x40000, scoped, tag = 'output window, operand 0']
    %13 = vsyncpa [#allocation7], 0
    %s14 = scalar_lea.sflag [#allocation7], 1
    %15 = vsyncpa %s14, 0
    %16 = vsyncpa [#allocation10], 0
    %s17 = scalar_lea.sflag [#allocation10], 1
    %18 = vsyncpa %s17, 0
    %19 = vsyncpa [#allocation13], 0
    %20 = vsyncpa [#allocation8], 0
    %s21 = scalar_lea.sflag [#allocation8], 1
    %22 = vsyncpa %s21, 0
    loop: start=0, step=1, limit=4
    $region2: #{tpu_custom_call.1} parent=1 // loop_pre_header
      _
    $region3: #{tpu_custom_call.1} parent=1 // loop_header
      %s24 = sphi 0, %s28
      %p25 = scmp.ge.s32.totalorder %s24, 4
      %s31 = sphi 0, %s50
      %s32 = sphi 0, %s46
      %s33 = sphi 0, %s42
      %s34 = sphi 0, %s31
      %s35 = sphi 0, %s32
      %s36 = sphi 0, %s33
      %s37 = sphi 0, %s34
      %s38 = sphi 0, %s35
      %s39 = sphi 0, %s36
      %s55 = sphi 0, %s57
      %s58 = sphi 0, %s55
      %s59 = sphi 0, %s58
      %s75 = sphi 0, %s59
      %s83 = sphi 0, %s85
      %s86 = sphi 0, %s83
      %s87 = sphi 0, %s86
      %s103 = sphi 0, %s87
      %s107 = sphi 0, %s107
      %s109 = sphi 0, %s107
      %s110 = sphi 0, %s109
      %s124 = sphi 0, %s110
      %s128 = sphi 0, %s128
      %s130 = sphi 0, %s128
      %s131 = sphi 0, %s130
      %s145 = sphi 0, %s131
      %s149 = sphi 0, %s149
      %s151 = sphi 0, %s149
      %s152 = sphi 0, %s151
      %s166 = sphi 0, %s152
      %s170 = sphi 0, %s170
      %s172 = sphi 0, %s170
      %s173 = sphi 0, %s172
      %s187 = sphi 0, %s173
      %s191 = sphi 0, %s191
      %s193 = sphi 0, %s191
      %s194 = sphi 0, %s193
      %s208 = sphi 0, %s194
      %s212 = sphi 0, %s212
      %s214 = sphi 0, %s212
      %s215 = sphi 0, %s214
      %s229 = sphi 0, %s215
      %s237 = sphi 0, %s239
      %s240 = sphi 0, %s237
      %s241 = sphi 0, %s240
      %s257 = sphi 0, %s241
    $region4: #{tpu_custom_call.1} parent=1 // loop_header_branch
      %27 = sbr.rel (%p25) target = $region8
    $region5: #{tpu_custom_call.1} parent=1 // loop_body
      %s29 = ssub.s32 %s24, 1
      %s30 = ssub.s32 %s24, 2
      %s40 = sadd.s32 1, %s33
      %p41 = scmp.ge.s32.totalorder %s40, 1
      %s42 = scalar_select %p41, 0, %s40
      %s43 = sadd.s32 1, %s32
      %s44 = scalar_select %p41, %s43, %s32
      %p45 = scmp.ge.s32.totalorder %s44, 1
      %s46 = scalar_select %p45, 0, %s44
      %s47 = sadd.s32 1, %s31
      %s48 = scalar_select %p45, %s47, %s31
      %p49 = scmp.ge.s32.totalorder %s48, 2
      %s50 = scalar_select %p49, 0, %s48
      %s51 = ssub.s32 %s31, %s50
      %s52 = ssub.s32 %s32, %s46
      %s53 = sor.u32 %s51, %s52
      %p54 = scmp.eq.s32.totalorder %s53, 0
      %s56 = sadd.s32 %s55, 1
      %s57 = scalar_select %p54, %s55, %s56
      %p60 = pneg %p54
      %p61 = scmp.eq.s32.totalorder %s24, 1
      %p62 = por %p60, %p61
      %p63 = scmp.ne.s32.totalorder %s55, %s58
      %p64 = scmp.eq.s32.totalorder %s24, 0
      %p65 = por %p63, %p64
      %p66 = scmp.ne.s32.totalorder %s55, %s58
      %p67 = scmp.eq.s32.totalorder %s29, 1
      %p68 = por %p66, %p67
      %p69 = scmp.ne.s32.totalorder %s58, %s59
      %p70 = scmp.eq.s32.totalorder %s29, 0
      %p71 = por %p69, %p70
      %p72 = scmp.ne.s32.totalorder %s58, %s59
      %p73 = scmp.eq.s32.totalorder %s30, 1
      %p74 = por %p72, %p73
      %p76 = scmp.ne.s32.totalorder %s59, %s75
      %p77 = scmp.eq.s32.totalorder %s30, 0
      %p78 = por %p76, %p77
      %s79 = ssub.s32 %s31, %s50
      %s80 = ssub.s32 %s33, %s42
      %s81 = sor.u32 %s79, %s80
      %p82 = scmp.eq.s32.totalorder %s81, 0
      %s84 = sadd.s32 %s83, 1
      %s85 = scalar_select %p82, %s83, %s84
      %p88 = pneg %p82
      %p89 = scmp.eq.s32.totalorder %s24, 1
      %p90 = por %p88, %p89
      %p91 = scmp.ne.s32.totalorder %s83, %s86
      %p92 = scmp.eq.s32.totalorder %s24, 0
      %p93 = por %p91, %p92
      %p94 = scmp.ne.s32.totalorder %s83, %s86
      %p95 = scmp.eq.s32.totalorder %s29, 1
      %p96 = por %p94, %p95
      %p97 = scmp.ne.s32.totalorder %s86, %s87
      %p98 = scmp.eq.s32.totalorder %s29, 0
      %p99 = por %p97, %p98
      %p100 = scmp.ne.s32.totalorder %s86, %s87
      %p101 = scmp.eq.s32.totalorder %s30, 1
      %p102 = por %p100, %p101
      %p104 = scmp.ne.s32.totalorder %s87, %s103
      %p105 = scmp.eq.s32.totalorder %s30, 0
      %p106 = por %p104, %p105
      %s108 = sadd.s32 %s107, 1
      %p111 = scmp.eq.s32.totalorder %s24, 1
      %p112 = scmp.ne.s32.totalorder %s107, %s109
      %p113 = scmp.eq.s32.totalorder %s24, 0
      %p114 = por %p112, %p113
      %p115 = scmp.ne.s32.totalorder %s107, %s109
      %p116 = scmp.eq.s32.totalorder %s29, 1
      %p117 = por %p115, %p116
      %p118 = scmp.ne.s32.totalorder %s109, %s110
      %p119 = scmp.eq.s32.totalorder %s29, 0
      %p120 = por %p118, %p119
      %p121 = scmp.ne.s32.totalorder %s109, %s110
      %p122 = scmp.eq.s32.totalorder %s30, 1
      %p123 = por %p121, %p122
      %p125 = scmp.ne.s32.totalorder %s110, %s124
      %p126 = scmp.eq.s32.totalorder %s30, 0
      %p127 = por %p125, %p126
      %s129 = sadd.s32 %s128, 1
      %p132 = scmp.eq.s32.totalorder %s24, 1
      %p133 = scmp.ne.s32.totalorder %s128, %s130
      %p134 = scmp.eq.s32.totalorder %s24, 0
      %p135 = por %p133, %p134
      %p136 = scmp.ne.s32.totalorder %s128, %s130
      %p137 = scmp.eq.s32.totalorder %s29, 1
      %p138 = por %p136, %p137
      %p139 = scmp.ne.s32.totalorder %s130, %s131
      %p140 = scmp.eq.s32.totalorder %s29, 0
      %p141 = por %p139, %p140
      %p142 = scmp.ne.s32.totalorder %s130, %s131
      %p143 = scmp.eq.s32.totalorder %s30, 1
      %p144 = por %p142, %p143
      %p146 = scmp.ne.s32.totalorder %s131, %s145
      %p147 = scmp.eq.s32.totalorder %s30, 0
      %p148 = por %p146, %p147
      %s150 = sadd.s32 %s149, 1
      %p153 = scmp.eq.s32.totalorder %s24, 1
      %p154 = scmp.ne.s32.totalorder %s149, %s151
      %p155 = scmp.eq.s32.totalorder %s24, 0
      %p156 = por %p154, %p155
      %p157 = scmp.ne.s32.totalorder %s149, %s151
      %p158 = scmp.eq.s32.totalorder %s29, 1
      %p159 = por %p157, %p158
      %p160 = scmp.ne.s32.totalorder %s151, %s152
      %p161 = scmp.eq.s32.totalorder %s29, 0
      %p162 = por %p160, %p161
      %p163 = scmp.ne.s32.totalorder %s151, %s152
      %p164 = scmp.eq.s32.totalorder %s30, 1
      %p165 = por %p163, %p164
      %p167 = scmp.ne.s32.totalorder %s152, %s166
      %p168 = scmp.eq.s32.totalorder %s30, 0
      %p169 = por %p167, %p168
      %s171 = sadd.s32 %s170, 1
      %p174 = scmp.eq.s32.totalorder %s24, 1
      %p175 = scmp.ne.s32.totalorder %s170, %s172
      %p176 = scmp.eq.s32.totalorder %s24, 0
      %p177 = por %p175, %p176
      %p178 = scmp.ne.s32.totalorder %s170, %s172
      %p179 = scmp.eq.s32.totalorder %s29, 1
      %p180 = por %p178, %p179
      %p181 = scmp.ne.s32.totalorder %s172, %s173
      %p182 = scmp.eq.s32.totalorder %s29, 0
      %p183 = por %p181, %p182
      %p184 = scmp.ne.s32.totalorder %s172, %s173
      %p185 = scmp.eq.s32.totalorder %s30, 1
      %p186 = por %p184, %p185
      %p188 = scmp.ne.s32.totalorder %s173, %s187
      %p189 = scmp.eq.s32.totalorder %s30, 0
      %p190 = por %p188, %p189
      %s192 = sadd.s32 %s191, 1
      %p195 = scmp.eq.s32.totalorder %s24, 1
      %p196 = scmp.ne.s32.totalorder %s191, %s193
      %p197 = scmp.eq.s32.totalorder %s24, 0
      %p198 = por %p196, %p197
      %p199 = scmp.ne.s32.totalorder %s191, %s193
      %p200 = scmp.eq.s32.totalorder %s29, 1
      %p201 = por %p199, %p200
      %p202 = scmp.ne.s32.totalorder %s193, %s194
      %p203 = scmp.eq.s32.totalorder %s29, 0
      %p204 = por %p202, %p203
      %p205 = scmp.ne.s32.totalorder %s193, %s194
      %p206 = scmp.eq.s32.totalorder %s30, 1
      %p207 = por %p205, %p206
      %p209 = scmp.ne.s32.totalorder %s194, %s208
      %p210 = scmp.eq.s32.totalorder %s30, 0
      %p211 = por %p209, %p210
      %s213 = sadd.s32 %s212, 1
      %p216 = scmp.eq.s32.totalorder %s24, 1
      %p217 = scmp.ne.s32.totalorder %s212, %s214
      %p218 = scmp.eq.s32.totalorder %s24, 0
      %p219 = por %p217, %p218
      %p220 = scmp.ne.s32.totalorder %s212, %s214
      %p221 = scmp.eq.s32.totalorder %s29, 1
      %p222 = por %p220, %p221
      %p223 = scmp.ne.s32.totalorder %s214, %s215
      %p224 = scmp.eq.s32.totalorder %s29, 0
      %p225 = por %p223, %p224
      %p226 = scmp.ne.s32.totalorder %s214, %s215
      %p227 = scmp.eq.s32.totalorder %s30, 1
      %p228 = por %p226, %p227
      %p230 = scmp.ne.s32.totalorder %s215, %s229
      %p231 = scmp.eq.s32.totalorder %s30, 0
      %p232 = por %p230, %p231
      %s233 = ssub.s32 %s31, %s50
      %s234 = ssub.s32 %s32, %s46
      %s235 = sor.u32 %s233, %s234
      %p236 = scmp.eq.s32.totalorder %s235, 0
      %s238 = sadd.s32 %s237, 1
      %s239 = scalar_select %p236, %s237, %s238
      %p242 = pneg %p236
      %p243 = scmp.eq.s32.totalorder %s24, 1
      %p244 = por %p242, %p243
      %p245 = scmp.ne.s32.totalorder %s237, %s240
      %p246 = scmp.eq.s32.totalorder %s24, 0
      %p247 = por %p245, %p246
      %p248 = scmp.ne.s32.totalorder %s237, %s240
      %p249 = scmp.eq.s32.totalorder %s29, 1
      %p250 = por %p248, %p249
      %p251 = scmp.ne.s32.totalorder %s240, %s241
      %p252 = scmp.eq.s32.totalorder %s29, 0
      %p253 = por %p251, %p252
      %p254 = scmp.ne.s32.totalorder %s240, %s241
      %p255 = scmp.eq.s32.totalorder %s30, 1
      %p256 = por %p254, %p255
      %p258 = scmp.ne.s32.totalorder %s241, %s257
      %p259 = scmp.eq.s32.totalorder %s30, 0
      %p260 = por %p258, %p259
      %p261 = scmp.le.s32.totalorder 1, %s24
      %p262 = scmp.lt.s32.totalorder %s24, 3
      %p263 = pnand %p261, %p262
      %p264 = pneg %p263
      // Predicated region
      $region9: #{tpu_custom_call.1} parent=5 // pred_check
        _
      $region10: #{tpu_custom_call.1} parent=5 // pred_check_branch
        %266 = sbr.rel (%p263) target = $region12
      $region11: #{tpu_custom_call.1} parent=5 // pred_region
        %s267 = ssub.s32 %s24, 1
        // Predicated region
        $region13: #{tpu_custom_call.1} parent=11 // pred_check
          %p268 = pneg %p120
        $region14: #{tpu_custom_call.1} parent=11 // pred_check_branch
          %270 = sbr.rel (%p268) target = $region16
        $region15: #{tpu_custom_call.1} parent=11 // pred_region
          %s272 = ssub.s32 1024, 1024
          %273 = vsyncadd [#allocation10], %s272
          %s274 = sshll.u32 [#allocation11], 4
          %s275 = int_to_ptr.vmem [resolvable:$true] %s274
          %280 = dma.hbm_to_vmem [thread:$0]  %s2, 1024, %s275, [#allocation10], 64, 64, 4
        $region16: #{tpu_custom_call.1} parent=11 // pred_fallthru
          _
        // Predicated region
        $region17: #{tpu_custom_call.1} parent=11 // pred_check
          %p281 = pneg %p141
        $region18: #{tpu_custom_call.1} parent=11 // pred_check_branch
          %283 = sbr.rel (%p281) target = $region20
        $region19: #{tpu_custom_call.1} parent=11 // pred_region
          %s285 = ssub.s32 2048, 2048
          %286 = vsyncadd [#allocation13], %s285
          %s287 = sshll.u32 [#allocation12], 4
          %s288 = int_to_ptr.vmem [resolvable:$true] %s287
          %293 = dma.hbm_to_vmem [thread:$0]  %s3, 2048, %s288, [#allocation13], 128, 128, 8
        $region20: #{tpu_custom_call.1} parent=11 // pred_fallthru
          _
        // Predicated region
        $region21: #{tpu_custom_call.1} parent=11 // pred_check
          %p294 = pneg %p162
        $region22: #{tpu_custom_call.1} parent=11 // pred_check_branch
          %296 = sbr.rel (%p294) target = $region24
        $region23: #{tpu_custom_call.1} parent=11 // pred_region
          %s298 = ssub.s32 1024, 1024
          %299 = vsyncadd [#allocation13], %s298
          %s300 = sshll.u32 [#allocation14], 4
          %s301 = int_to_ptr.vmem [resolvable:$true] %s300
          %306 = dma.hbm_to_vmem [thread:$0]  %s4, 1024, %s301, [#allocation13], 64, 64, 4
        $region24: #{tpu_custom_call.1} parent=11 // pred_fallthru
          _
        // Predicated region
        $region25: #{tpu_custom_call.1} parent=11 // pred_check
          %p307 = pneg %p183
        $region26: #{tpu_custom_call.1} parent=11 // pred_check_branch
          %309 = sbr.rel (%p307) target = $region28
        $region27: #{tpu_custom_call.1} parent=11 // pred_region
          _
        $region28: #{tpu_custom_call.1} parent=11 // pred_fallthru
          _
        // Predicated region
        $region29: #{tpu_custom_call.1} parent=11 // pred_check
          %p310 = pneg %p204
        $region30: #{tpu_custom_call.1} parent=11 // pred_check_branch
          %312 = sbr.rel (%p310) target = $region32
        $region31: #{tpu_custom_call.1} parent=11 // pred_region
          _
        $region32: #{tpu_custom_call.1} parent=11 // pred_fallthru
          _
        // Predicated region
        $region33: #{tpu_custom_call.1} parent=11 // pred_check
          %p313 = pneg %p225
        $region34: #{tpu_custom_call.1} parent=11 // pred_check_branch
          %315 = sbr.rel (%p313) target = $region36
        $region35: #{tpu_custom_call.1} parent=11 // pred_region
          _
        $region36: #{tpu_custom_call.1} parent=11 // pred_fallthru
          _
      $region12: #{tpu_custom_call.1} parent=5 // pred_fallthru
        _
      %p316 = scmp.lt.s32.totalorder %s24, 2
      // Predicated region
      $region37: #{tpu_custom_call.1} parent=5 // pred_check
        %p317 = pneg %p316
      $region38: #{tpu_custom_call.1} parent=5 // pred_check_branch
        %319 = sbr.rel (%p317) target = $region40
      $region39: #{tpu_custom_call.1} parent=5 // pred_region
        // Predicated region
        $region41: #{tpu_custom_call.1} parent=39 // pred_check
          %p320 = pneg %p65
        $region42: #{tpu_custom_call.1} parent=39 // pred_check_branch
          %322 = sbr.rel (%p320) target = $region44
        $region43: #{tpu_custom_call.1} parent=39 // pred_region
          %s323 = sand.u32 %s55, 1
          %s324 = scalar_lea.sflag [#allocation7], %s323
          %s325 = sand.u32 %s55, 1
          %s326 = smul.addr %s325, 256
          %s327 = scalar_lea.vmem [#allocation6], %s326
          %s328 = smul.u32 32, %s32
          %s330 = ssub.s32 4096, 4096
          %331 = vsyncadd %s324, %s330
          %s332 = smul.addr %s31, 32
          %s333 = sadd.s32 %s328, %s332
          %s334 = smul.addr %s333, 128
          %s335 = scalar_lea.hbm %s0, %s334
          %s336 = sshll.u32 %s327, 4
          %s337 = int_to_ptr.vmem [resolvable:$true] %s336
          %342 = dma.hbm_to_vmem [thread:$0]  %s335, 4096, %s337, %s324, 128, 128, 8
        $region44: #{tpu_custom_call.1} parent=39 // pred_fallthru
          _
        // Predicated region
        $region45: #{tpu_custom_call.1} parent=39 // pred_check
          %p343 = pneg %p93
        $region46: #{tpu_custom_call.1} parent=39 // pred_check_branch
          %345 = sbr.rel (%p343) target = $region48
        $region47: #{tpu_custom_call.1} parent=39 // pred_region
          %s346 = sand.u32 %s24, 1
          %s347 = scalar_lea.sflag [#allocation10], %s346
          %s348 = sand.u32 %s83, 1
          %s349 = smul.addr %s348, 256
          %s350 = scalar_lea.vmem [#allocation9], %s349
          %s351 = smul.u32 32, %s33
          %s353 = ssub.s32 4096, 4096
          %354 = vsyncadd %s347, %s353
          %s355 = smul.addr %s31, 32
          %s356 = sadd.s32 %s351, %s355
          %s357 = smul.addr %s356, 128
          %s358 = scalar_lea.hbm %s1, %s357
          %s359 = sshll.u32 %s350, 4
          %s360 = int_to_ptr.vmem [resolvable:$true] %s359
          %365 = dma.hbm_to_vmem [thread:$0]  %s358, 4096, %s360, %s347, 128, 128, 8
        $region48: #{tpu_custom_call.1} parent=39 // pred_fallthru
          _
      $region40: #{tpu_custom_call.1} parent=5 // pred_fallthru
        _
      %p366 = scmp.le.s32.totalorder 1, %s24
      %p367 = scmp.lt.s32.totalorder %s24, 3
      %p368 = pnand %p366, %p367
      %p369 = pneg %p368
      // Predicated region
      $region49: #{tpu_custom_call.1} parent=5 // pred_check
        _
      $region50: #{tpu_custom_call.1} parent=5 // pred_check_branch
        %371 = sbr.rel (%p368) target = $region52
      $region51: #{tpu_custom_call.1} parent=5 // pred_region
        %s372 = ssub.s32 %s24, 1
        %s373 = sand.u32 %s58, 1
        %s374 = scalar_lea.sflag [#allocation7], %s373
        %s375 = sand.u32 %s58, 1
        %s376 = smul.addr %s375, 256
        %s377 = scalar_lea.vmem [#allocation6], %s376
        // Predicated region
        $region53: #{tpu_custom_call.1} parent=51 // pred_check
          %p378 = pneg %p71
        $region54: #{tpu_custom_call.1} parent=51 // pred_check_branch
          %380 = sbr.rel (%p378) target = $region56
        $region55: #{tpu_custom_call.1} parent=51 // pred_region
          %381 = dma.done %s374, 4096
        $region56: #{tpu_custom_call.1} parent=51 // pred_fallthru
          _
        %s382 = sand.u32 %s29, 1
        %s383 = scalar_lea.sflag [#allocation10], %s382
        %s384 = sand.u32 %s86, 1
        %s385 = smul.addr %s384, 256
        %s386 = scalar_lea.vmem [#allocation9], %s385
        // Predicated region
        $region57: #{tpu_custom_call.1} parent=51 // pred_check
          %p387 = pneg %p99
        $region58: #{tpu_custom_call.1} parent=51 // pred_check_branch
          %389 = sbr.rel (%p387) target = $region60
        $region59: #{tpu_custom_call.1} parent=51 // pred_region
          %390 = dma.done %s383, 4096
        $region60: #{tpu_custom_call.1} parent=51 // pred_fallthru
          _
        // Predicated region
        $region61: #{tpu_custom_call.1} parent=51 // pred_check
          %p391 = pneg %p120
        $region62: #{tpu_custom_call.1} parent=51 // pred_check_branch
          %393 = sbr.rel (%p391) target = $region64
        $region63: #{tpu_custom_call.1} parent=51 // pred_region
          %394 = dma.done [#allocation10], 1024
        $region64: #{tpu_custom_call.1} parent=51 // pred_fallthru
          _
        // Predicated region
        $region65: #{tpu_custom_call.1} parent=51 // pred_check
          %p395 = pneg %p141
        $region66: #{tpu_custom_call.1} parent=51 // pred_check_branch
          %397 = sbr.rel (%p395) target = $region68
        $region67: #{tpu_custom_call.1} parent=51 // pred_region
          %398 = dma.done [#allocation13], 2048
        $region68: #{tpu_custom_call.1} parent=51 // pred_fallthru
          _
        // Predicated region
        $region69: #{tpu_custom_call.1} parent=51 // pred_check
          %p399 = pneg %p162
        $region70: #{tpu_custom_call.1} parent=51 // pred_check_branch
          %401 = sbr.rel (%p399) target = $region72
        $region71: #{tpu_custom_call.1} parent=51 // pred_region
          %402 = dma.done [#allocation13], 1024
        $region72: #{tpu_custom_call.1} parent=51 // pred_fallthru
          _
        %s403 = sand.u32 %s58, 1
        %s404 = scalar_lea.sflag [#allocation7], %s403
        %s405 = sand.u32 %s58, 1
        %s406 = smul.addr %s405, 256
        %s407 = scalar_lea.vmem [#allocation6], %s406
        %p408 = pneg %p71
        %p409 = pneg %p68
        %s410 = sand.u32 %s29, 1
        %s411 = scalar_lea.sflag [#allocation10], %s410
        %s412 = sand.u32 %s86, 1
        %s413 = smul.addr %s412, 256
        %s414 = scalar_lea.vmem [#allocation9], %s413
        %p415 = pneg %p99
        %p416 = pneg %p96
        %p417 = pneg %p120
        %p418 = pneg %p117
        %p419 = pneg %p141
        %p420 = pneg %p138
        %p421 = pneg %p162
        %p422 = pneg %p159
        %p423 = pneg %p183
        %p424 = pneg %p180
        %p425 = pneg %p204
        %p426 = pneg %p201
        %p427 = pneg %p225
        %p428 = pneg %p222
        %p429 = pneg %p253
        %p430 = pneg %p250
        %s431 = sand.u32 %s240, 1
        %s432 = scalar_lea.sflag [#allocation8], %s431
        %s433 = sand.u32 %s240, 1
        %s434 = smul.addr %s433, 256
        %s435 = scalar_lea.vmem [#allocation15], %s434
        %s436 = smul.u32 32, %s35
        %s437 = smul.u32 32, %s36
        %s438 = smul.u32 32, %s35
        %p440 = scmp.eq.s32.totalorder %s36, 0
        // Predicated region
        $region73: #{tpu_custom_call.1} parent=51 // pred_check
          %p441 = pneg %p440
        $region74: #{tpu_custom_call.1} parent=51 // pred_check_branch
          %443 = sbr.rel (%p441) target = $region76
        $region75: #{tpu_custom_call.1} parent=51 // pred_region
          %v444 = vld [vmem:[%s377] sm:$0xff]
          %v445 = vld [vmem:[%s377 + $0x8] sm:$0xff]
          %v446 = vld [vmem:[%s377 + $0x10] sm:$0xff]
          %v447 = vld [vmem:[%s377 + $0x18] sm:$0xff]
          %v448 = vld [vmem:[%s377 + $0x20] sm:$0xff]
          %v449 = vld [vmem:[%s377 + $0x28] sm:$0xff]
          %v450 = vld [vmem:[%s377 + $0x30] sm:$0xff]
          %v451 = vld [vmem:[%s377 + $0x38] sm:$0xff]
          %v452 = vld [vmem:[%s377 + $0x40] sm:$0xff]
          %v453 = vld [vmem:[%s377 + $0x48] sm:$0xff]
          %v454 = vld [vmem:[%s377 + $0x50] sm:$0xff]
          %v455 = vld [vmem:[%s377 + $0x58] sm:$0xff]
          %v456 = vld [vmem:[%s377 + $0x60] sm:$0xff]
          %v457 = vld [vmem:[%s377 + $0x68] sm:$0xff]
          %v458 = vld [vmem:[%s377 + $0x70] sm:$0xff]
          %v459 = vld [vmem:[%s377 + $0x78] sm:$0xff]
          %v460 = vld [vmem:[%s377 + $0x80] sm:$0xff]
          %v461 = vld [vmem:[%s377 + $0x88] sm:$0xff]
          %v462 = vld [vmem:[%s377 + $0x90] sm:$0xff]
          %v463 = vld [vmem:[%s377 + $0x98] sm:$0xff]
          %v464 = vld [vmem:[%s377 + $0xa0] sm:$0xff]
          %v465 = vld [vmem:[%s377 + $0xa8] sm:$0xff]
          %v466 = vld [vmem:[%s377 + $0xb0] sm:$0xff]
          %v467 = vld [vmem:[%s377 + $0xb8] sm:$0xff]
          %v468 = vld [vmem:[%s377 + $0xc0] sm:$0xff]
          %v469 = vld [vmem:[%s377 + $0xc8] sm:$0xff]
          %v470 = vld [vmem:[%s377 + $0xd0] sm:$0xff]
          %v471 = vld [vmem:[%s377 + $0xd8] sm:$0xff]
          %v472 = vld [vmem:[%s377 + $0xe0] sm:$0xff]
          %v473 = vld [vmem:[%s377 + $0xe8] sm:$0xff]
          %v474 = vld [vmem:[%s377 + $0xf0] sm:$0xff]
          %v475 = vld [vmem:[%s377 + $0xf8] sm:$0xff]
          %v476 = vpack.c.bf16 %v445, %v444
          %v477 = vpack.c.bf16 %v447, %v446
          %v478 = vpack.c.bf16 %v449, %v448
          %v479 = vpack.c.bf16 %v451, %v450
          %v480 = vpack.c.bf16 %v453, %v452
          %v481 = vpack.c.bf16 %v455, %v454
          %v482 = vpack.c.bf16 %v457, %v456
          %v483 = vpack.c.bf16 %v459, %v458
          %v484 = vpack.c.bf16 %v461, %v460
          %v485 = vpack.c.bf16 %v463, %v462
          %v486 = vpack.c.bf16 %v465, %v464
          %v487 = vpack.c.bf16 %v467, %v466
          %v488 = vpack.c.bf16 %v469, %v468
          %v489 = vpack.c.bf16 %v471, %v470
          %v490 = vpack.c.bf16 %v473, %v472
          %v491 = vpack.c.bf16 %v475, %v474
          %v492 = vld [vmem:[#allocation11] sm:$0xf]
          %v493 = vld [vmem:[#allocation11 + $0x4] sm:$0xf]
          %v494 = vld [vmem:[#allocation11 + $0x8] sm:$0xf]
          %v495 = vld [vmem:[#allocation11 + $0xc] sm:$0xf]
          %v496 = vld [vmem:[#allocation11 + $0x10] sm:$0xf]
          %v497 = vld [vmem:[#allocation11 + $0x14] sm:$0xf]
          %v498 = vld [vmem:[#allocation11 + $0x18] sm:$0xf]
          %v499 = vld [vmem:[#allocation11 + $0x1c] sm:$0xf]
          %v500 = vld [vmem:[#allocation11 + $0x20] sm:$0xf]
          %v501 = vld [vmem:[#allocation11 + $0x24] sm:$0xf]
          %v502 = vld [vmem:[#allocation11 + $0x28] sm:$0xf]
          %v503 = vld [vmem:[#allocation11 + $0x2c] sm:$0xf]
          %v504 = vld [vmem:[#allocation11 + $0x30] sm:$0xf]
          %v505 = vld [vmem:[#allocation11 + $0x34] sm:$0xf]
          %v506 = vld [vmem:[#allocation11 + $0x38] sm:$0xf]
          %v507 = vld [vmem:[#allocation11 + $0x3c] sm:$0xf]
          %v508 = vld [vmem:[%s5] sm:$0x1]
          %v510 = vlaneseq
          %v511 = vshrl.u32 %v510, 7
          %v512 = vsub.s32 0, %v511
          %v513 = vrot.slane %v508, %v512
          %v531 = vunpack.c.l.b16 %v492
          %v532 = vunpack.c.l.b16 %v493
          %v533 = vunpack.c.l.b16 %v494
          %v534 = vunpack.c.l.b16 %v495
          %v535 = vunpack.c.l.b16 %v496
          %v536 = vunpack.c.l.b16 %v497
          %v537 = vunpack.c.l.b16 %v498
          %v538 = vunpack.c.l.b16 %v499
          %v539 = vunpack.c.l.b16 %v500
          %v540 = vunpack.c.l.b16 %v501
          %v541 = vunpack.c.l.b16 %v502
          %v542 = vunpack.c.l.b16 %v503
          %v543 = vunpack.c.l.b16 %v504
          %v544 = vunpack.c.l.b16 %v505
          %v545 = vunpack.c.l.b16 %v506
          %v546 = vunpack.c.l.b16 %v507
          %v547 = vpack.c.b16 %v532, %v531
          %v548 = vpack.c.b16 %v534, %v533
          %v549 = vpack.c.b16 %v536, %v535
          %v550 = vpack.c.b16 %v538, %v537
          %v551 = vpack.c.b16 %v540, %v539
          %v552 = vpack.c.b16 %v542, %v541
          %v553 = vpack.c.b16 %v544, %v543
          %v554 = vpack.c.b16 %v546, %v545
          %563 = vmatprep.subr.bf16.mxu0 0
          %564 = vmatpush1.bf16.msra.mxu0 %v554
          %565 = vmatprep.subr.bf16.mxu0 0
          %566 = vmatpush1.bf16.msra.mxu0 %v553
          %567 = vmatprep.subr.bf16.mxu0 0
          %568 = vmatpush1.bf16.msra.mxu0 %v552
          %569 = vmatprep.subr.bf16.mxu0 0
          %570 = vmatpush1.bf16.msra.mxu0 %v551
          %571 = vmatprep.subr.bf16.mxu0 0
          %572 = vmatpush1.bf16.msra.mxu0 %v550
          %573 = vmatprep.subr.bf16.mxu0 0
          %574 = vmatpush1.bf16.msra.mxu0 %v549
          %575 = vmatprep.subr.bf16.mxu0 0
          %576 = vmatpush1.bf16.msra.mxu0 %v548
          %577 = vmatprep.subr.bf16.mxu0 0
          %578 = vmatpush1.bf16.msra.mxu0 %v547
          %579 = vmatprep.subr.bf16.mxu0 0
          %580 = vmatpush2.bf16.msra.mxu0 0
          %581 = vmatprep.subr.bf16.mxu0 0
          %582 = vmatpush2.bf16.msra.mxu0 0
          %583 = vmatprep.subr.bf16.mxu0 0
          %584 = vmatpush2.bf16.msra.mxu0 0
          %585 = vmatprep.subr.bf16.mxu0 0
          %586 = vmatpush2.bf16.msra.mxu0 0
          %587 = vmatprep.subr.bf16.mxu0 0
          %588 = vmatpush2.bf16.msra.mxu0 0
          %589 = vmatprep.subr.bf16.mxu0 0
          %590 = vmatpush2.bf16.msra.mxu0 0
          %591 = vmatprep.subr.bf16.mxu0 0
          %592 = vmatpush2.bf16.msra.mxu0 0
          %593 = vmatprep.subr.bf16.mxu0 0
          %594 = vmatpush2.bf16.msra.mxu0 0
          %595 = vmatprep.mubr.bf16.mxu0 0
          %596 = vmatmul.mubr.bf16.gmra.mxu0 %v476
          %v597 = vpop.f32.mrf.mxu0
          %v598 = vadd.f32 %v513, %v597
          %v599 = vpop.f32.mrf.mxu0
          %v600 = vpop.f32.mrf.mxu0
          %v601 = vadd.f32 %v513, %v600
          %v602 = vpop.f32.mrf.mxu0
          %603 = vmatprep.mubr.bf16.mxu0 0
          %604 = vmatmul.mubr.bf16.gmra.mxu0 %v477
          %v605 = vpop.f32.mrf.mxu0
          %v606 = vadd.f32 %v513, %v605
          %v607 = vpop.f32.mrf.mxu0
          %v608 = vpop.f32.mrf.mxu0
          %v609 = vadd.f32 %v513, %v608
          %v610 = vpop.f32.mrf.mxu0
          %611 = vmatprep.mubr.bf16.mxu0 0
          %612 = vmatmul.mubr.bf16.gmra.mxu0 %v478
          %v613 = vpop.f32.mrf.mxu0
          %v614 = vadd.f32 %v513, %v613
          %v615 = vpop.f32.mrf.mxu0
          %v616 = vpop.f32.mrf.mxu0
          %v617 = vadd.f32 %v513, %v616
          %v618 = vpop.f32.mrf.mxu0
          %619 = vmatprep.mubr.bf16.mxu0 0
          %620 = vmatmul.mubr.bf16.gmra.mxu0 %v479
          %v621 = vpop.f32.mrf.mxu0
          %v622 = vadd.f32 %v513, %v621
          %v623 = vpop.f32.mrf.mxu0
          %v624 = vpop.f32.mrf.mxu0
          %v625 = vadd.f32 %v513, %v624
          %v626 = vpop.f32.mrf.mxu0
          %627 = vmatprep.mubr.bf16.mxu0 0
          %628 = vmatmul.mubr.bf16.gmra.mxu0 %v480
          %v629 = vpop.f32.mrf.mxu0
          %v630 = vadd.f32 %v513, %v629
          %v631 = vpop.f32.mrf.mxu0
          %v632 = vpop.f32.mrf.mxu0
          %v633 = vadd.f32 %v513, %v632
          %v634 = vpop.f32.mrf.mxu0
          %635 = vmatprep.mubr.bf16.mxu0 0
          %636 = vmatmul.mubr.bf16.gmra.mxu0 %v481
          %v637 = vpop.f32.mrf.mxu0
          %v638 = vadd.f32 %v513, %v637
          %v639 = vpop.f32.mrf.mxu0
          %v640 = vpop.f32.mrf.mxu0
          %v641 = vadd.f32 %v513, %v640
          %v642 = vpop.f32.mrf.mxu0
          %643 = vmatprep.mubr.bf16.mxu0 0
          %644 = vmatmul.mubr.bf16.gmra.mxu0 %v482
          %v645 = vpop.f32.mrf.mxu0
          %v646 = vadd.f32 %v513, %v645
          %v647 = vpop.f32.mrf.mxu0
          %v648 = vpop.f32.mrf.mxu0
          %v649 = vadd.f32 %v513, %v648
          %v650 = vpop.f32.mrf.mxu0
          %651 = vmatprep.mubr.bf16.mxu0 0
          %652 = vmatmul.mubr.bf16.gmra.mxu0 %v483
          %v653 = vpop.f32.mrf.mxu0
          %v654 = vadd.f32 %v513, %v653
          %v655 = vpop.f32.mrf.mxu0
          %v656 = vpop.f32.mrf.mxu0
          %v657 = vadd.f32 %v513, %v656
          %v658 = vpop.f32.mrf.mxu0
          %659 = vmatprep.mubr.bf16.mxu0 0
          %660 = vmatmul.mubr.bf16.gmra.mxu0 %v484
          %v661 = vpop.f32.mrf.mxu0
          %v662 = vadd.f32 %v513, %v661
          %v663 = vpop.f32.mrf.mxu0
          %v664 = vpop.f32.mrf.mxu0
          %v665 = vadd.f32 %v513, %v664
          %v666 = vpop.f32.mrf.mxu0
          %667 = vmatprep.mubr.bf16.mxu0 0
          %668 = vmatmul.mubr.bf16.gmra.mxu0 %v485
          %v669 = vpop.f32.mrf.mxu0
          %v670 = vadd.f32 %v513, %v669
          %v671 = vpop.f32.mrf.mxu0
          %v672 = vpop.f32.mrf.mxu0
          %v673 = vadd.f32 %v513, %v672
          %v674 = vpop.f32.mrf.mxu0
          %675 = vmatprep.mubr.bf16.mxu0 0
          %676 = vmatmul.mubr.bf16.gmra.mxu0 %v486
          %v677 = vpop.f32.mrf.mxu0
          %v678 = vadd.f32 %v513, %v677
          %v679 = vpop.f32.mrf.mxu0
          %v680 = vpop.f32.mrf.mxu0
          %v681 = vadd.f32 %v513, %v680
          %v682 = vpop.f32.mrf.mxu0
          %683 = vmatprep.mubr.bf16.mxu0 0
          %684 = vmatmul.mubr.bf16.gmra.mxu0 %v487
          %v685 = vpop.f32.mrf.mxu0
          %v686 = vadd.f32 %v513, %v685
          %v687 = vpop.f32.mrf.mxu0
          %v688 = vpop.f32.mrf.mxu0
          %v689 = vadd.f32 %v513, %v688
          %v690 = vpop.f32.mrf.mxu0
          %691 = vmatprep.mubr.bf16.mxu0 0
          %692 = vmatmul.mubr.bf16.gmra.mxu0 %v488
          %v693 = vpop.f32.mrf.mxu0
          %v694 = vadd.f32 %v513, %v693
          %v695 = vpop.f32.mrf.mxu0
          %v696 = vpop.f32.mrf.mxu0
          %v697 = vadd.f32 %v513, %v696
          %v698 = vpop.f32.mrf.mxu0
          %699 = vmatprep.mubr.bf16.mxu0 0
          %700 = vmatmul.mubr.bf16.gmra.mxu0 %v489
          %v701 = vpop.f32.mrf.mxu0
          %v702 = vadd.f32 %v513, %v701
          %v703 = vpop.f32.mrf.mxu0
          %v704 = vpop.f32.mrf.mxu0
          %v705 = vadd.f32 %v513, %v704
          %v706 = vpop.f32.mrf.mxu0
          %707 = vmatprep.mubr.bf16.mxu0 0
          %708 = vmatmul.mubr.bf16.gmra.mxu0 %v490
          %v709 = vpop.f32.mrf.mxu0
          %v710 = vadd.f32 %v513, %v709
          %v711 = vpop.f32.mrf.mxu0
          %v712 = vpop.f32.mrf.mxu0
          %v713 = vadd.f32 %v513, %v712
          %v714 = vpop.f32.mrf.mxu0
          %715 = vmatprep.mubr.bf16.mxu0 0
          %716 = vmatmul.mubr.bf16.gmra.mxu0 %v491
          %v717 = vpop.f32.mrf.mxu0
          %v718 = vadd.f32 %v513, %v717
          %v719 = vpop.f32.mrf.mxu0
          %v720 = vpop.f32.mrf.mxu0
          %v721 = vadd.f32 %v513, %v720
          %v722 = vpop.f32.mrf.mxu0
          %723 = vdwg.mxu0
          %v724 = vpack.c.bf16 %v601, %v598
          %v725 = vpack.c.bf16 %v609, %v606
          %v726 = vpack.c.bf16 %v617, %v614
          %v727 = vpack.c.bf16 %v625, %v622
          %v728 = vpack.c.bf16 %v633, %v630
          %v729 = vpack.c.bf16 %v641, %v638
          %v730 = vpack.c.bf16 %v649, %v646
          %v731 = vpack.c.bf16 %v657, %v654
          %v732 = vpack.c.bf16 %v665, %v662
          %v733 = vpack.c.bf16 %v673, %v670
          %v734 = vpack.c.bf16 %v681, %v678
          %v735 = vpack.c.bf16 %v689, %v686
          %v736 = vpack.c.bf16 %v697, %v694
          %v737 = vpack.c.bf16 %v705, %v702
          %v738 = vpack.c.bf16 %v713, %v710
          %v739 = vpack.c.bf16 %v721, %v718
          %v756 = vunpack.c.l.b16 %v724
          %v757 = vunpack.c.h.b16 %v724
          %v758 = vunpack.c.l.b16 %v725
          %v759 = vunpack.c.h.b16 %v725
          %v760 = vunpack.c.l.b16 %v726
          %v761 = vunpack.c.h.b16 %v726
          %v762 = vunpack.c.l.b16 %v727
          %v763 = vunpack.c.h.b16 %v727
          %v764 = vunpack.c.l.b16 %v728
          %v765 = vunpack.c.h.b16 %v728
          %v766 = vunpack.c.l.b16 %v729
          %v767 = vunpack.c.h.b16 %v729
          %v768 = vunpack.c.l.b16 %v730
          %v769 = vunpack.c.h.b16 %v730
          %v770 = vunpack.c.l.b16 %v731
          %v771 = vunpack.c.h.b16 %v731
          %v772 = vunpack.c.l.b16 %v732
          %v773 = vunpack.c.h.b16 %v732
          %v774 = vunpack.c.l.b16 %v733
          %v775 = vunpack.c.h.b16 %v733
          %v776 = vunpack.c.l.b16 %v734
          %v777 = vunpack.c.h.b16 %v734
          %v778 = vunpack.c.l.b16 %v735
          %v779 = vunpack.c.h.b16 %v735
          %v780 = vunpack.c.l.b16 %v736
          %v781 = vunpack.c.h.b16 %v736
          %v782 = vunpack.c.l.b16 %v737
          %v783 = vunpack.c.h.b16 %v737
          %v784 = vunpack.c.l.b16 %v738
          %v785 = vunpack.c.h.b16 %v738
          %v786 = vunpack.c.l.b16 %v739
          %v787 = vunpack.c.h.b16 %v739
          %v788 = vpack.c.b16 %v756, %v756
          %v789 = vpack.c.b16 %v757, %v757
          %v790 = vpack.c.b16 %v758, %v758
          %v791 = vpack.c.b16 %v759, %v759
          %v792 = vpack.c.b16 %v760, %v760
          %v793 = vpack.c.b16 %v761, %v761
          %v794 = vpack.c.b16 %v762, %v762
          %v795 = vpack.c.b16 %v763, %v763
          %v796 = vpack.c.b16 %v764, %v764
          %v797 = vpack.c.b16 %v765, %v765
          %v798 = vpack.c.b16 %v766, %v766
          %v799 = vpack.c.b16 %v767, %v767
          %v800 = vpack.c.b16 %v768, %v768
          %v801 = vpack.c.b16 %v769, %v769
          %v802 = vpack.c.b16 %v770, %v770
          %v803 = vpack.c.b16 %v771, %v771
          %v804 = vpack.c.b16 %v772, %v772
          %v805 = vpack.c.b16 %v773, %v773
          %v806 = vpack.c.b16 %v774, %v774
          %v807 = vpack.c.b16 %v775, %v775
          %v808 = vpack.c.b16 %v776, %v776
          %v809 = vpack.c.b16 %v777, %v777
          %v810 = vpack.c.b16 %v778, %v778
          %v811 = vpack.c.b16 %v779, %v779
          %v812 = vpack.c.b16 %v780, %v780
          %v813 = vpack.c.b16 %v781, %v781
          %v814 = vpack.c.b16 %v782, %v782
          %v815 = vpack.c.b16 %v783, %v783
          %v816 = vpack.c.b16 %v784, %v784
          %v817 = vpack.c.b16 %v785, %v785
          %v818 = vpack.c.b16 %v786, %v786
          %v819 = vpack.c.b16 %v787, %v787
          %852 = vst [vmem:[#allocation2] sm:$0xf] %v788
          %853 = vst [vmem:[#allocation2 + $0x4] sm:$0xf] %v789
          %854 = vst [vmem:[#allocation2 + $0x8] sm:$0xf] %v790
          %855 = vst [vmem:[#allocation2 + $0xc] sm:$0xf] %v791
          %856 = vst [vmem:[#allocation2 + $0x10] sm:$0xf] %v792
          %857 = vst [vmem:[#allocation2 + $0x14] sm:$0xf] %v793
          %858 = vst [vmem:[#allocation2 + $0x18] sm:$0xf] %v794
          %859 = vst [vmem:[#allocation2 + $0x1c] sm:$0xf] %v795
          %860 = vst [vmem:[#allocation2 + $0x20] sm:$0xf] %v796
          %861 = vst [vmem:[#allocation2 + $0x24] sm:$0xf] %v797
          %862 = vst [vmem:[#allocation2 + $0x28] sm:$0xf] %v798
          %863 = vst [vmem:[#allocation2 + $0x2c] sm:$0xf] %v799
          %864 = vst [vmem:[#allocation2 + $0x30] sm:$0xf] %v800
          %865 = vst [vmem:[#allocation2 + $0x34] sm:$0xf] %v801
          %866 = vst [vmem:[#allocation2 + $0x38] sm:$0xf] %v802
          %867 = vst [vmem:[#allocation2 + $0x3c] sm:$0xf] %v803
          %868 = vst [vmem:[#allocation2 + $0x40] sm:$0xf] %v804
          %869 = vst [vmem:[#allocation2 + $0x44] sm:$0xf] %v805
          %870 = vst [vmem:[#allocation2 + $0x48] sm:$0xf] %v806
          %871 = vst [vmem:[#allocation2 + $0x4c] sm:$0xf] %v807
          %872 = vst [vmem:[#allocation2 + $0x50] sm:$0xf] %v808
          %873 = vst [vmem:[#allocation2 + $0x54] sm:$0xf] %v809
          %874 = vst [vmem:[#allocation2 + $0x58] sm:$0xf] %v810
          %875 = vst [vmem:[#allocation2 + $0x5c] sm:$0xf] %v811
          %876 = vst [vmem:[#allocation2 + $0x60] sm:$0xf] %v812
          %877 = vst [vmem:[#allocation2 + $0x64] sm:$0xf] %v813
          %878 = vst [vmem:[#allocation2 + $0x68] sm:$0xf] %v814
          %879 = vst [vmem:[#allocation2 + $0x6c] sm:$0xf] %v815
          %880 = vst [vmem:[#allocation2 + $0x70] sm:$0xf] %v816
          %881 = vst [vmem:[#allocation2 + $0x74] sm:$0xf] %v817
          %882 = vst [vmem:[#allocation2 + $0x78] sm:$0xf] %v818
          %883 = vst [vmem:[#allocation2 + $0x7c] sm:$0xf] %v819
          %vm884 = vcmask 7168
          %885 = vst.msk [vmem:[#allocation3] sm:$0xff] %vm884, -inf
          %886 = vst.msk [vmem:[#allocation3 + $0x8] sm:$0xff] %vm884, -inf
          %887 = vst.msk [vmem:[#allocation3 + $0x10] sm:$0xff] %vm884, -inf
          %888 = vst.msk [vmem:[#allocation3 + $0x18] sm:$0xff] %vm884, -inf
          %889 = vst.msk [vmem:[#allocation3 + $0x20] sm:$0xff] %vm884, -inf
          %890 = vst.msk [vmem:[#allocation3 + $0x28] sm:$0xff] %vm884, -inf
          %891 = vst.msk [vmem:[#allocation3 + $0x30] sm:$0xff] %vm884, -inf
          %892 = vst.msk [vmem:[#allocation3 + $0x38] sm:$0xff] %vm884, -inf
          %893 = vst.msk [vmem:[#allocation3 + $0x40] sm:$0xff] %vm884, -inf
          %894 = vst.msk [vmem:[#allocation3 + $0x48] sm:$0xff] %vm884, -inf
          %895 = vst.msk [vmem:[#allocation3 + $0x50] sm:$0xff] %vm884, -inf
          %896 = vst.msk [vmem:[#allocation3 + $0x58] sm:$0xff] %vm884, -inf
          %897 = vst.msk [vmem:[#allocation3 + $0x60] sm:$0xff] %vm884, -inf
          %898 = vst.msk [vmem:[#allocation3 + $0x68] sm:$0xff] %vm884, -inf
          %899 = vst.msk [vmem:[#allocation3 + $0x70] sm:$0xff] %vm884, -inf
          %900 = vst.msk [vmem:[#allocation3 + $0x78] sm:$0xff] %vm884, -inf
          %901 = vst.msk [vmem:[#allocation3 + $0x80] sm:$0xff] %vm884, -inf
          %902 = vst.msk [vmem:[#allocation3 + $0x88] sm:$0xff] %vm884, -inf
          %903 = vst.msk [vmem:[#allocation3 + $0x90] sm:$0xff] %vm884, -inf
          %904 = vst.msk [vmem:[#allocation3 + $0x98] sm:$0xff] %vm884, -inf
          %905 = vst.msk [vmem:[#allocation3 + $0xa0] sm:$0xff] %vm884, -inf
          %906 = vst.msk [vmem:[#allocation3 + $0xa8] sm:$0xff] %vm884, -inf
          %907 = vst.msk [vmem:[#allocation3 + $0xb0] sm:$0xff] %vm884, -inf
          %908 = vst.msk [vmem:[#allocation3 + $0xb8] sm:$0xff] %vm884, -inf
          %909 = vst.msk [vmem:[#allocation3 + $0xc0] sm:$0xff] %vm884, -inf
          %910 = vst.msk [vmem:[#allocation3 + $0xc8] sm:$0xff] %vm884, -inf
          %911 = vst.msk [vmem:[#allocation3 + $0xd0] sm:$0xff] %vm884, -inf
          %912 = vst.msk [vmem:[#allocation3 + $0xd8] sm:$0xff] %vm884, -inf
          %913 = vst.msk [vmem:[#allocation3 + $0xe0] sm:$0xff] %vm884, -inf
          %914 = vst.msk [vmem:[#allocation3 + $0xe8] sm:$0xff] %vm884, -inf
          %915 = vst.msk [vmem:[#allocation3 + $0xf0] sm:$0xff] %vm884, -inf
          %916 = vst.msk [vmem:[#allocation3 + $0xf8] sm:$0xff] %vm884, -inf
          %917 = vst.msk [vmem:[#allocation4] sm:$0xff] %vm884, 0.0
          %918 = vst.msk [vmem:[#allocation4 + $0x8] sm:$0xff] %vm884, 0.0
          %919 = vst.msk [vmem:[#allocation4 + $0x10] sm:$0xff] %vm884, 0.0
          %920 = vst.msk [vmem:[#allocation4 + $0x18] sm:$0xff] %vm884, 0.0
          %921 = vst.msk [vmem:[#allocation4 + $0x20] sm:$0xff] %vm884, 0.0
          %922 = vst.msk [vmem:[#allocation4 + $0x28] sm:$0xff] %vm884, 0.0
          %923 = vst.msk [vmem:[#allocation4 + $0x30] sm:$0xff] %vm884, 0.0
          %924 = vst.msk [vmem:[#allocation4 + $0x38] sm:$0xff] %vm884, 0.0
          %925 = vst.msk [vmem:[#allocation4 + $0x40] sm:$0xff] %vm884, 0.0
          %926 = vst.msk [vmem:[#allocation4 + $0x48] sm:$0xff] %vm884, 0.0
          %927 = vst.msk [vmem:[#allocation4 + $0x50] sm:$0xff] %vm884, 0.0
          %928 = vst.msk [vmem:[#allocation4 + $0x58] sm:$0xff] %vm884, 0.0
          %929 = vst.msk [vmem:[#allocation4 + $0x60] sm:$0xff] %vm884, 0.0
          %930 = vst.msk [vmem:[#allocation4 + $0x68] sm:$0xff] %vm884, 0.0
          %931 = vst.msk [vmem:[#allocation4 + $0x70] sm:$0xff] %vm884, 0.0
          %932 = vst.msk [vmem:[#allocation4 + $0x78] sm:$0xff] %vm884, 0.0
          %933 = vst.msk [vmem:[#allocation4 + $0x80] sm:$0xff] %vm884, 0.0
          %934 = vst.msk [vmem:[#allocation4 + $0x88] sm:$0xff] %vm884, 0.0
          %935 = vst.msk [vmem:[#allocation4 + $0x90] sm:$0xff] %vm884, 0.0
          %936 = vst.msk [vmem:[#allocation4 + $0x98] sm:$0xff] %vm884, 0.0
          %937 = vst.msk [vmem:[#allocation4 + $0xa0] sm:$0xff] %vm884, 0.0
          %938 = vst.msk [vmem:[#allocation4 + $0xa8] sm:$0xff] %vm884, 0.0
          %939 = vst.msk [vmem:[#allocation4 + $0xb0] sm:$0xff] %vm884, 0.0
          %940 = vst.msk [vmem:[#allocation4 + $0xb8] sm:$0xff] %vm884, 0.0
          %941 = vst.msk [vmem:[#allocation4 + $0xc0] sm:$0xff] %vm884, 0.0
          %942 = vst.msk [vmem:[#allocation4 + $0xc8] sm:$0xff] %vm884, 0.0
          %943 = vst.msk [vmem:[#allocation4 + $0xd0] sm:$0xff] %vm884, 0.0
          %944 = vst.msk [vmem:[#allocation4 + $0xd8] sm:$0xff] %vm884, 0.0
          %945 = vst.msk [vmem:[#allocation4 + $0xe0] sm:$0xff] %vm884, 0.0
          %946 = vst.msk [vmem:[#allocation4 + $0xe8] sm:$0xff] %vm884, 0.0
          %947 = vst.msk [vmem:[#allocation4 + $0xf0] sm:$0xff] %vm884, 0.0
          %948 = vst.msk [vmem:[#allocation4 + $0xf8] sm:$0xff] %vm884, 0.0
          %949 = vst [vmem:[#allocation5] sm:$0xff] 0.0
          %950 = vst [vmem:[#allocation5 + $0x8] sm:$0xff] 0.0
          %951 = vst [vmem:[#allocation5 + $0x10] sm:$0xff] 0.0
          %952 = vst [vmem:[#allocation5 + $0x18] sm:$0xff] 0.0
          %953 = vst [vmem:[#allocation5 + $0x20] sm:$0xff] 0.0
          %954 = vst [vmem:[#allocation5 + $0x28] sm:$0xff] 0.0
          %955 = vst [vmem:[#allocation5 + $0x30] sm:$0xff] 0.0
          %956 = vst [vmem:[#allocation5 + $0x38] sm:$0xff] 0.0
          %957 = vst [vmem:[#allocation5 + $0x40] sm:$0xff] 0.0
          %958 = vst [vmem:[#allocation5 + $0x48] sm:$0xff] 0.0
          %959 = vst [vmem:[#allocation5 + $0x50] sm:$0xff] 0.0
          %960 = vst [vmem:[#allocation5 + $0x58] sm:$0xff] 0.0
          %961 = vst [vmem:[#allocation5 + $0x60] sm:$0xff] 0.0
          %962 = vst [vmem:[#allocation5 + $0x68] sm:$0xff] 0.0
          %963 = vst [vmem:[#allocation5 + $0x70] sm:$0xff] 0.0
          %964 = vst [vmem:[#allocation5 + $0x78] sm:$0xff] 0.0
          %965 = vst [vmem:[#allocation5 + $0x80] sm:$0xff] 0.0
          %966 = vst [vmem:[#allocation5 + $0x88] sm:$0xff] 0.0
          %967 = vst [vmem:[#allocation5 + $0x90] sm:$0xff] 0.0
          %968 = vst [vmem:[#allocation5 + $0x98] sm:$0xff] 0.0
          %969 = vst [vmem:[#allocation5 + $0xa0] sm:$0xff] 0.0
          %970 = vst [vmem:[#allocation5 + $0xa8] sm:$0xff] 0.0
          %971 = vst [vmem:[#allocation5 + $0xb0] sm:$0xff] 0.0
          %972 = vst [vmem:[#allocation5 + $0xb8] sm:$0xff] 0.0
          %973 = vst [vmem:[#allocation5 + $0xc0] sm:$0xff] 0.0
          %974 = vst [vmem:[#allocation5 + $0xc8] sm:$0xff] 0.0
          %975 = vst [vmem:[#allocation5 + $0xd0] sm:$0xff] 0.0
          %976 = vst [vmem:[#allocation5 + $0xd8] sm:$0xff] 0.0
          %977 = vst [vmem:[#allocation5 + $0xe0] sm:$0xff] 0.0
          %978 = vst [vmem:[#allocation5 + $0xe8] sm:$0xff] 0.0
          %979 = vst [vmem:[#allocation5 + $0xf0] sm:$0xff] 0.0
          %980 = vst [vmem:[#allocation5 + $0xf8] sm:$0xff] 0.0
        $region76: #{tpu_custom_call.1} parent=51 // pred_fallthru
          _
        %v981 = vld [vmem:[%s386] sm:$0xff]
        %v982 = vld [vmem:[%s386 + $0x8] sm:$0xff]
        %v983 = vld [vmem:[%s386 + $0x10] sm:$0xff]
        %v984 = vld [vmem:[%s386 + $0x18] sm:$0xff]
        %v985 = vld [vmem:[%s386 + $0x20] sm:$0xff]
        %v986 = vld [vmem:[%s386 + $0x28] sm:$0xff]
        %v987 = vld [vmem:[%s386 + $0x30] sm:$0xff]
        %v988 = vld [vmem:[%s386 + $0x38] sm:$0xff]
        %v989 = vld [vmem:[%s386 + $0x40] sm:$0xff]
        %v990 = vld [vmem:[%s386 + $0x48] sm:$0xff]
        %v991 = vld [vmem:[%s386 + $0x50] sm:$0xff]
        %v992 = vld [vmem:[%s386 + $0x58] sm:$0xff]
        %v993 = vld [vmem:[%s386 + $0x60] sm:$0xff]
        %v994 = vld [vmem:[%s386 + $0x68] sm:$0xff]
        %v995 = vld [vmem:[%s386 + $0x70] sm:$0xff]
        %v996 = vld [vmem:[%s386 + $0x78] sm:$0xff]
        %v997 = vld [vmem:[%s386 + $0x80] sm:$0xff]
        %v998 = vld [vmem:[%s386 + $0x88] sm:$0xff]
        %v999 = vld [vmem:[%s386 + $0x90] sm:$0xff]
        %v1000 = vld [vmem:[%s386 + $0x98] sm:$0xff]
        %v1001 = vld [vmem:[%s386 + $0xa0] sm:$0xff]
        %v1002 = vld [vmem:[%s386 + $0xa8] sm:$0xff]
        %v1003 = vld [vmem:[%s386 + $0xb0] sm:$0xff]
        %v1004 = vld [vmem:[%s386 + $0xb8] sm:$0xff]
        %v1005 = vld [vmem:[%s386 + $0xc0] sm:$0xff]
        %v1006 = vld [vmem:[%s386 + $0xc8] sm:$0xff]
        %v1007 = vld [vmem:[%s386 + $0xd0] sm:$0xff]
        %v1008 = vld [vmem:[%s386 + $0xd8] sm:$0xff]
        %v1009 = vld [vmem:[%s386 + $0xe0] sm:$0xff]
        %v1010 = vld [vmem:[%s386 + $0xe8] sm:$0xff]
        %v1011 = vld [vmem:[%s386 + $0xf0] sm:$0xff]
        %v1012 = vld [vmem:[%s386 + $0xf8] sm:$0xff]
        %v1013 = vpack.c.bf16 %v982, %v981
        %v1014 = vpack.c.bf16 %v984, %v983
        %v1015 = vpack.c.bf16 %v986, %v985
        %v1016 = vpack.c.bf16 %v988, %v987
        %v1017 = vpack.c.bf16 %v990, %v989
        %v1018 = vpack.c.bf16 %v992, %v991
        %v1019 = vpack.c.bf16 %v994, %v993
        %v1020 = vpack.c.bf16 %v996, %v995
        %v1021 = vpack.c.bf16 %v998, %v997
        %v1022 = vpack.c.bf16 %v1000, %v999
        %v1023 = vpack.c.bf16 %v1002, %v1001
        %v1024 = vpack.c.bf16 %v1004, %v1003
        %v1025 = vpack.c.bf16 %v1006, %v1005
        %v1026 = vpack.c.bf16 %v1008, %v1007
        %v1027 = vpack.c.bf16 %v1010, %v1009
        %v1028 = vpack.c.bf16 %v1012, %v1011
        %v1029 = vld [vmem:[#allocation12] sm:$0xff]
        %v1030 = vld [vmem:[#allocation12 + $0x8] sm:$0xff]
        %v1031 = vld [vmem:[#allocation12 + $0x10] sm:$0xff]
        %v1032 = vld [vmem:[#allocation12 + $0x18] sm:$0xff]
        %v1033 = vld [vmem:[#allocation12 + $0x20] sm:$0xff]
        %v1034 = vld [vmem:[#allocation12 + $0x28] sm:$0xff]
        %v1035 = vld [vmem:[#allocation12 + $0x30] sm:$0xff]
        %v1036 = vld [vmem:[#allocation12 + $0x38] sm:$0xff]
        %v1037 = vld [vmem:[#allocation12 + $0x40] sm:$0xff]
        %v1038 = vld [vmem:[#allocation12 + $0x48] sm:$0xff]
        %v1039 = vld [vmem:[#allocation12 + $0x50] sm:$0xff]
        %v1040 = vld [vmem:[#allocation12 + $0x58] sm:$0xff]
        %v1041 = vld [vmem:[#allocation12 + $0x60] sm:$0xff]
        %v1042 = vld [vmem:[#allocation12 + $0x68] sm:$0xff]
        %v1043 = vld [vmem:[#allocation12 + $0x70] sm:$0xff]
        %v1044 = vld [vmem:[#allocation12 + $0x78] sm:$0xff]
        %v1045 = vld [vmem:[%s6] sm:$0x3]
        %v1047 = vlaneseq
        %v1048 = vshrl.u32 %v1047, 7
        %v1049 = vsub.s32 0, %v1048
        %v1050 = vrot.slane %v1045, %v1049
        %v1051 = vlaneseq
        %v1052 = vshrl.u32 %v1051, 7
        %v1053 = vsub.s32 1, %v1052
        %v1054 = vrot.slane %v1045, %v1053
        %v1073 = vunpack.c.l.b16 %v1029
        %v1074 = vunpack.c.h.b16 %v1029
        %v1075 = vunpack.c.l.b16 %v1030
        %v1076 = vunpack.c.h.b16 %v1030
        %v1077 = vunpack.c.l.b16 %v1031
        %v1078 = vunpack.c.h.b16 %v1031
        %v1079 = vunpack.c.l.b16 %v1032
        %v1080 = vunpack.c.h.b16 %v1032
        %v1081 = vunpack.c.l.b16 %v1033
        %v1082 = vunpack.c.h.b16 %v1033
        %v1083 = vunpack.c.l.b16 %v1034
        %v1084 = vunpack.c.h.b16 %v1034
        %v1085 = vunpack.c.l.b16 %v1035
        %v1086 = vunpack.c.h.b16 %v1035
        %v1087 = vunpack.c.l.b16 %v1036
        %v1088 = vunpack.c.h.b16 %v1036
        %v1089 = vunpack.c.l.b16 %v1037
        %v1090 = vunpack.c.h.b16 %v1037
        %v1091 = vunpack.c.l.b16 %v1038
        %v1092 = vunpack.c.h.b16 %v1038
        %v1093 = vunpack.c.l.b16 %v1039
        %v1094 = vunpack.c.h.b16 %v1039
        %v1095 = vunpack.c.l.b16 %v1040
        %v1096 = vunpack.c.h.b16 %v1040
        %v1097 = vunpack.c.l.b16 %v1041
        %v1098 = vunpack.c.h.b16 %v1041
        %v1099 = vunpack.c.l.b16 %v1042
        %v1100 = vunpack.c.h.b16 %v1042
        %v1101 = vunpack.c.l.b16 %v1043
        %v1102 = vunpack.c.h.b16 %v1043
        %v1103 = vunpack.c.l.b16 %v1044
        %v1104 = vunpack.c.h.b16 %v1044
        %v1105 = vpack.c.b16 %v1075, %v1073
        %v1106 = vpack.c.b16 %v1076, %v1074
        %v1107 = vpack.c.b16 %v1079, %v1077
        %v1108 = vpack.c.b16 %v1080, %v1078
        %v1109 = vpack.c.b16 %v1083, %v1081
        %v1110 = vpack.c.b16 %v1084, %v1082
        %v1111 = vpack.c.b16 %v1087, %v1085
        %v1112 = vpack.c.b16 %v1088, %v1086
        %v1113 = vpack.c.b16 %v1091, %v1089
        %v1114 = vpack.c.b16 %v1092, %v1090
        %v1115 = vpack.c.b16 %v1095, %v1093
        %v1116 = vpack.c.b16 %v1096, %v1094
        %v1117 = vpack.c.b16 %v1099, %v1097
        %v1118 = vpack.c.b16 %v1100, %v1098
        %v1119 = vpack.c.b16 %v1103, %v1101
        %v1120 = vpack.c.b16 %v1104, %v1102
        %1137 = vmatprep.subr.bf16.mxu0 %v1120
        %1138 = vmatpush1.bf16.msra.mxu0 %v1119
        %1139 = vmatprep.subr.bf16.mxu0 %v1118
        %1140 = vmatpush1.bf16.msra.mxu0 %v1117
        %1141 = vmatprep.subr.bf16.mxu0 %v1116
        %1142 = vmatpush1.bf16.msra.mxu0 %v1115
        %1143 = vmatprep.subr.bf16.mxu0 %v1114
        %1144 = vmatpush1.bf16.msra.mxu0 %v1113
        %1145 = vmatprep.subr.bf16.mxu0 %v1112
        %1146 = vmatpush1.bf16.msra.mxu0 %v1111
        %1147 = vmatprep.subr.bf16.mxu0 %v1110
        %1148 = vmatpush1.bf16.msra.mxu0 %v1109
        %1149 = vmatprep.subr.bf16.mxu0 %v1108
        %1150 = vmatpush1.bf16.msra.mxu0 %v1107
        %1151 = vmatprep.subr.bf16.mxu0 %v1106
        %1152 = vmatpush1.bf16.msra.mxu0 %v1105
        %1153 = vmatprep.subr.bf16.mxu0 0
        %1154 = vmatpush2.bf16.msra.mxu0 0
        %1155 = vmatprep.subr.bf16.mxu0 0
        %1156 = vmatpush2.bf16.msra.mxu0 0
        %1157 = vmatprep.subr.bf16.mxu0 0
        %1158 = vmatpush2.bf16.msra.mxu0 0
        %1159 = vmatprep.subr.bf16.mxu0 0
        %1160 = vmatpush2.bf16.msra.mxu0 0
        %1161 = vmatprep.subr.bf16.mxu0 0
        %1162 = vmatpush2.bf16.msra.mxu0 0
        %1163 = vmatprep.subr.bf16.mxu0 0
        %1164 = vmatpush2.bf16.msra.mxu0 0
        %1165 = vmatprep.subr.bf16.mxu0 0
        %1166 = vmatpush2.bf16.msra.mxu0 0
        %1167 = vmatprep.subr.bf16.mxu0 0
        %1168 = vmatpush2.bf16.msra.mxu0 0
        %1169 = vmatprep.mubr.bf16.mxu0 0
        %1170 = vmatmul.mubr.bf16.gmra.mxu0 %v1013
        %v1171 = vpop.f32.mrf.mxu0
        %v1172 = vadd.f32 %v1050, %v1171
        %v1173 = vpop.f32.mrf.mxu0
        %v1174 = vadd.f32 %v1054, %v1173
        %v1175 = vpop.f32.mrf.mxu0
        %v1176 = vadd.f32 %v1050, %v1175
        %v1177 = vpop.f32.mrf.mxu0
        %v1178 = vadd.f32 %v1054, %v1177
        %1179 = vmatprep.mubr.bf16.mxu0 0
        %1180 = vmatmul.mubr.bf16.gmra.mxu0 %v1014
        %v1181 = vpop.f32.mrf.mxu0
        %v1182 = vadd.f32 %v1050, %v1181
        %v1183 = vpop.f32.mrf.mxu0
        %v1184 = vadd.f32 %v1054, %v1183
        %v1185 = vpop.f32.mrf.mxu0
        %v1186 = vadd.f32 %v1050, %v1185
        %v1187 = vpop.f32.mrf.mxu0
        %v1188 = vadd.f32 %v1054, %v1187
        %1189 = vmatprep.mubr.bf16.mxu0 0
        %1190 = vmatmul.mubr.bf16.gmra.mxu0 %v1015
        %v1191 = vpop.f32.mrf.mxu0
        %v1192 = vadd.f32 %v1050, %v1191
        %v1193 = vpop.f32.mrf.mxu0
        %v1194 = vadd.f32 %v1054, %v1193
        %v1195 = vpop.f32.mrf.mxu0
        %v1196 = vadd.f32 %v1050, %v1195
        %v1197 = vpop.f32.mrf.mxu0
        %v1198 = vadd.f32 %v1054, %v1197
        %1199 = vmatprep.mubr.bf16.mxu0 0
        %1200 = vmatmul.mubr.bf16.gmra.mxu0 %v1016
        %v1201 = vpop.f32.mrf.mxu0
        %v1202 = vadd.f32 %v1050, %v1201
        %v1203 = vpop.f32.mrf.mxu0
        %v1204 = vadd.f32 %v1054, %v1203
        %v1205 = vpop.f32.mrf.mxu0
        %v1206 = vadd.f32 %v1050, %v1205
        %v1207 = vpop.f32.mrf.mxu0
        %v1208 = vadd.f32 %v1054, %v1207
        %1209 = vmatprep.mubr.bf16.mxu0 0
        %1210 = vmatmul.mubr.bf16.gmra.mxu0 %v1017
        %v1211 = vpop.f32.mrf.mxu0
        %v1212 = vadd.f32 %v1050, %v1211
        %v1213 = vpop.f32.mrf.mxu0
        %v1214 = vadd.f32 %v1054, %v1213
        %v1215 = vpop.f32.mrf.mxu0
        %v1216 = vadd.f32 %v1050, %v1215
        %v1217 = vpop.f32.mrf.mxu0
        %v1218 = vadd.f32 %v1054, %v1217
        %1219 = vmatprep.mubr.bf16.mxu0 0
        %1220 = vmatmul.mubr.bf16.gmra.mxu0 %v1018
        %v1221 = vpop.f32.mrf.mxu0
        %v1222 = vadd.f32 %v1050, %v1221
        %v1223 = vpop.f32.mrf.mxu0
        %v1224 = vadd.f32 %v1054, %v1223
        %v1225 = vpop.f32.mrf.mxu0
        %v1226 = vadd.f32 %v1050, %v1225
        %v1227 = vpop.f32.mrf.mxu0
        %v1228 = vadd.f32 %v1054, %v1227
        %1229 = vmatprep.mubr.bf16.mxu0 0
        %1230 = vmatmul.mubr.bf16.gmra.mxu0 %v1019
        %v1231 = vpop.f32.mrf.mxu0
        %v1232 = vadd.f32 %v1050, %v1231
        %v1233 = vpop.f32.mrf.mxu0
        %v1234 = vadd.f32 %v1054, %v1233
        %v1235 = vpop.f32.mrf.mxu0
        %v1236 = vadd.f32 %v1050, %v1235
        %v1237 = vpop.f32.mrf.mxu0
        %v1238 = vadd.f32 %v1054, %v1237
        %1239 = vmatprep.mubr.bf16.mxu0 0
        %1240 = vmatmul.mubr.bf16.gmra.mxu0 %v1020
        %v1241 = vpop.f32.mrf.mxu0
        %v1242 = vadd.f32 %v1050, %v1241
        %v1243 = vpop.f32.mrf.mxu0
        %v1244 = vadd.f32 %v1054, %v1243
        %v1245 = vpop.f32.mrf.mxu0
        %v1246 = vadd.f32 %v1050, %v1245
        %v1247 = vpop.f32.mrf.mxu0
        %v1248 = vadd.f32 %v1054, %v1247
        %1249 = vmatprep.mubr.bf16.mxu0 0
        %1250 = vmatmul.mubr.bf16.gmra.mxu0 %v1021
        %v1251 = vpop.f32.mrf.mxu0
        %v1252 = vadd.f32 %v1050, %v1251
        %v1253 = vpop.f32.mrf.mxu0
        %v1254 = vadd.f32 %v1054, %v1253
        %v1255 = vpop.f32.mrf.mxu0
        %v1256 = vadd.f32 %v1050, %v1255
        %v1257 = vpop.f32.mrf.mxu0
        %v1258 = vadd.f32 %v1054, %v1257
        %1259 = vmatprep.mubr.bf16.mxu0 0
        %1260 = vmatmul.mubr.bf16.gmra.mxu0 %v1022
        %v1261 = vpop.f32.mrf.mxu0
        %v1262 = vadd.f32 %v1050, %v1261
        %v1263 = vpop.f32.mrf.mxu0
        %v1264 = vadd.f32 %v1054, %v1263
        %v1265 = vpop.f32.mrf.mxu0
        %v1266 = vadd.f32 %v1050, %v1265
        %v1267 = vpop.f32.mrf.mxu0
        %v1268 = vadd.f32 %v1054, %v1267
        %1269 = vmatprep.mubr.bf16.mxu0 0
        %1270 = vmatmul.mubr.bf16.gmra.mxu0 %v1023
        %v1271 = vpop.f32.mrf.mxu0
        %v1272 = vadd.f32 %v1050, %v1271
        %v1273 = vpop.f32.mrf.mxu0
        %v1274 = vadd.f32 %v1054, %v1273
        %v1275 = vpop.f32.mrf.mxu0
        %v1276 = vadd.f32 %v1050, %v1275
        %v1277 = vpop.f32.mrf.mxu0
        %v1278 = vadd.f32 %v1054, %v1277
        %1279 = vmatprep.mubr.bf16.mxu0 0
        %1280 = vmatmul.mubr.bf16.gmra.mxu0 %v1024
        %v1281 = vpop.f32.mrf.mxu0
        %v1282 = vadd.f32 %v1050, %v1281
        %v1283 = vpop.f32.mrf.mxu0
        %v1284 = vadd.f32 %v1054, %v1283
        %v1285 = vpop.f32.mrf.mxu0
        %v1286 = vadd.f32 %v1050, %v1285
        %v1287 = vpop.f32.mrf.mxu0
        %v1288 = vadd.f32 %v1054, %v1287
        %1289 = vmatprep.mubr.bf16.mxu0 0
        %1290 = vmatmul.mubr.bf16.gmra.mxu0 %v1025
        %v1291 = vpop.f32.mrf.mxu0
        %v1292 = vadd.f32 %v1050, %v1291
        %v1293 = vpop.f32.mrf.mxu0
        %v1294 = vadd.f32 %v1054, %v1293
        %v1295 = vpop.f32.mrf.mxu0
        %v1296 = vadd.f32 %v1050, %v1295
        %v1297 = vpop.f32.mrf.mxu0
        %v1298 = vadd.f32 %v1054, %v1297
        %1299 = vmatprep.mubr.bf16.mxu0 0
        %1300 = vmatmul.mubr.bf16.gmra.mxu0 %v1026
        %v1301 = vpop.f32.mrf.mxu0
        %v1302 = vadd.f32 %v1050, %v1301
        %v1303 = vpop.f32.mrf.mxu0
        %v1304 = vadd.f32 %v1054, %v1303
        %v1305 = vpop.f32.mrf.mxu0
        %v1306 = vadd.f32 %v1050, %v1305
        %v1307 = vpop.f32.mrf.mxu0
        %v1308 = vadd.f32 %v1054, %v1307
        %1309 = vmatprep.mubr.bf16.mxu0 0
        %1310 = vmatmul.mubr.bf16.gmra.mxu0 %v1027
        %v1311 = vpop.f32.mrf.mxu0
        %v1312 = vadd.f32 %v1050, %v1311
        %v1313 = vpop.f32.mrf.mxu0
        %v1314 = vadd.f32 %v1054, %v1313
        %v1315 = vpop.f32.mrf.mxu0
        %v1316 = vadd.f32 %v1050, %v1315
        %v1317 = vpop.f32.mrf.mxu0
        %v1318 = vadd.f32 %v1054, %v1317
        %1319 = vmatprep.mubr.bf16.mxu0 0
        %1320 = vmatmul.mubr.bf16.gmra.mxu0 %v1028
        %v1321 = vpop.f32.mrf.mxu0
        %v1322 = vadd.f32 %v1050, %v1321
        %v1323 = vpop.f32.mrf.mxu0
        %v1324 = vadd.f32 %v1054, %v1323
        %v1325 = vpop.f32.mrf.mxu0
        %v1326 = vadd.f32 %v1050, %v1325
        %v1327 = vpop.f32.mrf.mxu0
        %v1328 = vadd.f32 %v1054, %v1327
        %1329 = vdwg.mxu0
        %v1330 = vpack.c.bf16 %v1176, %v1172
        %v1331 = vpack.c.bf16 %v1186, %v1182
        %v1332 = vpack.c.bf16 %v1196, %v1192
        %v1333 = vpack.c.bf16 %v1206, %v1202
        %v1334 = vpack.c.bf16 %v1216, %v1212
        %v1335 = vpack.c.bf16 %v1226, %v1222
        %v1336 = vpack.c.bf16 %v1236, %v1232
        %v1337 = vpack.c.bf16 %v1246, %v1242
        %v1338 = vpack.c.bf16 %v1256, %v1252
        %v1339 = vpack.c.bf16 %v1266, %v1262
        %v1340 = vpack.c.bf16 %v1276, %v1272
        %v1341 = vpack.c.bf16 %v1286, %v1282
        %v1342 = vpack.c.bf16 %v1296, %v1292
        %v1343 = vpack.c.bf16 %v1306, %v1302
        %v1344 = vpack.c.bf16 %v1316, %v1312
        %v1345 = vpack.c.bf16 %v1326, %v1322
        %v1346 = vpack.c.bf16 %v1178, %v1174
        %v1347 = vpack.c.bf16 %v1188, %v1184
        %v1348 = vpack.c.bf16 %v1198, %v1194
        %v1349 = vpack.c.bf16 %v1208, %v1204
        %v1350 = vpack.c.bf16 %v1218, %v1214
        %v1351 = vpack.c.bf16 %v1228, %v1224
        %v1352 = vpack.c.bf16 %v1238, %v1234
        %v1353 = vpack.c.bf16 %v1248, %v1244
        %v1354 = vpack.c.bf16 %v1258, %v1254
        %v1355 = vpack.c.bf16 %v1268, %v1264
        %v1356 = vpack.c.bf16 %v1278, %v1274
        %v1357 = vpack.c.bf16 %v1288, %v1284
        %v1358 = vpack.c.bf16 %v1298, %v1294
        %v1359 = vpack.c.bf16 %v1308, %v1304
        %v1360 = vpack.c.bf16 %v1318, %v1314
        %v1361 = vpack.c.bf16 %v1328, %v1324
        %v1362 = vld [vmem:[#allocation2] sm:$0xf]
        %v1363 = vld [vmem:[#allocation2 + $0x4] sm:$0xf]
        %v1364 = vld [vmem:[#allocation2 + $0x8] sm:$0xf]
        %v1365 = vld [vmem:[#allocation2 + $0xc] sm:$0xf]
        %v1366 = vld [vmem:[#allocation2 + $0x10] sm:$0xf]
        %v1367 = vld [vmem:[#allocation2 + $0x14] sm:$0xf]
        %v1368 = vld [vmem:[#allocation2 + $0x18] sm:$0xf]
        %v1369 = vld [vmem:[#allocation2 + $0x1c] sm:$0xf]
        %v1370 = vld [vmem:[#allocation2 + $0x20] sm:$0xf]
        %v1371 = vld [vmem:[#allocation2 + $0x24] sm:$0xf]
        %v1372 = vld [vmem:[#allocation2 + $0x28] sm:$0xf]
        %v1373 = vld [vmem:[#allocation2 + $0x2c] sm:$0xf]
        %v1374 = vld [vmem:[#allocation2 + $0x30] sm:$0xf]
        %v1375 = vld [vmem:[#allocation2 + $0x34] sm:$0xf]
        %v1376 = vld [vmem:[#allocation2 + $0x38] sm:$0xf]
        %v1377 = vld [vmem:[#allocation2 + $0x3c] sm:$0xf]
        %v1378 = vld [vmem:[#allocation2 + $0x40] sm:$0xf]
        %v1379 = vld [vmem:[#allocation2 + $0x44] sm:$0xf]
        %v1380 = vld [vmem:[#allocation2 + $0x48] sm:$0xf]
        %v1381 = vld [vmem:[#allocation2 + $0x4c] sm:$0xf]
        %v1382 = vld [vmem:[#allocation2 + $0x50] sm:$0xf]
        %v1383 = vld [vmem:[#allocation2 + $0x54] sm:$0xf]
        %v1384 = vld [vmem:[#allocation2 + $0x58] sm:$0xf]
        %v1385 = vld [vmem:[#allocation2 + $0x5c] sm:$0xf]
        %v1386 = vld [vmem:[#allocation2 + $0x60] sm:$0xf]
        %v1387 = vld [vmem:[#allocation2 + $0x64] sm:$0xf]
        %v1388 = vld [vmem:[#allocation2 + $0x68] sm:$0xf]
        %v1389 = vld [vmem:[#allocation2 + $0x6c] sm:$0xf]
        %v1390 = vld [vmem:[#allocation2 + $0x70] sm:$0xf]
        %v1391 = vld [vmem:[#allocation2 + $0x74] sm:$0xf]
        %v1392 = vld [vmem:[#allocation2 + $0x78] sm:$0xf]
        %v1393 = vld [vmem:[#allocation2 + $0x7c] sm:$0xf]
        %v1426 = vunpack.c.l.b16 %v1362
        %v1427 = vunpack.c.l.b16 %v1363
        %v1428 = vunpack.c.l.b16 %v1364
        %v1429 = vunpack.c.l.b16 %v1365
        %v1430 = vunpack.c.l.b16 %v1366
        %v1431 = vunpack.c.l.b16 %v1367
        %v1432 = vunpack.c.l.b16 %v1368
        %v1433 = vunpack.c.l.b16 %v1369
        %v1434 = vunpack.c.l.b16 %v1370
        %v1435 = vunpack.c.l.b16 %v1371
        %v1436 = vunpack.c.l.b16 %v1372
        %v1437 = vunpack.c.l.b16 %v1373
        %v1438 = vunpack.c.l.b16 %v1374
        %v1439 = vunpack.c.l.b16 %v1375
        %v1440 = vunpack.c.l.b16 %v1376
        %v1441 = vunpack.c.l.b16 %v1377
        %v1442 = vunpack.c.l.b16 %v1378
        %v1443 = vunpack.c.l.b16 %v1379
        %v1444 = vunpack.c.l.b16 %v1380
        %v1445 = vunpack.c.l.b16 %v1381
        %v1446 = vunpack.c.l.b16 %v1382
        %v1447 = vunpack.c.l.b16 %v1383
        %v1448 = vunpack.c.l.b16 %v1384
        %v1449 = vunpack.c.l.b16 %v1385
        %v1450 = vunpack.c.l.b16 %v1386
        %v1451 = vunpack.c.l.b16 %v1387
        %v1452 = vunpack.c.l.b16 %v1388
        %v1453 = vunpack.c.l.b16 %v1389
        %v1454 = vunpack.c.l.b16 %v1390
        %v1455 = vunpack.c.l.b16 %v1391
        %v1456 = vunpack.c.l.b16 %v1392
        %v1457 = vunpack.c.l.b16 %v1393
        %v1458 = vpack.c.b16 %v1427, %v1426
        %v1459 = vpack.c.b16 %v1429, %v1428
        %v1460 = vpack.c.b16 %v1431, %v1430
        %v1461 = vpack.c.b16 %v1433, %v1432
        %v1462 = vpack.c.b16 %v1435, %v1434
        %v1463 = vpack.c.b16 %v1437, %v1436
        %v1464 = vpack.c.b16 %v1439, %v1438
        %v1465 = vpack.c.b16 %v1441, %v1440
        %v1466 = vpack.c.b16 %v1443, %v1442
        %v1467 = vpack.c.b16 %v1445, %v1444
        %v1468 = vpack.c.b16 %v1447, %v1446
        %v1469 = vpack.c.b16 %v1449, %v1448
        %v1470 = vpack.c.b16 %v1451, %v1450
        %v1471 = vpack.c.b16 %v1453, %v1452
        %v1472 = vpack.c.b16 %v1455, %v1454
        %v1473 = vpack.c.b16 %v1457, %v1456
        %1490 = vmatprep.subr.bf16.mxu0 0
        %1491 = vmatpush1.bf16.xpose.msra.mxu0 %v1337
        %1492 = vmatprep.subr.bf16.mxu0 0
        %1493 = vmatpush1.bf16.xpose.msra.mxu0 %v1336
        %1494 = vmatprep.subr.bf16.mxu0 0
        %1495 = vmatpush1.bf16.xpose.msra.mxu0 %v1335
        %1496 = vmatprep.subr.bf16.mxu0 0
        %1497 = vmatpush1.bf16.xpose.msra.mxu0 %v1334
        %1498 = vmatprep.subr.bf16.mxu0 0
        %1499 = vmatpush1.bf16.xpose.msra.mxu0 %v1333
        %1500 = vmatprep.subr.bf16.mxu0 0
        %1501 = vmatpush1.bf16.xpose.msra.mxu0 %v1332
        %1502 = vmatprep.subr.bf16.mxu0 0
        %1503 = vmatpush1.bf16.xpose.msra.mxu0 %v1331
        %1504 = vmatprep.subr.bf16.mxu0 0
        %1505 = vmatpush1.bf16.xpose.msra.mxu0 %v1330
        %1506 = vmatprep.subr.bf16.mxu0 0
        %1507 = vmatpush2.bf16.xpose.msra.mxu0 %v1345
        %1508 = vmatprep.subr.bf16.mxu0 0
        %1509 = vmatpush2.bf16.xpose.msra.mxu0 %v1344
        %1510 = vmatprep.subr.bf16.mxu0 0
        %1511 = vmatpush2.bf16.xpose.msra.mxu0 %v1343
        %1512 = vmatprep.subr.bf16.mxu0 0
        %1513 = vmatpush2.bf16.xpose.msra.mxu0 %v1342
        %1514 = vmatprep.subr.bf16.mxu0 0
        %1515 = vmatpush2.bf16.xpose.msra.mxu0 %v1341
        %1516 = vmatprep.subr.bf16.mxu0 0
        %1517 = vmatpush2.bf16.xpose.msra.mxu0 %v1340
        %1518 = vmatprep.subr.bf16.mxu0 0
        %1519 = vmatpush2.bf16.xpose.msra.mxu0 %v1339
        %1520 = vmatprep.subr.bf16.mxu0 0
        %1521 = vmatpush2.bf16.xpose.msra.mxu0 %v1338
        %1522 = vmatprep.mubr.bf16.mxu0 0
        %1523 = vmatmul.mubr.bf16.gmra.mxu0 %v1458
        %v1524 = vpop.f32.mrf.mxu0
        %v1525 = vadd.f32 0.0, %v1524
        %v1526 = vpop.f32.mrf.mxu0
        %v1527 = vadd.f32 0.0, %v1526
        %v1528 = vpop.f32.mrf.mxu0
        %v1529 = vadd.f32 0.0, %v1528
        %v1530 = vpop.f32.mrf.mxu0
        %v1531 = vadd.f32 0.0, %v1530
        %1532 = vmatprep.mubr.bf16.mxu0 0
        %1533 = vmatmul.mubr.bf16.gmra.mxu0 %v1459
        %v1534 = vpop.f32.mrf.mxu0
        %v1535 = vadd.f32 0.0, %v1534
        %v1536 = vpop.f32.mrf.mxu0
        %v1537 = vadd.f32 0.0, %v1536
        %v1538 = vpop.f32.mrf.mxu0
        %v1539 = vadd.f32 0.0, %v1538
        %v1540 = vpop.f32.mrf.mxu0
        %v1541 = vadd.f32 0.0, %v1540
        %1542 = vmatprep.mubr.bf16.mxu0 0
        %1543 = vmatmul.mubr.bf16.gmra.mxu0 %v1460
        %v1544 = vpop.f32.mrf.mxu0
        %v1545 = vadd.f32 0.0, %v1544
        %v1546 = vpop.f32.mrf.mxu0
        %v1547 = vadd.f32 0.0, %v1546
        %v1548 = vpop.f32.mrf.mxu0
        %v1549 = vadd.f32 0.0, %v1548
        %v1550 = vpop.f32.mrf.mxu0
        %v1551 = vadd.f32 0.0, %v1550
        %1552 = vmatprep.mubr.bf16.mxu0 0
        %1553 = vmatmul.mubr.bf16.gmra.mxu0 %v1461
        %v1554 = vpop.f32.mrf.mxu0
        %v1555 = vadd.f32 0.0, %v1554
        %v1556 = vpop.f32.mrf.mxu0
        %v1557 = vadd.f32 0.0, %v1556
        %v1558 = vpop.f32.mrf.mxu0
        %v1559 = vadd.f32 0.0, %v1558
        %v1560 = vpop.f32.mrf.mxu0
        %v1561 = vadd.f32 0.0, %v1560
        %1562 = vmatprep.mubr.bf16.mxu0 0
        %1563 = vmatmul.mubr.bf16.gmra.mxu0 %v1462
        %v1564 = vpop.f32.mrf.mxu0
        %v1565 = vadd.f32 0.0, %v1564
        %v1566 = vpop.f32.mrf.mxu0
        %v1567 = vadd.f32 0.0, %v1566
        %v1568 = vpop.f32.mrf.mxu0
        %v1569 = vadd.f32 0.0, %v1568
        %v1570 = vpop.f32.mrf.mxu0
        %v1571 = vadd.f32 0.0, %v1570
        %1572 = vmatprep.mubr.bf16.mxu0 0
        %1573 = vmatmul.mubr.bf16.gmra.mxu0 %v1463
        %v1574 = vpop.f32.mrf.mxu0
        %v1575 = vadd.f32 0.0, %v1574
        %v1576 = vpop.f32.mrf.mxu0
        %v1577 = vadd.f32 0.0, %v1576
        %v1578 = vpop.f32.mrf.mxu0
        %v1579 = vadd.f32 0.0, %v1578
        %v1580 = vpop.f32.mrf.mxu0
        %v1581 = vadd.f32 0.0, %v1580
        %1582 = vmatprep.mubr.bf16.mxu0 0
        %1583 = vmatmul.mubr.bf16.gmra.mxu0 %v1464
        %v1584 = vpop.f32.mrf.mxu0
        %v1585 = vadd.f32 0.0, %v1584
        %v1586 = vpop.f32.mrf.mxu0
        %v1587 = vadd.f32 0.0, %v1586
        %v1588 = vpop.f32.mrf.mxu0
        %v1589 = vadd.f32 0.0, %v1588
        %v1590 = vpop.f32.mrf.mxu0
        %v1591 = vadd.f32 0.0, %v1590
        %1592 = vmatprep.mubr.bf16.mxu0 0
        %1593 = vmatmul.mubr.bf16.gmra.mxu0 %v1465
        %v1594 = vpop.f32.mrf.mxu0
        %v1595 = vadd.f32 0.0, %v1594
        %v1596 = vpop.f32.mrf.mxu0
        %v1597 = vadd.f32 0.0, %v1596
        %v1598 = vpop.f32.mrf.mxu0
        %v1599 = vadd.f32 0.0, %v1598
        %v1600 = vpop.f32.mrf.mxu0
        %v1601 = vadd.f32 0.0, %v1600
        %1602 = vmatprep.mubr.bf16.mxu0 0
        %1603 = vmatmul.mubr.bf16.gmra.mxu0 %v1466
        %v1604 = vpop.f32.mrf.mxu0
        %v1605 = vadd.f32 0.0, %v1604
        %v1606 = vpop.f32.mrf.mxu0
        %v1607 = vadd.f32 0.0, %v1606
        %v1608 = vpop.f32.mrf.mxu0
        %v1609 = vadd.f32 0.0, %v1608
        %v1610 = vpop.f32.mrf.mxu0
        %v1611 = vadd.f32 0.0, %v1610
        %1612 = vmatprep.mubr.bf16.mxu0 0
        %1613 = vmatmul.mubr.bf16.gmra.mxu0 %v1467
        %v1614 = vpop.f32.mrf.mxu0
        %v1615 = vadd.f32 0.0, %v1614
        %v1616 = vpop.f32.mrf.mxu0
        %v1617 = vadd.f32 0.0, %v1616
        %v1618 = vpop.f32.mrf.mxu0
        %v1619 = vadd.f32 0.0, %v1618
        %v1620 = vpop.f32.mrf.mxu0
        %v1621 = vadd.f32 0.0, %v1620
        %1622 = vmatprep.mubr.bf16.mxu0 0
        %1623 = vmatmul.mubr.bf16.gmra.mxu0 %v1468
        %v1624 = vpop.f32.mrf.mxu0
        %v1625 = vadd.f32 0.0, %v1624
        %v1626 = vpop.f32.mrf.mxu0
        %v1627 = vadd.f32 0.0, %v1626
        %v1628 = vpop.f32.mrf.mxu0
        %v1629 = vadd.f32 0.0, %v1628
        %v1630 = vpop.f32.mrf.mxu0
        %v1631 = vadd.f32 0.0, %v1630
        %1632 = vmatprep.mubr.bf16.mxu0 0
        %1633 = vmatmul.mubr.bf16.gmra.mxu0 %v1469
        %v1634 = vpop.f32.mrf.mxu0
        %v1635 = vadd.f32 0.0, %v1634
        %v1636 = vpop.f32.mrf.mxu0
        %v1637 = vadd.f32 0.0, %v1636
        %v1638 = vpop.f32.mrf.mxu0
        %v1639 = vadd.f32 0.0, %v1638
        %v1640 = vpop.f32.mrf.mxu0
        %v1641 = vadd.f32 0.0, %v1640
        %1642 = vmatprep.mubr.bf16.mxu0 0
        %1643 = vmatmul.mubr.bf16.gmra.mxu0 %v1470
        %v1644 = vpop.f32.mrf.mxu0
        %v1645 = vadd.f32 0.0, %v1644
        %v1646 = vpop.f32.mrf.mxu0
        %v1647 = vadd.f32 0.0, %v1646
        %v1648 = vpop.f32.mrf.mxu0
        %v1649 = vadd.f32 0.0, %v1648
        %v1650 = vpop.f32.mrf.mxu0
        %v1651 = vadd.f32 0.0, %v1650
        %1652 = vmatprep.mubr.bf16.mxu0 0
        %1653 = vmatmul.mubr.bf16.gmra.mxu0 %v1471
        %v1654 = vpop.f32.mrf.mxu0
        %v1655 = vadd.f32 0.0, %v1654
        %v1656 = vpop.f32.mrf.mxu0
        %v1657 = vadd.f32 0.0, %v1656
        %v1658 = vpop.f32.mrf.mxu0
        %v1659 = vadd.f32 0.0, %v1658
        %v1660 = vpop.f32.mrf.mxu0
        %v1661 = vadd.f32 0.0, %v1660
        %1662 = vmatprep.mubr.bf16.mxu0 0
        %1663 = vmatmul.mubr.bf16.gmra.mxu0 %v1472
        %v1664 = vpop.f32.mrf.mxu0
        %v1665 = vadd.f32 0.0, %v1664
        %v1666 = vpop.f32.mrf.mxu0
        %v1667 = vadd.f32 0.0, %v1666
        %v1668 = vpop.f32.mrf.mxu0
        %v1669 = vadd.f32 0.0, %v1668
        %v1670 = vpop.f32.mrf.mxu0
        %v1671 = vadd.f32 0.0, %v1670
        %1672 = vmatprep.mubr.bf16.mxu0 0
        %1673 = vmatmul.mubr.bf16.gmra.mxu0 %v1473
        %v1674 = vpop.f32.mrf.mxu0
        %v1675 = vadd.f32 0.0, %v1674
        %v1676 = vpop.f32.mrf.mxu0
        %v1677 = vadd.f32 0.0, %v1676
        %v1678 = vpop.f32.mrf.mxu0
        %v1679 = vadd.f32 0.0, %v1678
        %v1680 = vpop.f32.mrf.mxu0
        %v1681 = vadd.f32 0.0, %v1680
        %1682 = vdwg.mxu0
        %v1683 = vld [vmem:[#allocation3] sm:$0xff]
        %v1684 = vld [vmem:[#allocation3 + $0x8] sm:$0xff]
        %v1685 = vld [vmem:[#allocation3 + $0x10] sm:$0xff]
        %v1686 = vld [vmem:[#allocation3 + $0x18] sm:$0xff]
        %v1687 = vld [vmem:[#allocation3 + $0x20] sm:$0xff]
        %v1688 = vld [vmem:[#allocation3 + $0x28] sm:$0xff]
        %v1689 = vld [vmem:[#allocation3 + $0x30] sm:$0xff]
        %v1690 = vld [vmem:[#allocation3 + $0x38] sm:$0xff]
        %v1691 = vld [vmem:[#allocation3 + $0x40] sm:$0xff]
        %v1692 = vld [vmem:[#allocation3 + $0x48] sm:$0xff]
        %v1693 = vld [vmem:[#allocation3 + $0x50] sm:$0xff]
        %v1694 = vld [vmem:[#allocation3 + $0x58] sm:$0xff]
        %v1695 = vld [vmem:[#allocation3 + $0x60] sm:$0xff]
        %v1696 = vld [vmem:[#allocation3 + $0x68] sm:$0xff]
        %v1697 = vld [vmem:[#allocation3 + $0x70] sm:$0xff]
        %v1698 = vld [vmem:[#allocation3 + $0x78] sm:$0xff]
        %v1699 = vld [vmem:[#allocation3 + $0x80] sm:$0xff]
        %v1700 = vld [vmem:[#allocation3 + $0x88] sm:$0xff]
        %v1701 = vld [vmem:[#allocation3 + $0x90] sm:$0xff]
        %v1702 = vld [vmem:[#allocation3 + $0x98] sm:$0xff]
        %v1703 = vld [vmem:[#allocation3 + $0xa0] sm:$0xff]
        %v1704 = vld [vmem:[#allocation3 + $0xa8] sm:$0xff]
        %v1705 = vld [vmem:[#allocation3 + $0xb0] sm:$0xff]
        %v1706 = vld [vmem:[#allocation3 + $0xb8] sm:$0xff]
        %v1707 = vld [vmem:[#allocation3 + $0xc0] sm:$0xff]
        %v1708 = vld [vmem:[#allocation3 + $0xc8] sm:$0xff]
        %v1709 = vld [vmem:[#allocation3 + $0xd0] sm:$0xff]
        %v1710 = vld [vmem:[#allocation3 + $0xd8] sm:$0xff]
        %v1711 = vld [vmem:[#allocation3 + $0xe0] sm:$0xff]
        %v1712 = vld [vmem:[#allocation3 + $0xe8] sm:$0xff]
        %v1713 = vld [vmem:[#allocation3 + $0xf0] sm:$0xff]
        %v1714 = vld [vmem:[#allocation3 + $0xf8] sm:$0xff]
        %v1715 = vmax.f32 %v1525, %v1527
        %1716 = vmax.xlane.f32.xlu0 %v1715
        %v1717 = vpop.xlane.xlu0 %1716
        %v1718 = vmax.f32 %v1529, %v1531
        %1719 = vmax.xlane.f32.xlu0 %v1718
        %v1720 = vpop.xlane.xlu0 %1719
        %v1721 = vmax.f32 %v1535, %v1537
        %1722 = vmax.xlane.f32.xlu0 %v1721
        %v1723 = vpop.xlane.xlu0 %1722
        %v1724 = vmax.f32 %v1539, %v1541
        %1725 = vmax.xlane.f32.xlu0 %v1724
        %v1726 = vpop.xlane.xlu0 %1725
        %v1727 = vmax.f32 %v1545, %v1547
        %1728 = vmax.xlane.f32.xlu0 %v1727
        %v1729 = vpop.xlane.xlu0 %1728
        %v1730 = vmax.f32 %v1549, %v1551
        %1731 = vmax.xlane.f32.xlu0 %v1730
        %v1732 = vpop.xlane.xlu0 %1731
        %v1733 = vmax.f32 %v1555, %v1557
        %1734 = vmax.xlane.f32.xlu0 %v1733
        %v1735 = vpop.xlane.xlu0 %1734
        %v1736 = vmax.f32 %v1559, %v1561
        %1737 = vmax.xlane.f32.xlu0 %v1736
        %v1738 = vpop.xlane.xlu0 %1737
        %v1739 = vmax.f32 %v1565, %v1567
        %1740 = vmax.xlane.f32.xlu0 %v1739
        %v1741 = vpop.xlane.xlu0 %1740
        %v1742 = vmax.f32 %v1569, %v1571
        %1743 = vmax.xlane.f32.xlu0 %v1742
        %v1744 = vpop.xlane.xlu0 %1743
        %v1745 = vmax.f32 %v1575, %v1577
        %1746 = vmax.xlane.f32.xlu0 %v1745
        %v1747 = vpop.xlane.xlu0 %1746
        %v1748 = vmax.f32 %v1579, %v1581
        %1749 = vmax.xlane.f32.xlu0 %v1748
        %v1750 = vpop.xlane.xlu0 %1749
        %v1751 = vmax.f32 %v1585, %v1587
        %1752 = vmax.xlane.f32.xlu0 %v1751
        %v1753 = vpop.xlane.xlu0 %1752
        %v1754 = vmax.f32 %v1589, %v1591
        %1755 = vmax.xlane.f32.xlu0 %v1754
        %v1756 = vpop.xlane.xlu0 %1755
        %v1757 = vmax.f32 %v1595, %v1597
        %1758 = vmax.xlane.f32.xlu0 %v1757
        %v1759 = vpop.xlane.xlu0 %1758
        %v1760 = vmax.f32 %v1599, %v1601
        %1761 = vmax.xlane.f32.xlu0 %v1760
        %v1762 = vpop.xlane.xlu0 %1761
        %v1763 = vmax.f32 %v1605, %v1607
        %1764 = vmax.xlane.f32.xlu0 %v1763
        %v1765 = vpop.xlane.xlu0 %1764
        %v1766 = vmax.f32 %v1609, %v1611
        %1767 = vmax.xlane.f32.xlu0 %v1766
        %v1768 = vpop.xlane.xlu0 %1767
        %v1769 = vmax.f32 %v1615, %v1617
        %1770 = vmax.xlane.f32.xlu0 %v1769
        %v1771 = vpop.xlane.xlu0 %1770
        %v1772 = vmax.f32 %v1619, %v1621
        %1773 = vmax.xlane.f32.xlu0 %v1772
        %v1774 = vpop.xlane.xlu0 %1773
        %v1775 = vmax.f32 %v1625, %v1627
        %1776 = vmax.xlane.f32.xlu0 %v1775
        %v1777 = vpop.xlane.xlu0 %1776
        %v1778 = vmax.f32 %v1629, %v1631
        %1779 = vmax.xlane.f32.xlu0 %v1778
        %v1780 = vpop.xlane.xlu0 %1779
        %v1781 = vmax.f32 %v1635, %v1637
        %1782 = vmax.xlane.f32.xlu0 %v1781
        %v1783 = vpop.xlane.xlu0 %1782
        %v1784 = vmax.f32 %v1639, %v1641
        %1785 = vmax.xlane.f32.xlu0 %v1784
        %v1786 = vpop.xlane.xlu0 %1785
        %v1787 = vmax.f32 %v1645, %v1647
        %1788 = vmax.xlane.f32.xlu0 %v1787
        %v1789 = vpop.xlane.xlu0 %1788
        %v1790 = vmax.f32 %v1649, %v1651
        %1791 = vmax.xlane.f32.xlu0 %v1790
        %v1792 = vpop.xlane.xlu0 %1791
        %v1793 = vmax.f32 %v1655, %v1657
        %1794 = vmax.xlane.f32.xlu0 %v1793
        %v1795 = vpop.xlane.xlu0 %1794
        %v1796 = vmax.f32 %v1659, %v1661
        %1797 = vmax.xlane.f32.xlu0 %v1796
        %v1798 = vpop.xlane.xlu0 %1797
        %v1799 = vmax.f32 %v1665, %v1667
        %1800 = vmax.xlane.f32.xlu0 %v1799
        %v1801 = vpop.xlane.xlu0 %1800
        %v1802 = vmax.f32 %v1669, %v1671
        %1803 = vmax.xlane.f32.xlu0 %v1802
        %v1804 = vpop.xlane.xlu0 %1803
        %v1805 = vmax.f32 %v1675, %v1677
        %1806 = vmax.xlane.f32.xlu0 %v1805
        %v1807 = vpop.xlane.xlu0 %1806
        %v1808 = vmax.f32 %v1679, %v1681
        %1809 = vmax.xlane.f32.xlu0 %v1808
        %v1810 = vpop.xlane.xlu0 %1809
        %v1811 = vmax.f32 %v1683, %v1717
        %v1812 = vmax.f32 %v1684, %v1720
        %v1813 = vmax.f32 %v1685, %v1723
        %v1814 = vmax.f32 %v1686, %v1726
        %v1815 = vmax.f32 %v1687, %v1729
        %v1816 = vmax.f32 %v1688, %v1732
        %v1817 = vmax.f32 %v1689, %v1735
        %v1818 = vmax.f32 %v1690, %v1738
        %v1819 = vmax.f32 %v1691, %v1741
        %v1820 = vmax.f32 %v1692, %v1744
        %v1821 = vmax.f32 %v1693, %v1747
        %v1822 = vmax.f32 %v1694, %v1750
        %v1823 = vmax.f32 %v1695, %v1753
        %v1824 = vmax.f32 %v1696, %v1756
        %v1825 = vmax.f32 %v1697, %v1759
        %v1826 = vmax.f32 %v1698, %v1762
        %v1827 = vmax.f32 %v1699, %v1765
        %v1828 = vmax.f32 %v1700, %v1768
        %v1829 = vmax.f32 %v1701, %v1771
        %v1830 = vmax.f32 %v1702, %v1774
        %v1831 = vmax.f32 %v1703, %v1777
        %v1832 = vmax.f32 %v1704, %v1780
        %v1833 = vmax.f32 %v1705, %v1783
        %v1834 = vmax.f32 %v1706, %v1786
        %v1835 = vmax.f32 %v1707, %v1789
        %v1836 = vmax.f32 %v1708, %v1792
        %v1837 = vmax.f32 %v1709, %v1795
        %v1838 = vmax.f32 %v1710, %v1798
        %v1839 = vmax.f32 %v1711, %v1801
        %v1840 = vmax.f32 %v1712, %v1804
        %v1841 = vmax.f32 %v1713, %v1807
        %v1842 = vmax.f32 %v1714, %v1810
        %v1843 = vsub.f32 %v1683, %v1811
        %v1844 = vsub.f32 %v1684, %v1812
        %v1845 = vsub.f32 %v1685, %v1813
        %v1846 = vsub.f32 %v1686, %v1814
        %v1847 = vsub.f32 %v1687, %v1815
        %v1848 = vsub.f32 %v1688, %v1816
        %v1849 = vsub.f32 %v1689, %v1817
        %v1850 = vsub.f32 %v1690, %v1818
        %v1851 = vsub.f32 %v1691, %v1819
        %v1852 = vsub.f32 %v1692, %v1820
        %v1853 = vsub.f32 %v1693, %v1821
        %v1854 = vsub.f32 %v1694, %v1822
        %v1855 = vsub.f32 %v1695, %v1823
        %v1856 = vsub.f32 %v1696, %v1824
        %v1857 = vsub.f32 %v1697, %v1825
        %v1858 = vsub.f32 %v1698, %v1826
        %v1859 = vsub.f32 %v1699, %v1827
        %v1860 = vsub.f32 %v1700, %v1828
        %v1861 = vsub.f32 %v1701, %v1829
        %v1862 = vsub.f32 %v1702, %v1830
        %v1863 = vsub.f32 %v1703, %v1831
        %v1864 = vsub.f32 %v1704, %v1832
        %v1865 = vsub.f32 %v1705, %v1833
        %v1866 = vsub.f32 %v1706, %v1834
        %v1867 = vsub.f32 %v1707, %v1835
        %v1868 = vsub.f32 %v1708, %v1836
        %v1869 = vsub.f32 %v1709, %v1837
        %v1870 = vsub.f32 %v1710, %v1838
        %v1871 = vsub.f32 %v1711, %v1839
        %v1872 = vsub.f32 %v1712, %v1840
        %v1873 = vsub.f32 %v1713, %v1841
        %v1874 = vsub.f32 %v1714, %v1842
        %v1875 = vmul.f32 %v1843, 1.442695
        %v1876 = vpow.pop %v1875
        %v1877 = vmul.f32 %v1844, 1.442695
        %v1878 = vpow.pop %v1877
        %v1879 = vmul.f32 %v1845, 1.442695
        %v1880 = vpow.pop %v1879
        %v1881 = vmul.f32 %v1846, 1.442695
        %v1882 = vpow.pop %v1881
        %v1883 = vmul.f32 %v1847, 1.442695
        %v1884 = vpow.pop %v1883
        %v1885 = vmul.f32 %v1848, 1.442695
        %v1886 = vpow.pop %v1885
        %v1887 = vmul.f32 %v1849, 1.442695
        %v1888 = vpow.pop %v1887
        %v1889 = vmul.f32 %v1850, 1.442695
        %v1890 = vpow.pop %v1889
        %v1891 = vmul.f32 %v1851, 1.442695
        %v1892 = vpow.pop %v1891
        %v1893 = vmul.f32 %v1852, 1.442695
        %v1894 = vpow.pop %v1893
        %v1895 = vmul.f32 %v1853, 1.442695
        %v1896 = vpow.pop %v1895
        %v1897 = vmul.f32 %v1854, 1.442695
        %v1898 = vpow.pop %v1897
        %v1899 = vmul.f32 %v1855, 1.442695
        %v1900 = vpow.pop %v1899
        %v1901 = vmul.f32 %v1856, 1.442695
        %v1902 = vpow.pop %v1901
        %v1903 = vmul.f32 %v1857, 1.442695
        %v1904 = vpow.pop %v1903
        %v1905 = vmul.f32 %v1858, 1.442695
        %v1906 = vpow.pop %v1905
        %v1907 = vmul.f32 %v1859, 1.442695
        %v1908 = vpow.pop %v1907
        %v1909 = vmul.f32 %v1860, 1.442695
        %v1910 = vpow.pop %v1909
        %v1911 = vmul.f32 %v1861, 1.442695
        %v1912 = vpow.pop %v1911
        %v1913 = vmul.f32 %v1862, 1.442695
        %v1914 = vpow.pop %v1913
        %v1915 = vmul.f32 %v1863, 1.442695
        %v1916 = vpow.pop %v1915
        %v1917 = vmul.f32 %v1864, 1.442695
        %v1918 = vpow.pop %v1917
        %v1919 = vmul.f32 %v1865, 1.442695
        %v1920 = vpow.pop %v1919
        %v1921 = vmul.f32 %v1866, 1.442695
        %v1922 = vpow.pop %v1921
        %v1923 = vmul.f32 %v1867, 1.442695
        %v1924 = vpow.pop %v1923
        %v1925 = vmul.f32 %v1868, 1.442695
        %v1926 = vpow.pop %v1925
        %v1927 = vmul.f32 %v1869, 1.442695
        %v1928 = vpow.pop %v1927
        %v1929 = vmul.f32 %v1870, 1.442695
        %v1930 = vpow.pop %v1929
        %v1931 = vmul.f32 %v1871, 1.442695
        %v1932 = vpow.pop %v1931
        %v1933 = vmul.f32 %v1872, 1.442695
        %v1934 = vpow.pop %v1933
        %v1935 = vmul.f32 %v1873, 1.442695
        %v1936 = vpow.pop %v1935
        %v1937 = vmul.f32 %v1874, 1.442695
        %v1938 = vpow.pop %v1937
        %1940 = vset.pattern.permute.xlu0 0
        %1941 = vperm.xlu0 %1940, %v1811
        %v1942 = vpop.permute.xlu0 %1941
        %1945 = vset.pattern.permute.xlu0 0
        %1946 = vperm.xlu0 %1945, %v1812
        %v1947 = vpop.permute.xlu0 %1946
        %1950 = vset.pattern.permute.xlu0 0
        %1951 = vperm.xlu0 %1950, %v1813
        %v1952 = vpop.permute.xlu0 %1951
        %1955 = vset.pattern.permute.xlu0 0
        %1956 = vperm.xlu0 %1955, %v1814
        %v1957 = vpop.permute.xlu0 %1956
        %1960 = vset.pattern.permute.xlu0 0
        %1961 = vperm.xlu0 %1960, %v1815
        %v1962 = vpop.permute.xlu0 %1961
        %1965 = vset.pattern.permute.xlu0 0
        %1966 = vperm.xlu0 %1965, %v1816
        %v1967 = vpop.permute.xlu0 %1966
        %1970 = vset.pattern.permute.xlu0 0
        %1971 = vperm.xlu0 %1970, %v1817
        %v1972 = vpop.permute.xlu0 %1971
        %1975 = vset.pattern.permute.xlu0 0
        %1976 = vperm.xlu0 %1975, %v1818
        %v1977 = vpop.permute.xlu0 %1976
        %1980 = vset.pattern.permute.xlu0 0
        %1981 = vperm.xlu0 %1980, %v1819
        %v1982 = vpop.permute.xlu0 %1981
        %1985 = vset.pattern.permute.xlu0 0
        %1986 = vperm.xlu0 %1985, %v1820
        %v1987 = vpop.permute.xlu0 %1986
        %1990 = vset.pattern.permute.xlu0 0
        %1991 = vperm.xlu0 %1990, %v1821
        %v1992 = vpop.permute.xlu0 %1991
        %1995 = vset.pattern.permute.xlu0 0
        %1996 = vperm.xlu0 %1995, %v1822
        %v1997 = vpop.permute.xlu0 %1996
        %2000 = vset.pattern.permute.xlu0 0
        %2001 = vperm.xlu0 %2000, %v1823
        %v2002 = vpop.permute.xlu0 %2001
        %2005 = vset.pattern.permute.xlu0 0
        %2006 = vperm.xlu0 %2005, %v1824
        %v2007 = vpop.permute.xlu0 %2006
        %2010 = vset.pattern.permute.xlu0 0
        %2011 = vperm.xlu0 %2010, %v1825
        %v2012 = vpop.permute.xlu0 %2011
        %2015 = vset.pattern.permute.xlu0 0
        %2016 = vperm.xlu0 %2015, %v1826
        %v2017 = vpop.permute.xlu0 %2016
        %2020 = vset.pattern.permute.xlu0 0
        %2021 = vperm.xlu0 %2020, %v1827
        %v2022 = vpop.permute.xlu0 %2021
        %2025 = vset.pattern.permute.xlu0 0
        %2026 = vperm.xlu0 %2025, %v1828
        %v2027 = vpop.permute.xlu0 %2026
        %2030 = vset.pattern.permute.xlu0 0
        %2031 = vperm.xlu0 %2030, %v1829
        %v2032 = vpop.permute.xlu0 %2031
        %2035 = vset.pattern.permute.xlu0 0
        %2036 = vperm.xlu0 %2035, %v1830
        %v2037 = vpop.permute.xlu0 %2036
        %2040 = vset.pattern.permute.xlu0 0
        %2041 = vperm.xlu0 %2040, %v1831
        %v2042 = vpop.permute.xlu0 %2041
        %2045 = vset.pattern.permute.xlu0 0
        %2046 = vperm.xlu0 %2045, %v1832
        %v2047 = vpop.permute.xlu0 %2046
        %2050 = vset.pattern.permute.xlu0 0
        %2051 = vperm.xlu0 %2050, %v1833
        %v2052 = vpop.permute.xlu0 %2051
        %2055 = vset.pattern.permute.xlu0 0
        %2056 = vperm.xlu0 %2055, %v1834
        %v2057 = vpop.permute.xlu0 %2056
        %2060 = vset.pattern.permute.xlu0 0
        %2061 = vperm.xlu0 %2060, %v1835
        %v2062 = vpop.permute.xlu0 %2061
        %2065 = vset.pattern.permute.xlu0 0
        %2066 = vperm.xlu0 %2065, %v1836
        %v2067 = vpop.permute.xlu0 %2066
        %2070 = vset.pattern.permute.xlu0 0
        %2071 = vperm.xlu0 %2070, %v1837
        %v2072 = vpop.permute.xlu0 %2071
        %2075 = vset.pattern.permute.xlu0 0
        %2076 = vperm.xlu0 %2075, %v1838
        %v2077 = vpop.permute.xlu0 %2076
        %2080 = vset.pattern.permute.xlu0 0
        %2081 = vperm.xlu0 %2080, %v1839
        %v2082 = vpop.permute.xlu0 %2081
        %2085 = vset.pattern.permute.xlu0 0
        %2086 = vperm.xlu0 %2085, %v1840
        %v2087 = vpop.permute.xlu0 %2086
        %2090 = vset.pattern.permute.xlu0 0
        %2091 = vperm.xlu0 %2090, %v1841
        %v2092 = vpop.permute.xlu0 %2091
        %2095 = vset.pattern.permute.xlu0 0
        %2096 = vperm.xlu0 %2095, %v1842
        %v2097 = vpop.permute.xlu0 %2096
        %v2099 = vsub.f32 %v1525, %v1942
        %v2100 = vsub.f32 %v1527, %v1942
        %v2101 = vsub.f32 %v1529, %v1947
        %v2102 = vsub.f32 %v1531, %v1947
        %v2103 = vsub.f32 %v1535, %v1952
        %v2104 = vsub.f32 %v1537, %v1952
        %v2105 = vsub.f32 %v1539, %v1957
        %v2106 = vsub.f32 %v1541, %v1957
        %v2107 = vsub.f32 %v1545, %v1962
        %v2108 = vsub.f32 %v1547, %v1962
        %v2109 = vsub.f32 %v1549, %v1967
        %v2110 = vsub.f32 %v1551, %v1967
        %v2111 = vsub.f32 %v1555, %v1972
        %v2112 = vsub.f32 %v1557, %v1972
        %v2113 = vsub.f32 %v1559, %v1977
        %v2114 = vsub.f32 %v1561, %v1977
        %v2115 = vsub.f32 %v1565, %v1982
        %v2116 = vsub.f32 %v1567, %v1982
        %v2117 = vsub.f32 %v1569, %v1987
        %v2118 = vsub.f32 %v1571, %v1987
        %v2119 = vsub.f32 %v1575, %v1992
        %v2120 = vsub.f32 %v1577, %v1992
        %v2121 = vsub.f32 %v1579, %v1997
        %v2122 = vsub.f32 %v1581, %v1997
        %v2123 = vsub.f32 %v1585, %v2002
        %v2124 = vsub.f32 %v1587, %v2002
        %v2125 = vsub.f32 %v1589, %v2007
        %v2126 = vsub.f32 %v1591, %v2007
        %v2127 = vsub.f32 %v1595, %v2012
        %v2128 = vsub.f32 %v1597, %v2012
        %v2129 = vsub.f32 %v1599, %v2017
        %v2130 = vsub.f32 %v1601, %v2017
        %v2131 = vsub.f32 %v1605, %v2022
        %v2132 = vsub.f32 %v1607, %v2022
        %v2133 = vsub.f32 %v1609, %v2027
        %v2134 = vsub.f32 %v1611, %v2027
        %v2135 = vsub.f32 %v1615, %v2032
        %v2136 = vsub.f32 %v1617, %v2032
        %v2137 = vsub.f32 %v1619, %v2037
        %v2138 = vsub.f32 %v1621, %v2037
        %v2139 = vsub.f32 %v1625, %v2042
        %v2140 = vsub.f32 %v1627, %v2042
        %v2141 = vsub.f32 %v1629, %v2047
        %v2142 = vsub.f32 %v1631, %v2047
        %v2143 = vsub.f32 %v1635, %v2052
        %v2144 = vsub.f32 %v1637, %v2052
        %v2145 = vsub.f32 %v1639, %v2057
        %v2146 = vsub.f32 %v1641, %v2057
        %v2147 = vsub.f32 %v1645, %v2062
        %v2148 = vsub.f32 %v1647, %v2062
        %v2149 = vsub.f32 %v1649, %v2067
        %v2150 = vsub.f32 %v1651, %v2067
        %v2151 = vsub.f32 %v1655, %v2072
        %v2152 = vsub.f32 %v1657, %v2072
        %v2153 = vsub.f32 %v1659, %v2077
        %v2154 = vsub.f32 %v1661, %v2077
        %v2155 = vsub.f32 %v1665, %v2082
        %v2156 = vsub.f32 %v1667, %v2082
        %v2157 = vsub.f32 %v1669, %v2087
        %v2158 = vsub.f32 %v1671, %v2087
        %v2159 = vsub.f32 %v1675, %v2092
        %v2160 = vsub.f32 %v1677, %v2092
        %v2161 = vsub.f32 %v1679, %v2097
        %v2162 = vsub.f32 %v1681, %v2097
        %v2163 = vmul.f32 %v2099, 1.442695
        %v2164 = vpow.pop %v2163
        %v2165 = vmul.f32 %v2100, 1.442695
        %v2166 = vpow.pop %v2165
        %v2167 = vmul.f32 %v2101, 1.442695
        %v2168 = vpow.pop %v2167
        %v2169 = vmul.f32 %v2102, 1.442695
        %v2170 = vpow.pop %v2169
        %v2171 = vmul.f32 %v2103, 1.442695
        %v2172 = vpow.pop %v2171
        %v2173 = vmul.f32 %v2104, 1.442695
        %v2174 = vpow.pop %v2173
        %v2175 = vmul.f32 %v2105, 1.442695
        %v2176 = vpow.pop %v2175
        %v2177 = vmul.f32 %v2106, 1.442695
        %v2178 = vpow.pop %v2177
        %v2179 = vmul.f32 %v2107, 1.442695
        %v2180 = vpow.pop %v2179
        %v2181 = vmul.f32 %v2108, 1.442695
        %v2182 = vpow.pop %v2181
        %v2183 = vmul.f32 %v2109, 1.442695
        %v2184 = vpow.pop %v2183
        %v2185 = vmul.f32 %v2110, 1.442695
        %v2186 = vpow.pop %v2185
        %v2187 = vmul.f32 %v2111, 1.442695
        %v2188 = vpow.pop %v2187
        %v2189 = vmul.f32 %v2112, 1.442695
        %v2190 = vpow.pop %v2189
        %v2191 = vmul.f32 %v2113, 1.442695
        %v2192 = vpow.pop %v2191
        %v2193 = vmul.f32 %v2114, 1.442695
        %v2194 = vpow.pop %v2193
        %v2195 = vmul.f32 %v2115, 1.442695
        %v2196 = vpow.pop %v2195
        %v2197 = vmul.f32 %v2116, 1.442695
        %v2198 = vpow.pop %v2197
        %v2199 = vmul.f32 %v2117, 1.442695
        %v2200 = vpow.pop %v2199
        %v2201 = vmul.f32 %v2118, 1.442695
        %v2202 = vpow.pop %v2201
        %v2203 = vmul.f32 %v2119, 1.442695
        %v2204 = vpow.pop %v2203
        %v2205 = vmul.f32 %v2120, 1.442695
        %v2206 = vpow.pop %v2205
        %v2207 = vmul.f32 %v2121, 1.442695
        %v2208 = vpow.pop %v2207
        %v2209 = vmul.f32 %v2122, 1.442695
        %v2210 = vpow.pop %v2209
        %v2211 = vmul.f32 %v2123, 1.442695
        %v2212 = vpow.pop %v2211
        %v2213 = vmul.f32 %v2124, 1.442695
        %v2214 = vpow.pop %v2213
        %v2215 = vmul.f32 %v2125, 1.442695
        %v2216 = vpow.pop %v2215
        %v2217 = vmul.f32 %v2126, 1.442695
        %v2218 = vpow.pop %v2217
        %v2219 = vmul.f32 %v2127, 1.442695
        %v2220 = vpow.pop %v2219
        %v2221 = vmul.f32 %v2128, 1.442695
        %v2222 = vpow.pop %v2221
        %v2223 = vmul.f32 %v2129, 1.442695
        %v2224 = vpow.pop %v2223
        %v2225 = vmul.f32 %v2130, 1.442695
        %v2226 = vpow.pop %v2225
        %v2227 = vmul.f32 %v2131, 1.442695
        %v2228 = vpow.pop %v2227
        %v2229 = vmul.f32 %v2132, 1.442695
        %v2230 = vpow.pop %v2229
        %v2231 = vmul.f32 %v2133, 1.442695
        %v2232 = vpow.pop %v2231
        %v2233 = vmul.f32 %v2134, 1.442695
        %v2234 = vpow.pop %v2233
        %v2235 = vmul.f32 %v2135, 1.442695
        %v2236 = vpow.pop %v2235
        %v2237 = vmul.f32 %v2136, 1.442695
        %v2238 = vpow.pop %v2237
        %v2239 = vmul.f32 %v2137, 1.442695
        %v2240 = vpow.pop %v2239
        %v2241 = vmul.f32 %v2138, 1.442695
        %v2242 = vpow.pop %v2241
        %v2243 = vmul.f32 %v2139, 1.442695
        %v2244 = vpow.pop %v2243
        %v2245 = vmul.f32 %v2140, 1.442695
        %v2246 = vpow.pop %v2245
        %v2247 = vmul.f32 %v2141, 1.442695
        %v2248 = vpow.pop %v2247
        %v2249 = vmul.f32 %v2142, 1.442695
        %v2250 = vpow.pop %v2249
        %v2251 = vmul.f32 %v2143, 1.442695
        %v2252 = vpow.pop %v2251
        %v2253 = vmul.f32 %v2144, 1.442695
        %v2254 = vpow.pop %v2253
        %v2255 = vmul.f32 %v2145, 1.442695
        %v2256 = vpow.pop %v2255
        %v2257 = vmul.f32 %v2146, 1.442695
        %v2258 = vpow.pop %v2257
        %v2259 = vmul.f32 %v2147, 1.442695
        %v2260 = vpow.pop %v2259
        %v2261 = vmul.f32 %v2148, 1.442695
        %v2262 = vpow.pop %v2261
        %v2263 = vmul.f32 %v2149, 1.442695
        %v2264 = vpow.pop %v2263
        %v2265 = vmul.f32 %v2150, 1.442695
        %v2266 = vpow.pop %v2265
        %v2267 = vmul.f32 %v2151, 1.442695
        %v2268 = vpow.pop %v2267
        %v2269 = vmul.f32 %v2152, 1.442695
        %v2270 = vpow.pop %v2269
        %v2271 = vmul.f32 %v2153, 1.442695
        %v2272 = vpow.pop %v2271
        %v2273 = vmul.f32 %v2154, 1.442695
        %v2274 = vpow.pop %v2273
        %v2275 = vmul.f32 %v2155, 1.442695
        %v2276 = vpow.pop %v2275
        %v2277 = vmul.f32 %v2156, 1.442695
        %v2278 = vpow.pop %v2277
        %v2279 = vmul.f32 %v2157, 1.442695
        %v2280 = vpow.pop %v2279
        %v2281 = vmul.f32 %v2158, 1.442695
        %v2282 = vpow.pop %v2281
        %v2283 = vmul.f32 %v2159, 1.442695
        %v2284 = vpow.pop %v2283
        %v2285 = vmul.f32 %v2160, 1.442695
        %v2286 = vpow.pop %v2285
        %v2287 = vmul.f32 %v2161, 1.442695
        %v2288 = vpow.pop %v2287
        %v2289 = vmul.f32 %v2162, 1.442695
        %v2290 = vpow.pop %v2289
        %v2291 = vld [vmem:[#allocation4] sm:$0xff]
        %v2292 = vld [vmem:[#allocation4 + $0x8] sm:$0xff]
        %v2293 = vld [vmem:[#allocation4 + $0x10] sm:$0xff]
        %v2294 = vld [vmem:[#allocation4 + $0x18] sm:$0xff]
        %v2295 = vld [vmem:[#allocation4 + $0x20] sm:$0xff]
        %v2296 = vld [vmem:[#allocation4 + $0x28] sm:$0xff]
        %v2297 = vld [vmem:[#allocation4 + $0x30] sm:$0xff]
        %v2298 = vld [vmem:[#allocation4 + $0x38] sm:$0xff]
        %v2299 = vld [vmem:[#allocation4 + $0x40] sm:$0xff]
        %v2300 = vld [vmem:[#allocation4 + $0x48] sm:$0xff]
        %v2301 = vld [vmem:[#allocation4 + $0x50] sm:$0xff]
        %v2302 = vld [vmem:[#allocation4 + $0x58] sm:$0xff]
        %v2303 = vld [vmem:[#allocation4 + $0x60] sm:$0xff]
        %v2304 = vld [vmem:[#allocation4 + $0x68] sm:$0xff]
        %v2305 = vld [vmem:[#allocation4 + $0x70] sm:$0xff]
        %v2306 = vld [vmem:[#allocation4 + $0x78] sm:$0xff]
        %v2307 = vld [vmem:[#allocation4 + $0x80] sm:$0xff]
        %v2308 = vld [vmem:[#allocation4 + $0x88] sm:$0xff]
        %v2309 = vld [vmem:[#allocation4 + $0x90] sm:$0xff]
        %v2310 = vld [vmem:[#allocation4 + $0x98] sm:$0xff]
        %v2311 = vld [vmem:[#allocation4 + $0xa0] sm:$0xff]
        %v2312 = vld [vmem:[#allocation4 + $0xa8] sm:$0xff]
        %v2313 = vld [vmem:[#allocation4 + $0xb0] sm:$0xff]
        %v2314 = vld [vmem:[#allocation4 + $0xb8] sm:$0xff]
        %v2315 = vld [vmem:[#allocation4 + $0xc0] sm:$0xff]
        %v2316 = vld [vmem:[#allocation4 + $0xc8] sm:$0xff]
        %v2317 = vld [vmem:[#allocation4 + $0xd0] sm:$0xff]
        %v2318 = vld [vmem:[#allocation4 + $0xd8] sm:$0xff]
        %v2319 = vld [vmem:[#allocation4 + $0xe0] sm:$0xff]
        %v2320 = vld [vmem:[#allocation4 + $0xe8] sm:$0xff]
        %v2321 = vld [vmem:[#allocation4 + $0xf0] sm:$0xff]
        %v2322 = vld [vmem:[#allocation4 + $0xf8] sm:$0xff]
        %v2323 = vmul.f32 %v1876, %v2291
        %v2324 = vmul.f32 %v1878, %v2292
        %v2325 = vmul.f32 %v1880, %v2293
        %v2326 = vmul.f32 %v1882, %v2294
        %v2327 = vmul.f32 %v1884, %v2295
        %v2328 = vmul.f32 %v1886, %v2296
        %v2329 = vmul.f32 %v1888, %v2297
        %v2330 = vmul.f32 %v1890, %v2298
        %v2331 = vmul.f32 %v1892, %v2299
        %v2332 = vmul.f32 %v1894, %v2300
        %v2333 = vmul.f32 %v1896, %v2301
        %v2334 = vmul.f32 %v1898, %v2302
        %v2335 = vmul.f32 %v1900, %v2303
        %v2336 = vmul.f32 %v1902, %v2304
        %v2337 = vmul.f32 %v1904, %v2305
        %v2338 = vmul.f32 %v1906, %v2306
        %v2339 = vmul.f32 %v1908, %v2307
        %v2340 = vmul.f32 %v1910, %v2308
        %v2341 = vmul.f32 %v1912, %v2309
        %v2342 = vmul.f32 %v1914, %v2310
        %v2343 = vmul.f32 %v1916, %v2311
        %v2344 = vmul.f32 %v1918, %v2312
        %v2345 = vmul.f32 %v1920, %v2313
        %v2346 = vmul.f32 %v1922, %v2314
        %v2347 = vmul.f32 %v1924, %v2315
        %v2348 = vmul.f32 %v1926, %v2316
        %v2349 = vmul.f32 %v1928, %v2317
        %v2350 = vmul.f32 %v1930, %v2318
        %v2351 = vmul.f32 %v1932, %v2319
        %v2352 = vmul.f32 %v1934, %v2320
        %v2353 = vmul.f32 %v1936, %v2321
        %v2354 = vmul.f32 %v1938, %v2322
        %v2355 = vadd.f32 %v2164, %v2166
        %2356 = vadd.xlane.f32.xlu0 %v2355
        %v2357 = vpop.xlane.xlu0 %2356
        %v2358 = vadd.f32 %v2168, %v2170
        %2359 = vadd.xlane.f32.xlu0 %v2358
        %v2360 = vpop.xlane.xlu0 %2359
        %v2361 = vadd.f32 %v2172, %v2174
        %2362 = vadd.xlane.f32.xlu0 %v2361
        %v2363 = vpop.xlane.xlu0 %2362
        %v2364 = vadd.f32 %v2176, %v2178
        %2365 = vadd.xlane.f32.xlu0 %v2364
        %v2366 = vpop.xlane.xlu0 %2365
        %v2367 = vadd.f32 %v2180, %v2182
        %2368 = vadd.xlane.f32.xlu0 %v2367
        %v2369 = vpop.xlane.xlu0 %2368
        %v2370 = vadd.f32 %v2184, %v2186
        %2371 = vadd.xlane.f32.xlu0 %v2370
        %v2372 = vpop.xlane.xlu0 %2371
        %v2373 = vadd.f32 %v2188, %v2190
        %2374 = vadd.xlane.f32.xlu0 %v2373
        %v2375 = vpop.xlane.xlu0 %2374
        %v2376 = vadd.f32 %v2192, %v2194
        %2377 = vadd.xlane.f32.xlu0 %v2376
        %v2378 = vpop.xlane.xlu0 %2377
        %v2379 = vadd.f32 %v2196, %v2198
        %2380 = vadd.xlane.f32.xlu0 %v2379
        %v2381 = vpop.xlane.xlu0 %2380
        %v2382 = vadd.f32 %v2200, %v2202
        %2383 = vadd.xlane.f32.xlu0 %v2382
        %v2384 = vpop.xlane.xlu0 %2383
        %v2385 = vadd.f32 %v2204, %v2206
        %2386 = vadd.xlane.f32.xlu0 %v2385
        %v2387 = vpop.xlane.xlu0 %2386
        %v2388 = vadd.f32 %v2208, %v2210
        %2389 = vadd.xlane.f32.xlu0 %v2388
        %v2390 = vpop.xlane.xlu0 %2389
        %v2391 = vadd.f32 %v2212, %v2214
        %2392 = vadd.xlane.f32.xlu0 %v2391
        %v2393 = vpop.xlane.xlu0 %2392
        %v2394 = vadd.f32 %v2216, %v2218
        %2395 = vadd.xlane.f32.xlu0 %v2394
        %v2396 = vpop.xlane.xlu0 %2395
        %v2397 = vadd.f32 %v2220, %v2222
        %2398 = vadd.xlane.f32.xlu0 %v2397
        %v2399 = vpop.xlane.xlu0 %2398
        %v2400 = vadd.f32 %v2224, %v2226
        %2401 = vadd.xlane.f32.xlu0 %v2400
        %v2402 = vpop.xlane.xlu0 %2401
        %v2403 = vadd.f32 %v2228, %v2230
        %2404 = vadd.xlane.f32.xlu0 %v2403
        %v2405 = vpop.xlane.xlu0 %2404
        %v2406 = vadd.f32 %v2232, %v2234
        %2407 = vadd.xlane.f32.xlu0 %v2406
        %v2408 = vpop.xlane.xlu0 %2407
        %v2409 = vadd.f32 %v2236, %v2238
        %2410 = vadd.xlane.f32.xlu0 %v2409
        %v2411 = vpop.xlane.xlu0 %2410
        %v2412 = vadd.f32 %v2240, %v2242
        %2413 = vadd.xlane.f32.xlu0 %v2412
        %v2414 = vpop.xlane.xlu0 %2413
        %v2415 = vadd.f32 %v2244, %v2246
        %2416 = vadd.xlane.f32.xlu0 %v2415
        %v2417 = vpop.xlane.xlu0 %2416
        %v2418 = vadd.f32 %v2248, %v2250
        %2419 = vadd.xlane.f32.xlu0 %v2418
        %v2420 = vpop.xlane.xlu0 %2419
        %v2421 = vadd.f32 %v2252, %v2254
        %2422 = vadd.xlane.f32.xlu0 %v2421
        %v2423 = vpop.xlane.xlu0 %2422
        %v2424 = vadd.f32 %v2256, %v2258
        %2425 = vadd.xlane.f32.xlu0 %v2424
        %v2426 = vpop.xlane.xlu0 %2425
        %v2427 = vadd.f32 %v2260, %v2262
        %2428 = vadd.xlane.f32.xlu0 %v2427
        %v2429 = vpop.xlane.xlu0 %2428
        %v2430 = vadd.f32 %v2264, %v2266
        %2431 = vadd.xlane.f32.xlu0 %v2430
        %v2432 = vpop.xlane.xlu0 %2431
        %v2433 = vadd.f32 %v2268, %v2270
        %2434 = vadd.xlane.f32.xlu0 %v2433
        %v2435 = vpop.xlane.xlu0 %2434
        %v2436 = vadd.f32 %v2272, %v2274
        %2437 = vadd.xlane.f32.xlu0 %v2436
        %v2438 = vpop.xlane.xlu0 %2437
        %v2439 = vadd.f32 %v2276, %v2278
        %2440 = vadd.xlane.f32.xlu0 %v2439
        %v2441 = vpop.xlane.xlu0 %2440
        %v2442 = vadd.f32 %v2280, %v2282
        %2443 = vadd.xlane.f32.xlu0 %v2442
        %v2444 = vpop.xlane.xlu0 %2443
        %v2445 = vadd.f32 %v2284, %v2286
        %2446 = vadd.xlane.f32.xlu0 %v2445
        %v2447 = vpop.xlane.xlu0 %2446
        %v2448 = vadd.f32 %v2288, %v2290
        %2449 = vadd.xlane.f32.xlu0 %v2448
        %v2450 = vpop.xlane.xlu0 %2449
        %v2451 = vadd.f32 %v2323, %v2357
        %v2452 = vadd.f32 %v2324, %v2360
        %v2453 = vadd.f32 %v2325, %v2363
        %v2454 = vadd.f32 %v2326, %v2366
        %v2455 = vadd.f32 %v2327, %v2369
        %v2456 = vadd.f32 %v2328, %v2372
        %v2457 = vadd.f32 %v2329, %v2375
        %v2458 = vadd.f32 %v2330, %v2378
        %v2459 = vadd.f32 %v2331, %v2381
        %v2460 = vadd.f32 %v2332, %v2384
        %v2461 = vadd.f32 %v2333, %v2387
        %v2462 = vadd.f32 %v2334, %v2390
        %v2463 = vadd.f32 %v2335, %v2393
        %v2464 = vadd.f32 %v2336, %v2396
        %v2465 = vadd.f32 %v2337, %v2399
        %v2466 = vadd.f32 %v2338, %v2402
        %v2467 = vadd.f32 %v2339, %v2405
        %v2468 = vadd.f32 %v2340, %v2408
        %v2469 = vadd.f32 %v2341, %v2411
        %v2470 = vadd.f32 %v2342, %v2414
        %v2471 = vadd.f32 %v2343, %v2417
        %v2472 = vadd.f32 %v2344, %v2420
        %v2473 = vadd.f32 %v2345, %v2423
        %v2474 = vadd.f32 %v2346, %v2426
        %v2475 = vadd.f32 %v2347, %v2429
        %v2476 = vadd.f32 %v2348, %v2432
        %v2477 = vadd.f32 %v2349, %v2435
        %v2478 = vadd.f32 %v2350, %v2438
        %v2479 = vadd.f32 %v2351, %v2441
        %v2480 = vadd.f32 %v2352, %v2444
        %v2481 = vadd.f32 %v2353, %v2447
        %v2482 = vadd.f32 %v2354, %v2450
        %vm2483 = vcmask 7168
        %2484 = vst.msk [vmem:[#allocation4] sm:$0xff] %vm2483, %v2451
        %2485 = vst.msk [vmem:[#allocation4 + $0x8] sm:$0xff] %vm2483, %v2452
        %2486 = vst.msk [vmem:[#allocation4 + $0x10] sm:$0xff] %vm2483, %v2453
        %2487 = vst.msk [vmem:[#allocation4 + $0x18] sm:$0xff] %vm2483, %v2454
        %2488 = vst.msk [vmem:[#allocation4 + $0x20] sm:$0xff] %vm2483, %v2455
        %2489 = vst.msk [vmem:[#allocation4 + $0x28] sm:$0xff] %vm2483, %v2456
        %2490 = vst.msk [vmem:[#allocation4 + $0x30] sm:$0xff] %vm2483, %v2457
        %2491 = vst.msk [vmem:[#allocation4 + $0x38] sm:$0xff] %vm2483, %v2458
        %2492 = vst.msk [vmem:[#allocation4 + $0x40] sm:$0xff] %vm2483, %v2459
        %2493 = vst.msk [vmem:[#allocation4 + $0x48] sm:$0xff] %vm2483, %v2460
        %2494 = vst.msk [vmem:[#allocation4 + $0x50] sm:$0xff] %vm2483, %v2461
        %2495 = vst.msk [vmem:[#allocation4 + $0x58] sm:$0xff] %vm2483, %v2462
        %2496 = vst.msk [vmem:[#allocation4 + $0x60] sm:$0xff] %vm2483, %v2463
        %2497 = vst.msk [vmem:[#allocation4 + $0x68] sm:$0xff] %vm2483, %v2464
        %2498 = vst.msk [vmem:[#allocation4 + $0x70] sm:$0xff] %vm2483, %v2465
        %2499 = vst.msk [vmem:[#allocation4 + $0x78] sm:$0xff] %vm2483, %v2466
        %2500 = vst.msk [vmem:[#allocation4 + $0x80] sm:$0xff] %vm2483, %v2467
        %2501 = vst.msk [vmem:[#allocation4 + $0x88] sm:$0xff] %vm2483, %v2468
        %2502 = vst.msk [vmem:[#allocation4 + $0x90] sm:$0xff] %vm2483, %v2469
        %2503 = vst.msk [vmem:[#allocation4 + $0x98] sm:$0xff] %vm2483, %v2470
        %2504 = vst.msk [vmem:[#allocation4 + $0xa0] sm:$0xff] %vm2483, %v2471
        %2505 = vst.msk [vmem:[#allocation4 + $0xa8] sm:$0xff] %vm2483, %v2472
        %2506 = vst.msk [vmem:[#allocation4 + $0xb0] sm:$0xff] %vm2483, %v2473
        %2507 = vst.msk [vmem:[#allocation4 + $0xb8] sm:$0xff] %vm2483, %v2474
        %2508 = vst.msk [vmem:[#allocation4 + $0xc0] sm:$0xff] %vm2483, %v2475
        %2509 = vst.msk [vmem:[#allocation4 + $0xc8] sm:$0xff] %vm2483, %v2476
        %2510 = vst.msk [vmem:[#allocation4 + $0xd0] sm:$0xff] %vm2483, %v2477
        %2511 = vst.msk [vmem:[#allocation4 + $0xd8] sm:$0xff] %vm2483, %v2478
        %2512 = vst.msk [vmem:[#allocation4 + $0xe0] sm:$0xff] %vm2483, %v2479
        %2513 = vst.msk [vmem:[#allocation4 + $0xe8] sm:$0xff] %vm2483, %v2480
        %2514 = vst.msk [vmem:[#allocation4 + $0xf0] sm:$0xff] %vm2483, %v2481
        %2515 = vst.msk [vmem:[#allocation4 + $0xf8] sm:$0xff] %vm2483, %v2482
        %v2516 = vld [vmem:[#allocation5] sm:$0xff]
        %v2517 = vld [vmem:[#allocation5 + $0x8] sm:$0xff]
        %v2518 = vld [vmem:[#allocation5 + $0x10] sm:$0xff]
        %v2519 = vld [vmem:[#allocation5 + $0x18] sm:$0xff]
        %v2520 = vld [vmem:[#allocation5 + $0x20] sm:$0xff]
        %v2521 = vld [vmem:[#allocation5 + $0x28] sm:$0xff]
        %v2522 = vld [vmem:[#allocation5 + $0x30] sm:$0xff]
        %v2523 = vld [vmem:[#allocation5 + $0x38] sm:$0xff]
        %v2524 = vld [vmem:[#allocation5 + $0x40] sm:$0xff]
        %v2525 = vld [vmem:[#allocation5 + $0x48] sm:$0xff]
        %v2526 = vld [vmem:[#allocation5 + $0x50] sm:$0xff]
        %v2527 = vld [vmem:[#allocation5 + $0x58] sm:$0xff]
        %v2528 = vld [vmem:[#allocation5 + $0x60] sm:$0xff]
        %v2529 = vld [vmem:[#allocation5 + $0x68] sm:$0xff]
        %v2530 = vld [vmem:[#allocation5 + $0x70] sm:$0xff]
        %v2531 = vld [vmem:[#allocation5 + $0x78] sm:$0xff]
        %v2532 = vld [vmem:[#allocation5 + $0x80] sm:$0xff]
        %v2533 = vld [vmem:[#allocation5 + $0x88] sm:$0xff]
        %v2534 = vld [vmem:[#allocation5 + $0x90] sm:$0xff]
        %v2535 = vld [vmem:[#allocation5 + $0x98] sm:$0xff]
        %v2536 = vld [vmem:[#allocation5 + $0xa0] sm:$0xff]
        %v2537 = vld [vmem:[#allocation5 + $0xa8] sm:$0xff]
        %v2538 = vld [vmem:[#allocation5 + $0xb0] sm:$0xff]
        %v2539 = vld [vmem:[#allocation5 + $0xb8] sm:$0xff]
        %v2540 = vld [vmem:[#allocation5 + $0xc0] sm:$0xff]
        %v2541 = vld [vmem:[#allocation5 + $0xc8] sm:$0xff]
        %v2542 = vld [vmem:[#allocation5 + $0xd0] sm:$0xff]
        %v2543 = vld [vmem:[#allocation5 + $0xd8] sm:$0xff]
        %v2544 = vld [vmem:[#allocation5 + $0xe0] sm:$0xff]
        %v2545 = vld [vmem:[#allocation5 + $0xe8] sm:$0xff]
        %v2546 = vld [vmem:[#allocation5 + $0xf0] sm:$0xff]
        %v2547 = vld [vmem:[#allocation5 + $0xf8] sm:$0xff]
        %2549 = vset.pattern.permute.xlu0 0
        %2550 = vperm.xlu0 %2549, %v1876
        %v2551 = vpop.permute.xlu0 %2550
        %2554 = vset.pattern.permute.xlu0 0
        %2555 = vperm.xlu0 %2554, %v1878
        %v2556 = vpop.permute.xlu0 %2555
        %2559 = vset.pattern.permute.xlu0 0
        %2560 = vperm.xlu0 %2559, %v1880
        %v2561 = vpop.permute.xlu0 %2560
        %2564 = vset.pattern.permute.xlu0 0
        %2565 = vperm.xlu0 %2564, %v1882
        %v2566 = vpop.permute.xlu0 %2565
        %2569 = vset.pattern.permute.xlu0 0
        %2570 = vperm.xlu0 %2569, %v1884
        %v2571 = vpop.permute.xlu0 %2570
        %2574 = vset.pattern.permute.xlu0 0
        %2575 = vperm.xlu0 %2574, %v1886
        %v2576 = vpop.permute.xlu0 %2575
        %2579 = vset.pattern.permute.xlu0 0
        %2580 = vperm.xlu0 %2579, %v1888
        %v2581 = vpop.permute.xlu0 %2580
        %2584 = vset.pattern.permute.xlu0 0
        %2585 = vperm.xlu0 %2584, %v1890
        %v2586 = vpop.permute.xlu0 %2585
        %2589 = vset.pattern.permute.xlu0 0
        %2590 = vperm.xlu0 %2589, %v1892
        %v2591 = vpop.permute.xlu0 %2590
        %2594 = vset.pattern.permute.xlu0 0
        %2595 = vperm.xlu0 %2594, %v1894
        %v2596 = vpop.permute.xlu0 %2595
        %2599 = vset.pattern.permute.xlu0 0
        %2600 = vperm.xlu0 %2599, %v1896
        %v2601 = vpop.permute.xlu0 %2600
        %2604 = vset.pattern.permute.xlu0 0
        %2605 = vperm.xlu0 %2604, %v1898
        %v2606 = vpop.permute.xlu0 %2605
        %2609 = vset.pattern.permute.xlu0 0
        %2610 = vperm.xlu0 %2609, %v1900
        %v2611 = vpop.permute.xlu0 %2610
        %2614 = vset.pattern.permute.xlu0 0
        %2615 = vperm.xlu0 %2614, %v1902
        %v2616 = vpop.permute.xlu0 %2615
        %2619 = vset.pattern.permute.xlu0 0
        %2620 = vperm.xlu0 %2619, %v1904
        %v2621 = vpop.permute.xlu0 %2620
        %2624 = vset.pattern.permute.xlu0 0
        %2625 = vperm.xlu0 %2624, %v1906
        %v2626 = vpop.permute.xlu0 %2625
        %2629 = vset.pattern.permute.xlu0 0
        %2630 = vperm.xlu0 %2629, %v1908
        %v2631 = vpop.permute.xlu0 %2630
        %2634 = vset.pattern.permute.xlu0 0
        %2635 = vperm.xlu0 %2634, %v1910
        %v2636 = vpop.permute.xlu0 %2635
        %2639 = vset.pattern.permute.xlu0 0
        %2640 = vperm.xlu0 %2639, %v1912
        %v2641 = vpop.permute.xlu0 %2640
        %2644 = vset.pattern.permute.xlu0 0
        %2645 = vperm.xlu0 %2644, %v1914
        %v2646 = vpop.permute.xlu0 %2645
        %2649 = vset.pattern.permute.xlu0 0
        %2650 = vperm.xlu0 %2649, %v1916
        %v2651 = vpop.permute.xlu0 %2650
        %2654 = vset.pattern.permute.xlu0 0
        %2655 = vperm.xlu0 %2654, %v1918
        %v2656 = vpop.permute.xlu0 %2655
        %2659 = vset.pattern.permute.xlu0 0
        %2660 = vperm.xlu0 %2659, %v1920
        %v2661 = vpop.permute.xlu0 %2660
        %2664 = vset.pattern.permute.xlu0 0
        %2665 = vperm.xlu0 %2664, %v1922
        %v2666 = vpop.permute.xlu0 %2665
        %2669 = vset.pattern.permute.xlu0 0
        %2670 = vperm.xlu0 %2669, %v1924
        %v2671 = vpop.permute.xlu0 %2670
        %2674 = vset.pattern.permute.xlu0 0
        %2675 = vperm.xlu0 %2674, %v1926
        %v2676 = vpop.permute.xlu0 %2675
        %2679 = vset.pattern.permute.xlu0 0
        %2680 = vperm.xlu0 %2679, %v1928
        %v2681 = vpop.permute.xlu0 %2680
        %2684 = vset.pattern.permute.xlu0 0
        %2685 = vperm.xlu0 %2684, %v1930
        %v2686 = vpop.permute.xlu0 %2685
        %2689 = vset.pattern.permute.xlu0 0
        %2690 = vperm.xlu0 %2689, %v1932
        %v2691 = vpop.permute.xlu0 %2690
        %2694 = vset.pattern.permute.xlu0 0
        %2695 = vperm.xlu0 %2694, %v1934
        %v2696 = vpop.permute.xlu0 %2695
        %2699 = vset.pattern.permute.xlu0 0
        %2700 = vperm.xlu0 %2699, %v1936
        %v2701 = vpop.permute.xlu0 %2700
        %2704 = vset.pattern.permute.xlu0 0
        %2705 = vperm.xlu0 %2704, %v1938
        %v2706 = vpop.permute.xlu0 %2705
        %v2708 = vmul.f32 %v2551, %v2516
        %v2709 = vmul.f32 %v2556, %v2517
        %v2710 = vmul.f32 %v2561, %v2518
        %v2711 = vmul.f32 %v2566, %v2519
        %v2712 = vmul.f32 %v2571, %v2520
        %v2713 = vmul.f32 %v2576, %v2521
        %v2714 = vmul.f32 %v2581, %v2522
        %v2715 = vmul.f32 %v2586, %v2523
        %v2716 = vmul.f32 %v2591, %v2524
        %v2717 = vmul.f32 %v2596, %v2525
        %v2718 = vmul.f32 %v2601, %v2526
        %v2719 = vmul.f32 %v2606, %v2527
        %v2720 = vmul.f32 %v2611, %v2528
        %v2721 = vmul.f32 %v2616, %v2529
        %v2722 = vmul.f32 %v2621, %v2530
        %v2723 = vmul.f32 %v2626, %v2531
        %v2724 = vmul.f32 %v2631, %v2532
        %v2725 = vmul.f32 %v2636, %v2533
        %v2726 = vmul.f32 %v2641, %v2534
        %v2727 = vmul.f32 %v2646, %v2535
        %v2728 = vmul.f32 %v2651, %v2536
        %v2729 = vmul.f32 %v2656, %v2537
        %v2730 = vmul.f32 %v2661, %v2538
        %v2731 = vmul.f32 %v2666, %v2539
        %v2732 = vmul.f32 %v2671, %v2540
        %v2733 = vmul.f32 %v2676, %v2541
        %v2734 = vmul.f32 %v2681, %v2542
        %v2735 = vmul.f32 %v2686, %v2543
        %v2736 = vmul.f32 %v2691, %v2544
        %v2737 = vmul.f32 %v2696, %v2545
        %v2738 = vmul.f32 %v2701, %v2546
        %v2739 = vmul.f32 %v2706, %v2547
        %v2740 = vpack.c.bf16 %v2168, %v2164
        %v2741 = vpack.c.bf16 %v2170, %v2166
        %v2742 = vpack.c.bf16 %v2176, %v2172
        %v2743 = vpack.c.bf16 %v2178, %v2174
        %v2744 = vpack.c.bf16 %v2184, %v2180
        %v2745 = vpack.c.bf16 %v2186, %v2182
        %v2746 = vpack.c.bf16 %v2192, %v2188
        %v2747 = vpack.c.bf16 %v2194, %v2190
        %v2748 = vpack.c.bf16 %v2200, %v2196
        %v2749 = vpack.c.bf16 %v2202, %v2198
        %v2750 = vpack.c.bf16 %v2208, %v2204
        %v2751 = vpack.c.bf16 %v2210, %v2206
        %v2752 = vpack.c.bf16 %v2216, %v2212
        %v2753 = vpack.c.bf16 %v2218, %v2214
        %v2754 = vpack.c.bf16 %v2224, %v2220
        %v2755 = vpack.c.bf16 %v2226, %v2222
        %v2756 = vpack.c.bf16 %v2232, %v2228
        %v2757 = vpack.c.bf16 %v2234, %v2230
        %v2758 = vpack.c.bf16 %v2240, %v2236
        %v2759 = vpack.c.bf16 %v2242, %v2238
        %v2760 = vpack.c.bf16 %v2248, %v2244
        %v2761 = vpack.c.bf16 %v2250, %v2246
        %v2762 = vpack.c.bf16 %v2256, %v2252
        %v2763 = vpack.c.bf16 %v2258, %v2254
        %v2764 = vpack.c.bf16 %v2264, %v2260
        %v2765 = vpack.c.bf16 %v2266, %v2262
        %v2766 = vpack.c.bf16 %v2272, %v2268
        %v2767 = vpack.c.bf16 %v2274, %v2270
        %v2768 = vpack.c.bf16 %v2280, %v2276
        %v2769 = vpack.c.bf16 %v2282, %v2278
        %v2770 = vpack.c.bf16 %v2288, %v2284
        %v2771 = vpack.c.bf16 %v2290, %v2286
        %2772 = vmatprep.subr.bf16.mxu0 0
        %2773 = vmatpush1.bf16.msra.mxu0 %v1353
        %2774 = vmatprep.subr.bf16.mxu0 0
        %2775 = vmatpush1.bf16.msra.mxu0 %v1352
        %2776 = vmatprep.subr.bf16.mxu0 0
        %2777 = vmatpush1.bf16.msra.mxu0 %v1351
        %2778 = vmatprep.subr.bf16.mxu0 0
        %2779 = vmatpush1.bf16.msra.mxu0 %v1350
        %2780 = vmatprep.subr.bf16.mxu0 0
        %2781 = vmatpush1.bf16.msra.mxu0 %v1349
        %2782 = vmatprep.subr.bf16.mxu0 0
        %2783 = vmatpush1.bf16.msra.mxu0 %v1348
        %2784 = vmatprep.subr.bf16.mxu0 0
        %2785 = vmatpush1.bf16.msra.mxu0 %v1347
        %2786 = vmatprep.subr.bf16.mxu0 0
        %2787 = vmatpush1.bf16.msra.mxu0 %v1346
        %2788 = vmatprep.subr.bf16.mxu0 0
        %2789 = vmatpush2.bf16.msra.mxu0 %v1361
        %2790 = vmatprep.subr.bf16.mxu0 0
        %2791 = vmatpush2.bf16.msra.mxu0 %v1360
        %2792 = vmatprep.subr.bf16.mxu0 0
        %2793 = vmatpush2.bf16.msra.mxu0 %v1359
        %2794 = vmatprep.subr.bf16.mxu0 0
        %2795 = vmatpush2.bf16.msra.mxu0 %v1358
        %2796 = vmatprep.subr.bf16.mxu0 0
        %2797 = vmatpush2.bf16.msra.mxu0 %v1357
        %2798 = vmatprep.subr.bf16.mxu0 0
        %2799 = vmatpush2.bf16.msra.mxu0 %v1356
        %2800 = vmatprep.subr.bf16.mxu0 0
        %2801 = vmatpush2.bf16.msra.mxu0 %v1355
        %2802 = vmatprep.subr.bf16.mxu0 0
        %2803 = vmatpush2.bf16.msra.mxu0 %v1354
        %2804 = vmatprep.mubr.bf16.mxu0 %v2741
        %2805 = vmatmul.mubr.bf16.gmra.mxu0 %v2740
        %v2806 = vpop.f32.mrf.mxu0
        %v2807 = vadd.f32 0.0, %v2806
        %v2808 = vpop.f32.mrf.mxu0
        %v2809 = vpop.f32.mrf.mxu0
        %v2810 = vadd.f32 0.0, %v2809
        %v2811 = vpop.f32.mrf.mxu0
        %2812 = vmatprep.mubr.bf16.mxu0 %v2743
        %2813 = vmatmul.mubr.bf16.gmra.mxu0 %v2742
        %v2814 = vpop.f32.mrf.mxu0
        %v2815 = vadd.f32 0.0, %v2814
        %v2816 = vpop.f32.mrf.mxu0
        %v2817 = vpop.f32.mrf.mxu0
        %v2818 = vadd.f32 0.0, %v2817
        %v2819 = vpop.f32.mrf.mxu0
        %2820 = vmatprep.mubr.bf16.mxu0 %v2745
        %2821 = vmatmul.mubr.bf16.gmra.mxu0 %v2744
        %v2822 = vpop.f32.mrf.mxu0
        %v2823 = vadd.f32 0.0, %v2822
        %v2824 = vpop.f32.mrf.mxu0
        %v2825 = vpop.f32.mrf.mxu0
        %v2826 = vadd.f32 0.0, %v2825
        %v2827 = vpop.f32.mrf.mxu0
        %2828 = vmatprep.mubr.bf16.mxu0 %v2747
        %2829 = vmatmul.mubr.bf16.gmra.mxu0 %v2746
        %v2830 = vpop.f32.mrf.mxu0
        %v2831 = vadd.f32 0.0, %v2830
        %v2832 = vpop.f32.mrf.mxu0
        %v2833 = vpop.f32.mrf.mxu0
        %v2834 = vadd.f32 0.0, %v2833
        %v2835 = vpop.f32.mrf.mxu0
        %2836 = vmatprep.mubr.bf16.mxu0 %v2749
        %2837 = vmatmul.mubr.bf16.gmra.mxu0 %v2748
        %v2838 = vpop.f32.mrf.mxu0
        %v2839 = vadd.f32 0.0, %v2838
        %v2840 = vpop.f32.mrf.mxu0
        %v2841 = vpop.f32.mrf.mxu0
        %v2842 = vadd.f32 0.0, %v2841
        %v2843 = vpop.f32.mrf.mxu0
        %2844 = vmatprep.mubr.bf16.mxu0 %v2751
        %2845 = vmatmul.mubr.bf16.gmra.mxu0 %v2750
        %v2846 = vpop.f32.mrf.mxu0
        %v2847 = vadd.f32 0.0, %v2846
        %v2848 = vpop.f32.mrf.mxu0
        %v2849 = vpop.f32.mrf.mxu0
        %v2850 = vadd.f32 0.0, %v2849
        %v2851 = vpop.f32.mrf.mxu0
        %2852 = vmatprep.mubr.bf16.mxu0 %v2753
        %2853 = vmatmul.mubr.bf16.gmra.mxu0 %v2752
        %v2854 = vpop.f32.mrf.mxu0
        %v2855 = vadd.f32 0.0, %v2854
        %v2856 = vpop.f32.mrf.mxu0
        %v2857 = vpop.f32.mrf.mxu0
        %v2858 = vadd.f32 0.0, %v2857
        %v2859 = vpop.f32.mrf.mxu0
        %2860 = vmatprep.mubr.bf16.mxu0 %v2755
        %2861 = vmatmul.mubr.bf16.gmra.mxu0 %v2754
        %v2862 = vpop.f32.mrf.mxu0
        %v2863 = vadd.f32 0.0, %v2862
        %v2864 = vpop.f32.mrf.mxu0
        %v2865 = vpop.f32.mrf.mxu0
        %v2866 = vadd.f32 0.0, %v2865
        %v2867 = vpop.f32.mrf.mxu0
        %2868 = vmatprep.mubr.bf16.mxu0 %v2757
        %2869 = vmatmul.mubr.bf16.gmra.mxu0 %v2756
        %v2870 = vpop.f32.mrf.mxu0
        %v2871 = vadd.f32 0.0, %v2870
        %v2872 = vpop.f32.mrf.mxu0
        %v2873 = vpop.f32.mrf.mxu0
        %v2874 = vadd.f32 0.0, %v2873
        %v2875 = vpop.f32.mrf.mxu0
        %2876 = vmatprep.mubr.bf16.mxu0 %v2759
        %2877 = vmatmul.mubr.bf16.gmra.mxu0 %v2758
        %v2878 = vpop.f32.mrf.mxu0
        %v2879 = vadd.f32 0.0, %v2878
        %v2880 = vpop.f32.mrf.mxu0
        %v2881 = vpop.f32.mrf.mxu0
        %v2882 = vadd.f32 0.0, %v2881
        %v2883 = vpop.f32.mrf.mxu0
        %2884 = vmatprep.mubr.bf16.mxu0 %v2761
        %2885 = vmatmul.mubr.bf16.gmra.mxu0 %v2760
        %v2886 = vpop.f32.mrf.mxu0
        %v2887 = vadd.f32 0.0, %v2886
        %v2888 = vpop.f32.mrf.mxu0
        %v2889 = vpop.f32.mrf.mxu0
        %v2890 = vadd.f32 0.0, %v2889
        %v2891 = vpop.f32.mrf.mxu0
        %2892 = vmatprep.mubr.bf16.mxu0 %v2763
        %2893 = vmatmul.mubr.bf16.gmra.mxu0 %v2762
        %v2894 = vpop.f32.mrf.mxu0
        %v2895 = vadd.f32 0.0, %v2894
        %v2896 = vpop.f32.mrf.mxu0
        %v2897 = vpop.f32.mrf.mxu0
        %v2898 = vadd.f32 0.0, %v2897
        %v2899 = vpop.f32.mrf.mxu0
        %2900 = vmatprep.mubr.bf16.mxu0 %v2765
        %2901 = vmatmul.mubr.bf16.gmra.mxu0 %v2764
        %v2902 = vpop.f32.mrf.mxu0
        %v2903 = vadd.f32 0.0, %v2902
        %v2904 = vpop.f32.mrf.mxu0
        %v2905 = vpop.f32.mrf.mxu0
        %v2906 = vadd.f32 0.0, %v2905
        %v2907 = vpop.f32.mrf.mxu0
        %2908 = vmatprep.mubr.bf16.mxu0 %v2767
        %2909 = vmatmul.mubr.bf16.gmra.mxu0 %v2766
        %v2910 = vpop.f32.mrf.mxu0
        %v2911 = vadd.f32 0.0, %v2910
        %v2912 = vpop.f32.mrf.mxu0
        %v2913 = vpop.f32.mrf.mxu0
        %v2914 = vadd.f32 0.0, %v2913
        %v2915 = vpop.f32.mrf.mxu0
        %2916 = vmatprep.mubr.bf16.mxu0 %v2769
        %2917 = vmatmul.mubr.bf16.gmra.mxu0 %v2768
        %v2918 = vpop.f32.mrf.mxu0
        %v2919 = vadd.f32 0.0, %v2918
        %v2920 = vpop.f32.mrf.mxu0
        %v2921 = vpop.f32.mrf.mxu0
        %v2922 = vadd.f32 0.0, %v2921
        %v2923 = vpop.f32.mrf.mxu0
        %2924 = vmatprep.mubr.bf16.mxu0 %v2771
        %2925 = vmatmul.mubr.bf16.gmra.mxu0 %v2770
        %v2926 = vpop.f32.mrf.mxu0
        %v2927 = vadd.f32 0.0, %v2926
        %v2928 = vpop.f32.mrf.mxu0
        %v2929 = vpop.f32.mrf.mxu0
        %v2930 = vadd.f32 0.0, %v2929
        %v2931 = vpop.f32.mrf.mxu0
        %2932 = vdwg.mxu0
        %v2933 = vadd.f32 %v2708, %v2807
        %v2934 = vadd.f32 %v2709, %v2810
        %v2935 = vadd.f32 %v2710, %v2815
        %v2936 = vadd.f32 %v2711, %v2818
        %v2937 = vadd.f32 %v2712, %v2823
        %v2938 = vadd.f32 %v2713, %v2826
        %v2939 = vadd.f32 %v2714, %v2831
        %v2940 = vadd.f32 %v2715, %v2834
        %v2941 = vadd.f32 %v2716, %v2839
        %v2942 = vadd.f32 %v2717, %v2842
        %v2943 = vadd.f32 %v2718, %v2847
        %v2944 = vadd.f32 %v2719, %v2850
        %v2945 = vadd.f32 %v2720, %v2855
        %v2946 = vadd.f32 %v2721, %v2858
        %v2947 = vadd.f32 %v2722, %v2863
        %v2948 = vadd.f32 %v2723, %v2866
        %v2949 = vadd.f32 %v2724, %v2871
        %v2950 = vadd.f32 %v2725, %v2874
        %v2951 = vadd.f32 %v2726, %v2879
        %v2952 = vadd.f32 %v2727, %v2882
        %v2953 = vadd.f32 %v2728, %v2887
        %v2954 = vadd.f32 %v2729, %v2890
        %v2955 = vadd.f32 %v2730, %v2895
        %v2956 = vadd.f32 %v2731, %v2898
        %v2957 = vadd.f32 %v2732, %v2903
        %v2958 = vadd.f32 %v2733, %v2906
        %v2959 = vadd.f32 %v2734, %v2911
        %v2960 = vadd.f32 %v2735, %v2914
        %v2961 = vadd.f32 %v2736, %v2919
        %v2962 = vadd.f32 %v2737, %v2922
        %v2963 = vadd.f32 %v2738, %v2927
        %v2964 = vadd.f32 %v2739, %v2930
        %2965 = vst [vmem:[#allocation5] sm:$0xff] %v2933
        %2966 = vst [vmem:[#allocation5 + $0x8] sm:$0xff] %v2934
        %2967 = vst [vmem:[#allocation5 + $0x10] sm:$0xff] %v2935
        %2968 = vst [vmem:[#allocation5 + $0x18] sm:$0xff] %v2936
        %2969 = vst [vmem:[#allocation5 + $0x20] sm:$0xff] %v2937
        %2970 = vst [vmem:[#allocation5 + $0x28] sm:$0xff] %v2938
        %2971 = vst [vmem:[#allocation5 + $0x30] sm:$0xff] %v2939
        %2972 = vst [vmem:[#allocation5 + $0x38] sm:$0xff] %v2940
        %2973 = vst [vmem:[#allocation5 + $0x40] sm:$0xff] %v2941
        %2974 = vst [vmem:[#allocation5 + $0x48] sm:$0xff] %v2942
        %2975 = vst [vmem:[#allocation5 + $0x50] sm:$0xff] %v2943
        %2976 = vst [vmem:[#allocation5 + $0x58] sm:$0xff] %v2944
        %2977 = vst [vmem:[#allocation5 + $0x60] sm:$0xff] %v2945
        %2978 = vst [vmem:[#allocation5 + $0x68] sm:$0xff] %v2946
        %2979 = vst [vmem:[#allocation5 + $0x70] sm:$0xff] %v2947
        %2980 = vst [vmem:[#allocation5 + $0x78] sm:$0xff] %v2948
        %2981 = vst [vmem:[#allocation5 + $0x80] sm:$0xff] %v2949
        %2982 = vst [vmem:[#allocation5 + $0x88] sm:$0xff] %v2950
        %2983 = vst [vmem:[#allocation5 + $0x90] sm:$0xff] %v2951
        %2984 = vst [vmem:[#allocation5 + $0x98] sm:$0xff] %v2952
        %2985 = vst [vmem:[#allocation5 + $0xa0] sm:$0xff] %v2953
        %2986 = vst [vmem:[#allocation5 + $0xa8] sm:$0xff] %v2954
        %2987 = vst [vmem:[#allocation5 + $0xb0] sm:$0xff] %v2955
        %2988 = vst [vmem:[#allocation5 + $0xb8] sm:$0xff] %v2956
        %2989 = vst [vmem:[#allocation5 + $0xc0] sm:$0xff] %v2957
        %2990 = vst [vmem:[#allocation5 + $0xc8] sm:$0xff] %v2958
        %2991 = vst [vmem:[#allocation5 + $0xd0] sm:$0xff] %v2959
        %2992 = vst [vmem:[#allocation5 + $0xd8] sm:$0xff] %v2960
        %2993 = vst [vmem:[#allocation5 + $0xe0] sm:$0xff] %v2961
        %2994 = vst [vmem:[#allocation5 + $0xe8] sm:$0xff] %v2962
        %2995 = vst [vmem:[#allocation5 + $0xf0] sm:$0xff] %v2963
        %2996 = vst [vmem:[#allocation5 + $0xf8] sm:$0xff] %v2964
        %2997 = vst.msk [vmem:[#allocation3] sm:$0xff] %vm2483, %v1811
        %2998 = vst.msk [vmem:[#allocation3 + $0x8] sm:$0xff] %vm2483, %v1812
        %2999 = vst.msk [vmem:[#allocation3 + $0x10] sm:$0xff] %vm2483, %v1813
        %3000 = vst.msk [vmem:[#allocation3 + $0x18] sm:$0xff] %vm2483, %v1814
        %3001 = vst.msk [vmem:[#allocation3 + $0x20] sm:$0xff] %vm2483, %v1815
        %3002 = vst.msk [vmem:[#allocation3 + $0x28] sm:$0xff] %vm2483, %v1816
        %3003 = vst.msk [vmem:[#allocation3 + $0x30] sm:$0xff] %vm2483, %v1817
        %3004 = vst.msk [vmem:[#allocation3 + $0x38] sm:$0xff] %vm2483, %v1818
        %3005 = vst.msk [vmem:[#allocation3 + $0x40] sm:$0xff] %vm2483, %v1819
        %3006 = vst.msk [vmem:[#allocation3 + $0x48] sm:$0xff] %vm2483, %v1820
        %3007 = vst.msk [vmem:[#allocation3 + $0x50] sm:$0xff] %vm2483, %v1821
        %3008 = vst.msk [vmem:[#allocation3 + $0x58] sm:$0xff] %vm2483, %v1822
        %3009 = vst.msk [vmem:[#allocation3 + $0x60] sm:$0xff] %vm2483, %v1823
        %3010 = vst.msk [vmem:[#allocation3 + $0x68] sm:$0xff] %vm2483, %v1824
        %3011 = vst.msk [vmem:[#allocation3 + $0x70] sm:$0xff] %vm2483, %v1825
        %3012 = vst.msk [vmem:[#allocation3 + $0x78] sm:$0xff] %vm2483, %v1826
        %3013 = vst.msk [vmem:[#allocation3 + $0x80] sm:$0xff] %vm2483, %v1827
        %3014 = vst.msk [vmem:[#allocation3 + $0x88] sm:$0xff] %vm2483, %v1828
        %3015 = vst.msk [vmem:[#allocation3 + $0x90] sm:$0xff] %vm2483, %v1829
        %3016 = vst.msk [vmem:[#allocation3 + $0x98] sm:$0xff] %vm2483, %v1830
        %3017 = vst.msk [vmem:[#allocation3 + $0xa0] sm:$0xff] %vm2483, %v1831
        %3018 = vst.msk [vmem:[#allocation3 + $0xa8] sm:$0xff] %vm2483, %v1832
        %3019 = vst.msk [vmem:[#allocation3 + $0xb0] sm:$0xff] %vm2483, %v1833
        %3020 = vst.msk [vmem:[#allocation3 + $0xb8] sm:$0xff] %vm2483, %v1834
        %3021 = vst.msk [vmem:[#allocation3 + $0xc0] sm:$0xff] %vm2483, %v1835
        %3022 = vst.msk [vmem:[#allocation3 + $0xc8] sm:$0xff] %vm2483, %v1836
        %3023 = vst.msk [vmem:[#allocation3 + $0xd0] sm:$0xff] %vm2483, %v1837
        %3024 = vst.msk [vmem:[#allocation3 + $0xd8] sm:$0xff] %vm2483, %v1838
        %3025 = vst.msk [vmem:[#allocation3 + $0xe0] sm:$0xff] %vm2483, %v1839
        %3026 = vst.msk [vmem:[#allocation3 + $0xe8] sm:$0xff] %vm2483, %v1840
        %3027 = vst.msk [vmem:[#allocation3 + $0xf0] sm:$0xff] %vm2483, %v1841
        %3028 = vst.msk [vmem:[#allocation3 + $0xf8] sm:$0xff] %vm2483, %v1842
        // Predicated region
        $region77: #{tpu_custom_call.1} parent=51 // pred_check
          %p3029 = pneg %p440
        $region78: #{tpu_custom_call.1} parent=51 // pred_check_branch
          %3031 = sbr.rel (%p3029) target = $region80
        $region79: #{tpu_custom_call.1} parent=51 // pred_region
          %v3032 = vld [vmem:[#allocation5] sm:$0xff]
          %v3033 = vld [vmem:[#allocation5 + $0x8] sm:$0xff]
          %v3034 = vld [vmem:[#allocation5 + $0x10] sm:$0xff]
          %v3035 = vld [vmem:[#allocation5 + $0x18] sm:$0xff]
          %v3036 = vld [vmem:[#allocation5 + $0x20] sm:$0xff]
          %v3037 = vld [vmem:[#allocation5 + $0x28] sm:$0xff]
          %v3038 = vld [vmem:[#allocation5 + $0x30] sm:$0xff]
          %v3039 = vld [vmem:[#allocation5 + $0x38] sm:$0xff]
          %v3040 = vld [vmem:[#allocation5 + $0x40] sm:$0xff]
          %v3041 = vld [vmem:[#allocation5 + $0x48] sm:$0xff]
          %v3042 = vld [vmem:[#allocation5 + $0x50] sm:$0xff]
          %v3043 = vld [vmem:[#allocation5 + $0x58] sm:$0xff]
          %v3044 = vld [vmem:[#allocation5 + $0x60] sm:$0xff]
          %v3045 = vld [vmem:[#allocation5 + $0x68] sm:$0xff]
          %v3046 = vld [vmem:[#allocation5 + $0x70] sm:$0xff]
          %v3047 = vld [vmem:[#allocation5 + $0x78] sm:$0xff]
          %v3048 = vld [vmem:[#allocation5 + $0x80] sm:$0xff]
          %v3049 = vld [vmem:[#allocation5 + $0x88] sm:$0xff]
          %v3050 = vld [vmem:[#allocation5 + $0x90] sm:$0xff]
          %v3051 = vld [vmem:[#allocation5 + $0x98] sm:$0xff]
          %v3052 = vld [vmem:[#allocation5 + $0xa0] sm:$0xff]
          %v3053 = vld [vmem:[#allocation5 + $0xa8] sm:$0xff]
          %v3054 = vld [vmem:[#allocation5 + $0xb0] sm:$0xff]
          %v3055 = vld [vmem:[#allocation5 + $0xb8] sm:$0xff]
          %v3056 = vld [vmem:[#allocation5 + $0xc0] sm:$0xff]
          %v3057 = vld [vmem:[#allocation5 + $0xc8] sm:$0xff]
          %v3058 = vld [vmem:[#allocation5 + $0xd0] sm:$0xff]
          %v3059 = vld [vmem:[#allocation5 + $0xd8] sm:$0xff]
          %v3060 = vld [vmem:[#allocation5 + $0xe0] sm:$0xff]
          %v3061 = vld [vmem:[#allocation5 + $0xe8] sm:$0xff]
          %v3062 = vld [vmem:[#allocation5 + $0xf0] sm:$0xff]
          %v3063 = vld [vmem:[#allocation5 + $0xf8] sm:$0xff]
          %v3064 = vld [vmem:[#allocation4] sm:$0xff]
          %v3065 = vld [vmem:[#allocation4 + $0x8] sm:$0xff]
          %v3066 = vld [vmem:[#allocation4 + $0x10] sm:$0xff]
          %v3067 = vld [vmem:[#allocation4 + $0x18] sm:$0xff]
          %v3068 = vld [vmem:[#allocation4 + $0x20] sm:$0xff]
          %v3069 = vld [vmem:[#allocation4 + $0x28] sm:$0xff]
          %v3070 = vld [vmem:[#allocation4 + $0x30] sm:$0xff]
          %v3071 = vld [vmem:[#allocation4 + $0x38] sm:$0xff]
          %v3072 = vld [vmem:[#allocation4 + $0x40] sm:$0xff]
          %v3073 = vld [vmem:[#allocation4 + $0x48] sm:$0xff]
          %v3074 = vld [vmem:[#allocation4 + $0x50] sm:$0xff]
          %v3075 = vld [vmem:[#allocation4 + $0x58] sm:$0xff]
          %v3076 = vld [vmem:[#allocation4 + $0x60] sm:$0xff]
          %v3077 = vld [vmem:[#allocation4 + $0x68] sm:$0xff]
          %v3078 = vld [vmem:[#allocation4 + $0x70] sm:$0xff]
          %v3079 = vld [vmem:[#allocation4 + $0x78] sm:$0xff]
          %v3080 = vld [vmem:[#allocation4 + $0x80] sm:$0xff]
          %v3081 = vld [vmem:[#allocation4 + $0x88] sm:$0xff]
          %v3082 = vld [vmem:[#allocation4 + $0x90] sm:$0xff]
          %v3083 = vld [vmem:[#allocation4 + $0x98] sm:$0xff]
          %v3084 = vld [vmem:[#allocation4 + $0xa0] sm:$0xff]
          %v3085 = vld [vmem:[#allocation4 + $0xa8] sm:$0xff]
          %v3086 = vld [vmem:[#allocation4 + $0xb0] sm:$0xff]
          %v3087 = vld [vmem:[#allocation4 + $0xb8] sm:$0xff]
          %v3088 = vld [vmem:[#allocation4 + $0xc0] sm:$0xff]
          %v3089 = vld [vmem:[#allocation4 + $0xc8] sm:$0xff]
          %v3090 = vld [vmem:[#allocation4 + $0xd0] sm:$0xff]
          %v3091 = vld [vmem:[#allocation4 + $0xd8] sm:$0xff]
          %v3092 = vld [vmem:[#allocation4 + $0xe0] sm:$0xff]
          %v3093 = vld [vmem:[#allocation4 + $0xe8] sm:$0xff]
          %v3094 = vld [vmem:[#allocation4 + $0xf0] sm:$0xff]
          %v3095 = vld [vmem:[#allocation4 + $0xf8] sm:$0xff]
          %v3096 = vrcp.pop %v3064
          %v3097 = vrcp.pop %v3065
          %v3098 = vrcp.pop %v3066
          %v3099 = vrcp.pop %v3067
          %v3100 = vrcp.pop %v3068
          %v3101 = vrcp.pop %v3069
          %v3102 = vrcp.pop %v3070
          %v3103 = vrcp.pop %v3071
          %v3104 = vrcp.pop %v3072
          %v3105 = vrcp.pop %v3073
          %v3106 = vrcp.pop %v3074
          %v3107 = vrcp.pop %v3075
          %v3108 = vrcp.pop %v3076
          %v3109 = vrcp.pop %v3077
          %v3110 = vrcp.pop %v3078
          %v3111 = vrcp.pop %v3079
          %v3112 = vrcp.pop %v3080
          %v3113 = vrcp.pop %v3081
          %v3114 = vrcp.pop %v3082
          %v3115 = vrcp.pop %v3083
          %v3116 = vrcp.pop %v3084
          %v3117 = vrcp.pop %v3085
          %v3118 = vrcp.pop %v3086
          %v3119 = vrcp.pop %v3087
          %v3120 = vrcp.pop %v3088
          %v3121 = vrcp.pop %v3089
          %v3122 = vrcp.pop %v3090
          %v3123 = vrcp.pop %v3091
          %v3124 = vrcp.pop %v3092
          %v3125 = vrcp.pop %v3093
          %v3126 = vrcp.pop %v3094
          %v3127 = vrcp.pop %v3095
          %3129 = vset.pattern.permute.xlu0 0
          %3130 = vperm.xlu0 %3129, %v3096
          %v3131 = vpop.permute.xlu0 %3130
          %3134 = vset.pattern.permute.xlu0 0
          %3135 = vperm.xlu0 %3134, %v3097
          %v3136 = vpop.permute.xlu0 %3135
          %3139 = vset.pattern.permute.xlu0 0
          %3140 = vperm.xlu0 %3139, %v3098
          %v3141 = vpop.permute.xlu0 %3140
          %3144 = vset.pattern.permute.xlu0 0
          %3145 = vperm.xlu0 %3144, %v3099
          %v3146 = vpop.permute.xlu0 %3145
          %3149 = vset.pattern.permute.xlu0 0
          %3150 = vperm.xlu0 %3149, %v3100
          %v3151 = vpop.permute.xlu0 %3150
          %3154 = vset.pattern.permute.xlu0 0
          %3155 = vperm.xlu0 %3154, %v3101
          %v3156 = vpop.permute.xlu0 %3155
          %3159 = vset.pattern.permute.xlu0 0
          %3160 = vperm.xlu0 %3159, %v3102
          %v3161 = vpop.permute.xlu0 %3160
          %3164 = vset.pattern.permute.xlu0 0
          %3165 = vperm.xlu0 %3164, %v3103
          %v3166 = vpop.permute.xlu0 %3165
          %3169 = vset.pattern.permute.xlu0 0
          %3170 = vperm.xlu0 %3169, %v3104
          %v3171 = vpop.permute.xlu0 %3170
          %3174 = vset.pattern.permute.xlu0 0
          %3175 = vperm.xlu0 %3174, %v3105
          %v3176 = vpop.permute.xlu0 %3175
          %3179 = vset.pattern.permute.xlu0 0
          %3180 = vperm.xlu0 %3179, %v3106
          %v3181 = vpop.permute.xlu0 %3180
          %3184 = vset.pattern.permute.xlu0 0
          %3185 = vperm.xlu0 %3184, %v3107
          %v3186 = vpop.permute.xlu0 %3185
          %3189 = vset.pattern.permute.xlu0 0
          %3190 = vperm.xlu0 %3189, %v3108
          %v3191 = vpop.permute.xlu0 %3190
          %3194 = vset.pattern.permute.xlu0 0
          %3195 = vperm.xlu0 %3194, %v3109
          %v3196 = vpop.permute.xlu0 %3195
          %3199 = vset.pattern.permute.xlu0 0
          %3200 = vperm.xlu0 %3199, %v3110
          %v3201 = vpop.permute.xlu0 %3200
          %3204 = vset.pattern.permute.xlu0 0
          %3205 = vperm.xlu0 %3204, %v3111
          %v3206 = vpop.permute.xlu0 %3205
          %3209 = vset.pattern.permute.xlu0 0
          %3210 = vperm.xlu0 %3209, %v3112
          %v3211 = vpop.permute.xlu0 %3210
          %3214 = vset.pattern.permute.xlu0 0
          %3215 = vperm.xlu0 %3214, %v3113
          %v3216 = vpop.permute.xlu0 %3215
          %3219 = vset.pattern.permute.xlu0 0
          %3220 = vperm.xlu0 %3219, %v3114
          %v3221 = vpop.permute.xlu0 %3220
          %3224 = vset.pattern.permute.xlu0 0
          %3225 = vperm.xlu0 %3224, %v3115
          %v3226 = vpop.permute.xlu0 %3225
          %3229 = vset.pattern.permute.xlu0 0
          %3230 = vperm.xlu0 %3229, %v3116
          %v3231 = vpop.permute.xlu0 %3230
          %3234 = vset.pattern.permute.xlu0 0
          %3235 = vperm.xlu0 %3234, %v3117
          %v3236 = vpop.permute.xlu0 %3235
          %3239 = vset.pattern.permute.xlu0 0
          %3240 = vperm.xlu0 %3239, %v3118
          %v3241 = vpop.permute.xlu0 %3240
          %3244 = vset.pattern.permute.xlu0 0
          %3245 = vperm.xlu0 %3244, %v3119
          %v3246 = vpop.permute.xlu0 %3245
          %3249 = vset.pattern.permute.xlu0 0
          %3250 = vperm.xlu0 %3249, %v3120
          %v3251 = vpop.permute.xlu0 %3250
          %3254 = vset.pattern.permute.xlu0 0
          %3255 = vperm.xlu0 %3254, %v3121
          %v3256 = vpop.permute.xlu0 %3255
          %3259 = vset.pattern.permute.xlu0 0
          %3260 = vperm.xlu0 %3259, %v3122
          %v3261 = vpop.permute.xlu0 %3260
          %3264 = vset.pattern.permute.xlu0 0
          %3265 = vperm.xlu0 %3264, %v3123
          %v3266 = vpop.permute.xlu0 %3265
          %3269 = vset.pattern.permute.xlu0 0
          %3270 = vperm.xlu0 %3269, %v3124
          %v3271 = vpop.permute.xlu0 %3270
          %3274 = vset.pattern.permute.xlu0 0
          %3275 = vperm.xlu0 %3274, %v3125
          %v3276 = vpop.permute.xlu0 %3275
          %3279 = vset.pattern.permute.xlu0 0
          %3280 = vperm.xlu0 %3279, %v3126
          %v3281 = vpop.permute.xlu0 %3280
          %3284 = vset.pattern.permute.xlu0 0
          %3285 = vperm.xlu0 %3284, %v3127
          %v3286 = vpop.permute.xlu0 %3285
          %v3288 = vmul.f32 %v3032, %v3131
          %v3289 = vmul.f32 %v3033, %v3136
          %v3290 = vmul.f32 %v3034, %v3141
          %v3291 = vmul.f32 %v3035, %v3146
          %v3292 = vmul.f32 %v3036, %v3151
          %v3293 = vmul.f32 %v3037, %v3156
          %v3294 = vmul.f32 %v3038, %v3161
          %v3295 = vmul.f32 %v3039, %v3166
          %v3296 = vmul.f32 %v3040, %v3171
          %v3297 = vmul.f32 %v3041, %v3176
          %v3298 = vmul.f32 %v3042, %v3181
          %v3299 = vmul.f32 %v3043, %v3186
          %v3300 = vmul.f32 %v3044, %v3191
          %v3301 = vmul.f32 %v3045, %v3196
          %v3302 = vmul.f32 %v3046, %v3201
          %v3303 = vmul.f32 %v3047, %v3206
          %v3304 = vmul.f32 %v3048, %v3211
          %v3305 = vmul.f32 %v3049, %v3216
          %v3306 = vmul.f32 %v3050, %v3221
          %v3307 = vmul.f32 %v3051, %v3226
          %v3308 = vmul.f32 %v3052, %v3231
          %v3309 = vmul.f32 %v3053, %v3236
          %v3310 = vmul.f32 %v3054, %v3241
          %v3311 = vmul.f32 %v3055, %v3246
          %v3312 = vmul.f32 %v3056, %v3251
          %v3313 = vmul.f32 %v3057, %v3256
          %v3314 = vmul.f32 %v3058, %v3261
          %v3315 = vmul.f32 %v3059, %v3266
          %v3316 = vmul.f32 %v3060, %v3271
          %v3317 = vmul.f32 %v3061, %v3276
          %v3318 = vmul.f32 %v3062, %v3281
          %v3319 = vmul.f32 %v3063, %v3286
          %v3320 = vld [vmem:[%s377] sm:$0xff]
          %v3321 = vld [vmem:[%s377 + $0x8] sm:$0xff]
          %v3322 = vld [vmem:[%s377 + $0x10] sm:$0xff]
          %v3323 = vld [vmem:[%s377 + $0x18] sm:$0xff]
          %v3324 = vld [vmem:[%s377 + $0x20] sm:$0xff]
          %v3325 = vld [vmem:[%s377 + $0x28] sm:$0xff]
          %v3326 = vld [vmem:[%s377 + $0x30] sm:$0xff]
          %v3327 = vld [vmem:[%s377 + $0x38] sm:$0xff]
          %v3328 = vld [vmem:[%s377 + $0x40] sm:$0xff]
          %v3329 = vld [vmem:[%s377 + $0x48] sm:$0xff]
          %v3330 = vld [vmem:[%s377 + $0x50] sm:$0xff]
          %v3331 = vld [vmem:[%s377 + $0x58] sm:$0xff]
          %v3332 = vld [vmem:[%s377 + $0x60] sm:$0xff]
          %v3333 = vld [vmem:[%s377 + $0x68] sm:$0xff]
          %v3334 = vld [vmem:[%s377 + $0x70] sm:$0xff]
          %v3335 = vld [vmem:[%s377 + $0x78] sm:$0xff]
          %v3336 = vld [vmem:[%s377 + $0x80] sm:$0xff]
          %v3337 = vld [vmem:[%s377 + $0x88] sm:$0xff]
          %v3338 = vld [vmem:[%s377 + $0x90] sm:$0xff]
          %v3339 = vld [vmem:[%s377 + $0x98] sm:$0xff]
          %v3340 = vld [vmem:[%s377 + $0xa0] sm:$0xff]
          %v3341 = vld [vmem:[%s377 + $0xa8] sm:$0xff]
          %v3342 = vld [vmem:[%s377 + $0xb0] sm:$0xff]
          %v3343 = vld [vmem:[%s377 + $0xb8] sm:$0xff]
          %v3344 = vld [vmem:[%s377 + $0xc0] sm:$0xff]
          %v3345 = vld [vmem:[%s377 + $0xc8] sm:$0xff]
          %v3346 = vld [vmem:[%s377 + $0xd0] sm:$0xff]
          %v3347 = vld [vmem:[%s377 + $0xd8] sm:$0xff]
          %v3348 = vld [vmem:[%s377 + $0xe0] sm:$0xff]
          %v3349 = vld [vmem:[%s377 + $0xe8] sm:$0xff]
          %v3350 = vld [vmem:[%s377 + $0xf0] sm:$0xff]
          %v3351 = vld [vmem:[%s377 + $0xf8] sm:$0xff]
          %v3352 = vpack.c.bf16 %v3289, %v3288
          %v3353 = vpack.c.bf16 %v3291, %v3290
          %v3354 = vpack.c.bf16 %v3293, %v3292
          %v3355 = vpack.c.bf16 %v3295, %v3294
          %v3356 = vpack.c.bf16 %v3297, %v3296
          %v3357 = vpack.c.bf16 %v3299, %v3298
          %v3358 = vpack.c.bf16 %v3301, %v3300
          %v3359 = vpack.c.bf16 %v3303, %v3302
          %v3360 = vpack.c.bf16 %v3305, %v3304
          %v3361 = vpack.c.bf16 %v3307, %v3306
          %v3362 = vpack.c.bf16 %v3309, %v3308
          %v3363 = vpack.c.bf16 %v3311, %v3310
          %v3364 = vpack.c.bf16 %v3313, %v3312
          %v3365 = vpack.c.bf16 %v3315, %v3314
          %v3366 = vpack.c.bf16 %v3317, %v3316
          %v3367 = vpack.c.bf16 %v3319, %v3318
          %v3368 = vld [vmem:[#allocation14] sm:$0xf]
          %v3369 = vld [vmem:[#allocation14 + $0x4] sm:$0xf]
          %v3370 = vld [vmem:[#allocation14 + $0x8] sm:$0xf]
          %v3371 = vld [vmem:[#allocation14 + $0xc] sm:$0xf]
          %v3372 = vld [vmem:[#allocation14 + $0x10] sm:$0xf]
          %v3373 = vld [vmem:[#allocation14 + $0x14] sm:$0xf]
          %v3374 = vld [vmem:[#allocation14 + $0x18] sm:$0xf]
          %v3375 = vld [vmem:[#allocation14 + $0x1c] sm:$0xf]
          %v3376 = vld [vmem:[#allocation14 + $0x20] sm:$0xf]
          %v3377 = vld [vmem:[#allocation14 + $0x24] sm:$0xf]
          %v3378 = vld [vmem:[#allocation14 + $0x28] sm:$0xf]
          %v3379 = vld [vmem:[#allocation14 + $0x2c] sm:$0xf]
          %v3380 = vld [vmem:[#allocation14 + $0x30] sm:$0xf]
          %v3381 = vld [vmem:[#allocation14 + $0x34] sm:$0xf]
          %v3382 = vld [vmem:[#allocation14 + $0x38] sm:$0xf]
          %v3383 = vld [vmem:[#allocation14 + $0x3c] sm:$0xf]
          %v3400 = vunpack.c.l.b16 %v3368
          %v3401 = vunpack.c.l.b16 %v3369
          %v3402 = vunpack.c.l.b16 %v3370
          %v3403 = vunpack.c.l.b16 %v3371
          %v3404 = vunpack.c.l.b16 %v3372
          %v3405 = vunpack.c.l.b16 %v3373
          %v3406 = vunpack.c.l.b16 %v3374
          %v3407 = vunpack.c.l.b16 %v3375
          %v3408 = vunpack.c.l.b16 %v3376
          %v3409 = vunpack.c.l.b16 %v3377
          %v3410 = vunpack.c.l.b16 %v3378
          %v3411 = vunpack.c.l.b16 %v3379
          %v3412 = vunpack.c.l.b16 %v3380
          %v3413 = vunpack.c.l.b16 %v3381
          %v3414 = vunpack.c.l.b16 %v3382
          %v3415 = vunpack.c.l.b16 %v3383
          %v3416 = vpack.c.b16 %v3401, %v3400
          %v3417 = vpack.c.b16 %v3403, %v3402
          %v3418 = vpack.c.b16 %v3405, %v3404
          %v3419 = vpack.c.b16 %v3407, %v3406
          %v3420 = vpack.c.b16 %v3409, %v3408
          %v3421 = vpack.c.b16 %v3411, %v3410
          %v3422 = vpack.c.b16 %v3413, %v3412
          %v3423 = vpack.c.b16 %v3415, %v3414
          %3432 = vmatprep.subr.bf16.mxu0 0
          %3433 = vmatpush1.bf16.msra.mxu0 %v3423
          %3434 = vmatprep.subr.bf16.mxu0 0
          %3435 = vmatpush1.bf16.msra.mxu0 %v3422
          %3436 = vmatprep.subr.bf16.mxu0 0
          %3437 = vmatpush1.bf16.msra.mxu0 %v3421
          %3438 = vmatprep.subr.bf16.mxu0 0
          %3439 = vmatpush1.bf16.msra.mxu0 %v3420
          %3440 = vmatprep.subr.bf16.mxu0 0
          %3441 = vmatpush1.bf16.msra.mxu0 %v3419
          %3442 = vmatprep.subr.bf16.mxu0 0
          %3443 = vmatpush1.bf16.msra.mxu0 %v3418
          %3444 = vmatprep.subr.bf16.mxu0 0
          %3445 = vmatpush1.bf16.msra.mxu0 %v3417
          %3446 = vmatprep.subr.bf16.mxu0 0
          %3447 = vmatpush1.bf16.msra.mxu0 %v3416
          %3448 = vmatprep.subr.bf16.mxu0 0
          %3449 = vmatpush2.bf16.msra.mxu0 0
          %3450 = vmatprep.subr.bf16.mxu0 0
          %3451 = vmatpush2.bf16.msra.mxu0 0
          %3452 = vmatprep.subr.bf16.mxu0 0
          %3453 = vmatpush2.bf16.msra.mxu0 0
          %3454 = vmatprep.subr.bf16.mxu0 0
          %3455 = vmatpush2.bf16.msra.mxu0 0
          %3456 = vmatprep.subr.bf16.mxu0 0
          %3457 = vmatpush2.bf16.msra.mxu0 0
          %3458 = vmatprep.subr.bf16.mxu0 0
          %3459 = vmatpush2.bf16.msra.mxu0 0
          %3460 = vmatprep.subr.bf16.mxu0 0
          %3461 = vmatpush2.bf16.msra.mxu0 0
          %3462 = vmatprep.subr.bf16.mxu0 0
          %3463 = vmatpush2.bf16.msra.mxu0 0
          %3464 = vmatprep.mubr.bf16.mxu0 0
          %3465 = vmatmul.mubr.bf16.gmra.mxu0 %v3352
          %v3466 = vpop.f32.mrf.mxu0
          %v3467 = vadd.f32 0.0, %v3466
          %v3468 = vpop.f32.mrf.mxu0
          %v3469 = vpop.f32.mrf.mxu0
          %v3470 = vadd.f32 0.0, %v3469
          %v3471 = vpop.f32.mrf.mxu0
          %3472 = vmatprep.mubr.bf16.mxu0 0
          %3473 = vmatmul.mubr.bf16.gmra.mxu0 %v3353
          %v3474 = vpop.f32.mrf.mxu0
          %v3475 = vadd.f32 0.0, %v3474
          %v3476 = vpop.f32.mrf.mxu0
          %v3477 = vpop.f32.mrf.mxu0
          %v3478 = vadd.f32 0.0, %v3477
          %v3479 = vpop.f32.mrf.mxu0
          %3480 = vmatprep.mubr.bf16.mxu0 0
          %3481 = vmatmul.mubr.bf16.gmra.mxu0 %v3354
          %v3482 = vpop.f32.mrf.mxu0
          %v3483 = vadd.f32 0.0, %v3482
          %v3484 = vpop.f32.mrf.mxu0
          %v3485 = vpop.f32.mrf.mxu0
          %v3486 = vadd.f32 0.0, %v3485
          %v3487 = vpop.f32.mrf.mxu0
          %3488 = vmatprep.mubr.bf16.mxu0 0
          %3489 = vmatmul.mubr.bf16.gmra.mxu0 %v3355
          %v3490 = vpop.f32.mrf.mxu0
          %v3491 = vadd.f32 0.0, %v3490
          %v3492 = vpop.f32.mrf.mxu0
          %v3493 = vpop.f32.mrf.mxu0
          %v3494 = vadd.f32 0.0, %v3493
          %v3495 = vpop.f32.mrf.mxu0
          %3496 = vmatprep.mubr.bf16.mxu0 0
          %3497 = vmatmul.mubr.bf16.gmra.mxu0 %v3356
          %v3498 = vpop.f32.mrf.mxu0
          %v3499 = vadd.f32 0.0, %v3498
          %v3500 = vpop.f32.mrf.mxu0
          %v3501 = vpop.f32.mrf.mxu0
          %v3502 = vadd.f32 0.0, %v3501
          %v3503 = vpop.f32.mrf.mxu0
          %3504 = vmatprep.mubr.bf16.mxu0 0
          %3505 = vmatmul.mubr.bf16.gmra.mxu0 %v3357
          %v3506 = vpop.f32.mrf.mxu0
          %v3507 = vadd.f32 0.0, %v3506
          %v3508 = vpop.f32.mrf.mxu0
          %v3509 = vpop.f32.mrf.mxu0
          %v3510 = vadd.f32 0.0, %v3509
          %v3511 = vpop.f32.mrf.mxu0
          %3512 = vmatprep.mubr.bf16.mxu0 0
          %3513 = vmatmul.mubr.bf16.gmra.mxu0 %v3358
          %v3514 = vpop.f32.mrf.mxu0
          %v3515 = vadd.f32 0.0, %v3514
          %v3516 = vpop.f32.mrf.mxu0
          %v3517 = vpop.f32.mrf.mxu0
          %v3518 = vadd.f32 0.0, %v3517
          %v3519 = vpop.f32.mrf.mxu0
          %3520 = vmatprep.mubr.bf16.mxu0 0
          %3521 = vmatmul.mubr.bf16.gmra.mxu0 %v3359
          %v3522 = vpop.f32.mrf.mxu0
          %v3523 = vadd.f32 0.0, %v3522
          %v3524 = vpop.f32.mrf.mxu0
          %v3525 = vpop.f32.mrf.mxu0
          %v3526 = vadd.f32 0.0, %v3525
          %v3527 = vpop.f32.mrf.mxu0
          %3528 = vmatprep.mubr.bf16.mxu0 0
          %3529 = vmatmul.mubr.bf16.gmra.mxu0 %v3360
          %v3530 = vpop.f32.mrf.mxu0
          %v3531 = vadd.f32 0.0, %v3530
          %v3532 = vpop.f32.mrf.mxu0
          %v3533 = vpop.f32.mrf.mxu0
          %v3534 = vadd.f32 0.0, %v3533
          %v3535 = vpop.f32.mrf.mxu0
          %3536 = vmatprep.mubr.bf16.mxu0 0
          %3537 = vmatmul.mubr.bf16.gmra.mxu0 %v3361
          %v3538 = vpop.f32.mrf.mxu0
          %v3539 = vadd.f32 0.0, %v3538
          %v3540 = vpop.f32.mrf.mxu0
          %v3541 = vpop.f32.mrf.mxu0
          %v3542 = vadd.f32 0.0, %v3541
          %v3543 = vpop.f32.mrf.mxu0
          %3544 = vmatprep.mubr.bf16.mxu0 0
          %3545 = vmatmul.mubr.bf16.gmra.mxu0 %v3362
          %v3546 = vpop.f32.mrf.mxu0
          %v3547 = vadd.f32 0.0, %v3546
          %v3548 = vpop.f32.mrf.mxu0
          %v3549 = vpop.f32.mrf.mxu0
          %v3550 = vadd.f32 0.0, %v3549
          %v3551 = vpop.f32.mrf.mxu0
          %3552 = vmatprep.mubr.bf16.mxu0 0
          %3553 = vmatmul.mubr.bf16.gmra.mxu0 %v3363
          %v3554 = vpop.f32.mrf.mxu0
          %v3555 = vadd.f32 0.0, %v3554
          %v3556 = vpop.f32.mrf.mxu0
          %v3557 = vpop.f32.mrf.mxu0
          %v3558 = vadd.f32 0.0, %v3557
          %v3559 = vpop.f32.mrf.mxu0
          %3560 = vmatprep.mubr.bf16.mxu0 0
          %3561 = vmatmul.mubr.bf16.gmra.mxu0 %v3364
          %v3562 = vpop.f32.mrf.mxu0
          %v3563 = vadd.f32 0.0, %v3562
          %v3564 = vpop.f32.mrf.mxu0
          %v3565 = vpop.f32.mrf.mxu0
          %v3566 = vadd.f32 0.0, %v3565
          %v3567 = vpop.f32.mrf.mxu0
          %3568 = vmatprep.mubr.bf16.mxu0 0
          %3569 = vmatmul.mubr.bf16.gmra.mxu0 %v3365
          %v3570 = vpop.f32.mrf.mxu0
          %v3571 = vadd.f32 0.0, %v3570
          %v3572 = vpop.f32.mrf.mxu0
          %v3573 = vpop.f32.mrf.mxu0
          %v3574 = vadd.f32 0.0, %v3573
          %v3575 = vpop.f32.mrf.mxu0
          %3576 = vmatprep.mubr.bf16.mxu0 0
          %3577 = vmatmul.mubr.bf16.gmra.mxu0 %v3366
          %v3578 = vpop.f32.mrf.mxu0
          %v3579 = vadd.f32 0.0, %v3578
          %v3580 = vpop.f32.mrf.mxu0
          %v3581 = vpop.f32.mrf.mxu0
          %v3582 = vadd.f32 0.0, %v3581
          %v3583 = vpop.f32.mrf.mxu0
          %3584 = vmatprep.mubr.bf16.mxu0 0
          %3585 = vmatmul.mubr.bf16.gmra.mxu0 %v3367
          %v3586 = vpop.f32.mrf.mxu0
          %v3587 = vadd.f32 0.0, %v3586
          %v3588 = vpop.f32.mrf.mxu0
          %v3589 = vpop.f32.mrf.mxu0
          %v3590 = vadd.f32 0.0, %v3589
          %v3591 = vpop.f32.mrf.mxu0
          %3592 = vdwg.mxu0
          %v3593 = vadd.f32 %v3320, %v3467
          %v3594 = vadd.f32 %v3321, %v3470
          %v3595 = vadd.f32 %v3322, %v3475
          %v3596 = vadd.f32 %v3323, %v3478
          %v3597 = vadd.f32 %v3324, %v3483
          %v3598 = vadd.f32 %v3325, %v3486
          %v3599 = vadd.f32 %v3326, %v3491
          %v3600 = vadd.f32 %v3327, %v3494
          %v3601 = vadd.f32 %v3328, %v3499
          %v3602 = vadd.f32 %v3329, %v3502
          %v3603 = vadd.f32 %v3330, %v3507
          %v3604 = vadd.f32 %v3331, %v3510
          %v3605 = vadd.f32 %v3332, %v3515
          %v3606 = vadd.f32 %v3333, %v3518
          %v3607 = vadd.f32 %v3334, %v3523
          %v3608 = vadd.f32 %v3335, %v3526
          %v3609 = vadd.f32 %v3336, %v3531
          %v3610 = vadd.f32 %v3337, %v3534
          %v3611 = vadd.f32 %v3338, %v3539
          %v3612 = vadd.f32 %v3339, %v3542
          %v3613 = vadd.f32 %v3340, %v3547
          %v3614 = vadd.f32 %v3341, %v3550
          %v3615 = vadd.f32 %v3342, %v3555
          %v3616 = vadd.f32 %v3343, %v3558
          %v3617 = vadd.f32 %v3344, %v3563
          %v3618 = vadd.f32 %v3345, %v3566
          %v3619 = vadd.f32 %v3346, %v3571
          %v3620 = vadd.f32 %v3347, %v3574
          %v3621 = vadd.f32 %v3348, %v3579
          %v3622 = vadd.f32 %v3349, %v3582
          %v3623 = vadd.f32 %v3350, %v3587
          %v3624 = vadd.f32 %v3351, %v3590
          %v3625 = vld [vmem:[%s7] sm:$0x1]
          %v3627 = vlaneseq
          %v3628 = vshrl.u32 %v3627, 7
          %v3629 = vsub.s32 0, %v3628
          %v3630 = vrot.slane %v3625, %v3629
          %v3632 = vadd.f32 %v3593, %v3630
          %v3633 = vadd.f32 %v3594, %v3630
          %v3634 = vadd.f32 %v3595, %v3630
          %v3635 = vadd.f32 %v3596, %v3630
          %v3636 = vadd.f32 %v3597, %v3630
          %v3637 = vadd.f32 %v3598, %v3630
          %v3638 = vadd.f32 %v3599, %v3630
          %v3639 = vadd.f32 %v3600, %v3630
          %v3640 = vadd.f32 %v3601, %v3630
          %v3641 = vadd.f32 %v3602, %v3630
          %v3642 = vadd.f32 %v3603, %v3630
          %v3643 = vadd.f32 %v3604, %v3630
          %v3644 = vadd.f32 %v3605, %v3630
          %v3645 = vadd.f32 %v3606, %v3630
          %v3646 = vadd.f32 %v3607, %v3630
          %v3647 = vadd.f32 %v3608, %v3630
          %v3648 = vadd.f32 %v3609, %v3630
          %v3649 = vadd.f32 %v3610, %v3630
          %v3650 = vadd.f32 %v3611, %v3630
          %v3651 = vadd.f32 %v3612, %v3630
          %v3652 = vadd.f32 %v3613, %v3630
          %v3653 = vadd.f32 %v3614, %v3630
          %v3654 = vadd.f32 %v3615, %v3630
          %v3655 = vadd.f32 %v3616, %v3630
          %v3656 = vadd.f32 %v3617, %v3630
          %v3657 = vadd.f32 %v3618, %v3630
          %v3658 = vadd.f32 %v3619, %v3630
          %v3659 = vadd.f32 %v3620, %v3630
          %v3660 = vadd.f32 %v3621, %v3630
          %v3661 = vadd.f32 %v3622, %v3630
          %v3662 = vadd.f32 %v3623, %v3630
          %v3663 = vadd.f32 %v3624, %v3630
          %3664 = vst [vmem:[%s435] sm:$0xff] %v3632
          %3665 = vst [vmem:[%s435 + $0x8] sm:$0xff] %v3633
          %3666 = vst [vmem:[%s435 + $0x10] sm:$0xff] %v3634
          %3667 = vst [vmem:[%s435 + $0x18] sm:$0xff] %v3635
          %3668 = vst [vmem:[%s435 + $0x20] sm:$0xff] %v3636
          %3669 = vst [vmem:[%s435 + $0x28] sm:$0xff] %v3637
          %3670 = vst [vmem:[%s435 + $0x30] sm:$0xff] %v3638
          %3671 = vst [vmem:[%s435 + $0x38] sm:$0xff] %v3639
          %3672 = vst [vmem:[%s435 + $0x40] sm:$0xff] %v3640
          %3673 = vst [vmem:[%s435 + $0x48] sm:$0xff] %v3641
          %3674 = vst [vmem:[%s435 + $0x50] sm:$0xff] %v3642
          %3675 = vst [vmem:[%s435 + $0x58] sm:$0xff] %v3643
          %3676 = vst [vmem:[%s435 + $0x60] sm:$0xff] %v3644
          %3677 = vst [vmem:[%s435 + $0x68] sm:$0xff] %v3645
          %3678 = vst [vmem:[%s435 + $0x70] sm:$0xff] %v3646
          %3679 = vst [vmem:[%s435 + $0x78] sm:$0xff] %v3647
          %3680 = vst [vmem:[%s435 + $0x80] sm:$0xff] %v3648
          %3681 = vst [vmem:[%s435 + $0x88] sm:$0xff] %v3649
          %3682 = vst [vmem:[%s435 + $0x90] sm:$0xff] %v3650
          %3683 = vst [vmem:[%s435 + $0x98] sm:$0xff] %v3651
          %3684 = vst [vmem:[%s435 + $0xa0] sm:$0xff] %v3652
          %3685 = vst [vmem:[%s435 + $0xa8] sm:$0xff] %v3653
          %3686 = vst [vmem:[%s435 + $0xb0] sm:$0xff] %v3654
          %3687 = vst [vmem:[%s435 + $0xb8] sm:$0xff] %v3655
          %3688 = vst [vmem:[%s435 + $0xc0] sm:$0xff] %v3656
          %3689 = vst [vmem:[%s435 + $0xc8] sm:$0xff] %v3657
          %3690 = vst [vmem:[%s435 + $0xd0] sm:$0xff] %v3658
          %3691 = vst [vmem:[%s435 + $0xd8] sm:$0xff] %v3659
          %3692 = vst [vmem:[%s435 + $0xe0] sm:$0xff] %v3660
          %3693 = vst [vmem:[%s435 + $0xe8] sm:$0xff] %v3661
          %3694 = vst [vmem:[%s435 + $0xf0] sm:$0xff] %v3662
          %3695 = vst [vmem:[%s435 + $0xf8] sm:$0xff] %v3663
        $region80: #{tpu_custom_call.1} parent=51 // pred_fallthru
          _
        %s3696 = sand.u32 %s240, 1
        %s3697 = scalar_lea.sflag [#allocation8], %s3696
        %s3698 = sand.u32 %s240, 1
        %s3699 = smul.addr %s3698, 256
        %s3700 = scalar_lea.vmem [#allocation15], %s3699
        // Predicated region
        $region81: #{tpu_custom_call.1} parent=51 // pred_check
          %p3701 = pneg %p250
        $region82: #{tpu_custom_call.1} parent=51 // pred_check_branch
          %3703 = sbr.rel (%p3701) target = $region84
        $region83: #{tpu_custom_call.1} parent=51 // pred_region
          %s3704 = smul.u32 32, %s35
          %s3706 = ssub.s32 4096, 4096
          %3707 = vsyncadd %s3697, %s3706
          %s3708 = smul.addr %s34, 32
          %s3709 = sadd.s32 %s3704, %s3708
          %s3710 = smul.addr %s3709, 128
          %s3711 = scalar_lea.hbm %s8, %s3710
          %s3712 = sshll.u32 %s3700, 4
          %s3713 = int_to_ptr.vmem [resolvable:$true] %s3712
          %3718 = dma.vmem_to_hbm [thread:$0]  %s3713, 4096, %s3711, %s3697, 128, 128, 8
        $region84: #{tpu_custom_call.1} parent=51 // pred_fallthru
          _
      $region52: #{tpu_custom_call.1} parent=5 // pred_fallthru
        _
      %p3719 = scmp.le.s32.totalorder 2, %s24
      // Predicated region
      $region85: #{tpu_custom_call.1} parent=5 // pred_check
        %p3720 = pneg %p3719
      $region86: #{tpu_custom_call.1} parent=5 // pred_check_branch
        %3722 = sbr.rel (%p3720) target = $region88
      $region87: #{tpu_custom_call.1} parent=5 // pred_region
        %s3723 = ssub.s32 %s24, 2
        // Predicated region
        $region89: #{tpu_custom_call.1} parent=87 // pred_check
          %p3724 = pneg %p256
        $region90: #{tpu_custom_call.1} parent=87 // pred_check_branch
          %3726 = sbr.rel (%p3724) target = $region92
        $region91: #{tpu_custom_call.1} parent=87 // pred_region
          %s3727 = sand.u32 %s241, 1
          %s3728 = scalar_lea.sflag [#allocation8], %s3727
          %s3729 = sand.u32 %s241, 1
          %s3730 = smul.addr %s3729, 256
          %s3731 = scalar_lea.vmem [#allocation15], %s3730
          %3732 = dma.done %s3728, 4096
        $region92: #{tpu_custom_call.1} parent=87 // pred_fallthru
          _
      $region88: #{tpu_custom_call.1} parent=5 // pred_fallthru
        _
    $region6: #{tpu_custom_call.1} parent=1 // loop_footer
      %s28 = sadd.s32 1, %s24
    $region7: #{tpu_custom_call.1} parent=1 // loop_footer_branch
      %23 = sbr.rel target = $region3
    $region8: #{tpu_custom_call.1} parent=1 // loop_exit
      _
    %3733 = vsyncpa [#allocation7], 1
    %s3734 = scalar_lea.sflag [#allocation7], 1
    %3735 = vsyncpa %s3734, 1
    %3736 = vsyncpa [#allocation10], 1
    %s3737 = scalar_lea.sflag [#allocation10], 1
    %3738 = vsyncpa %s3737, 1
    %3739 = vsyncpa [#allocation13], 1
    %3740 = vsyncpa [#allocation8], 1
    %s3741 = scalar_lea.sflag [#allocation8], 1
    %3742 = vsyncpa %s3741, 1

</llo_original>
